<compile_context>
chip_gen: v5e
topology: v5e:2x2
jax: 0.10.0
libtpu: 0.0.40
codegen_flags: <defaults>
</compile_context>

<pallas_src>
import functools

import numpy as np
import jax
import jax.numpy as jnp
from jax import lax
from jax.experimental import pallas as pl
from jax.experimental.pallas import tpu as pltpu

NEG_SLOPE = 0.01  # PyTorch nn.LeakyReLU default


def _build_tap_masks(H, W, dilations):
    """Host-precomputed {0,1} validity masks per (layer, tap).

    mask[l, t, 0, p] == 1 iff output pixel p = y*W + x reads an in-bounds input
    pixel for tap t = ky*3 + kx of the layer with dilation d, i.e.
    0 <= y + (ky-1)*d < H  and  0 <= x + (kx-1)*d < W.
    """
    HW = H * W
    L = len(dilations)
    yy, xx = np.meshgrid(np.arange(H), np.arange(W), indexing="ij")
    yy = yy.reshape(-1)
    xx = xx.reshape(-1)
    masks = np.zeros((L, 9, 1, HW), np.float32)
    for l, d in enumerate(dilations):
        for t in range(9):
            ky, kx = divmod(t, 3)
            dy, dx = (ky - 1) * d, (kx - 1) * d
            valid = ((yy + dy >= 0) & (yy + dy < H) &
                     (xx + dx >= 0) & (xx + dx < W))
            masks[l, t, 0, :] = valid.astype(np.float32)
    return masks


def _make_block_kernel(H, W, C, dilations):
    n_layers = len(dilations)
    HW = H * W

    def kernel(x_ref, w_ref, b_ref, mask_ref, o_ref, act_ref, acc_ref):
        # Layer-0 activation, (C, HW) f32, carried across layers in VMEM.
        act_ref[...] = x_ref[0].astype(jnp.float32)

        for l, d in enumerate(dilations):
            act = act_ref[...]                                    # (C, HW)
            # Center tap (zero shift, no boundary mask) initializes the acc.
            acc_ref[...] = jnp.dot(w_ref[l, 4], act,
                                   preferred_element_type=jnp.float32)
            for t in range(9):
                if t == 4:
                    continue
                ky, kx = divmod(t, 3)
                dy, dx = (ky - 1) * d, (kx - 1) * d
                off = dy * W + dx                                 # flat offset
                # rolled[:, p] = act[:, (p + off) % HW]   (XLU rotate)
                rolled = pltpu.roll(act, shift=(-off) % HW, axis=1)
                tap = rolled * mask_ref[l, t]                     # zero OOB px
                acc_ref[...] += jnp.dot(w_ref[l, t], tap,
                                        preferred_element_type=jnp.float32)
            y = acc_ref[...] + b_ref[l]                           # (C,1) bias
            y = jnp.where(y >= 0, y, NEG_SLOPE * y)               # LeakyReLU
            if l < n_layers - 1:
                act_ref[...] = y                                  # next layer
            else:
                o_ref[0] = y.astype(o_ref.dtype)                  # (C, HW)

    return kernel


@functools.partial(jax.jit, static_argnames=("dilations",))
def dilated_conv_block(x_nchw, w_stack, b_stack, dilations=(1, 2, 3)):
    """Pallas implementation of dilatedConvBlock_m.forward (NCHW in/out)."""
    N, C, H, W = x_nchw.shape
    n_layers = len(dilations)
    HW = H * W

    x_flat = x_nchw.reshape(N, C, HW)          # free reshape, stays NCHW-major
    masks = jnp.asarray(_build_tap_masks(H, W, dilations))

    kernel = _make_block_kernel(H, W, C, dilations)
    out = pl.pallas_call(
        kernel,
        out_shape=jax.ShapeDtypeStruct((N, C, HW), x_nchw.dtype),
        grid=(N,),
        in_specs=[
            pl.BlockSpec((1, C, HW), lambda n: (n, 0, 0)),
            pl.BlockSpec((n_layers, 9, C, C), lambda n: (0, 0, 0, 0)),
            pl.BlockSpec((n_layers, C, 1), lambda n: (0, 0, 0)),
            pl.BlockSpec((n_layers, 9, 1, HW), lambda n: (0, 0, 0, 0)),
        ],
        out_specs=pl.BlockSpec((1, C, HW), lambda n: (n, 0, 0)),
        scratch_shapes=[
            pltpu.VMEM((C, HW), jnp.float32),   # activation carried over layers
            pltpu.VMEM((C, HW), jnp.float32),   # per-layer f32 accumulator
        ],
        compiler_params=pltpu.CompilerParams(
            dimension_semantics=("parallel",)),
    )(x_flat, w_stack, b_stack, masks)

    return out.reshape(N, C, H, W)              # free reshape back to NCHW


def pack_params(weights_oihw, biases):
    """Pack per-layer PyTorch-layout Conv2d params.

    weights: list of (Cout, Cin, 3, 3) OIHW  ->  (L, 9, Cout, Cin), tap-major
    biases:  list of (Cout,)                 ->  (L, Cout, 1)
    """
    w_stack = jnp.stack([
        jnp.transpose(w, (2, 3, 0, 1)).reshape(9, w.shape[0], w.shape[1])
        for w in weights_oihw])
    b_stack = jnp.stack([b.reshape(-1, 1) for b in biases])
    return w_stack, b_stack


# ---------------- pure-JAX reference (for correctness check) ----------------
def reference(x_nchw, weights_oihw, biases, dilations):
    x = x_nchw
    for w, b, d in zip(weights_oihw, biases, dilations):
        y = lax.conv_general_dilated(
            x, w, window_strides=(1, 1), padding=((d, d), (d, d)),
            rhs_dilation=(d, d), dimension_numbers=("NCHW", "OIHW", "NCHW"))
        y = y + b.reshape(1, -1, 1, 1)
        x = jnp.where(y >= 0, y, NEG_SLOPE * y)
    return x


if __name__ == "__main__":
    key = jax.random.PRNGKey(0)
    k_x, k_w = jax.random.split(key)

    # Module defaults: inChannel=32, iConvNum=3.  Small spatial size.
    N, C, H, W = 2, 32, 16, 16
    conv_num = 3
    dilations = tuple(range(1, conv_num + 1))

    x = jax.random.normal(k_x, (N, C, H, W), jnp.float32)
    wkeys = jax.random.split(k_w, 2 * conv_num)
    weights = [0.1 * jax.random.normal(wkeys[2 * i], (C, C, 3, 3), jnp.float32)
               for i in range(conv_num)]                 # OIHW (PyTorch layout)
    biases = [0.1 * jax.random.normal(wkeys[2 * i + 1], (C,), jnp.float32)
              for i in range(conv_num)]
    w_stack, b_stack = pack_params(weights, biases)

    out = dilated_conv_block(x, w_stack, b_stack, dilations=dilations)
    out = jax.block_until_ready(out)

    ref = reference(x, weights, biases, dilations)
    assert out.shape == (N, C, H, W), out.shape
    max_err = float(jnp.max(jnp.abs(out - ref)))
    assert jnp.allclose(out, ref, atol=1e-4, rtol=1e-4), max_err

    print("KERNEL_OK")
</pallas_src>

<mosaic_0001>
module attributes {stable_mosaic.version = 11 : i64} {
  func.func @kernel(%arg0: i32, %arg1: memref<1x32x256xf32, #tpu.memory_space<vmem>>, %arg2: memref<3x9x32x32xf32, #tpu.memory_space<vmem>>, %arg3: memref<3x32x1xf32, #tpu.memory_space<vmem>>, %arg4: memref<3x9x1x256xf32, #tpu.memory_space<vmem>>, %arg5: memref<1x32x256xf32, #tpu.memory_space<vmem>>, %arg6: memref<32x256xf32, #tpu.memory_space<vmem>>, %arg7: memref<32x256xf32, #tpu.memory_space<vmem>>) attributes {dimension_semantics = [#tpu.dimension_semantics<parallel>], iteration_bounds = array<i64: 2>, scalar_prefetch = 0 : i64, scratch_operands = 2 : i64, tpu.core_type = #tpu.core_type<tc>, window_params = [{transform_indices = @transform_0, window_bounds = array<i64: 1, 32, 256>}, {pipeline_mode = #tpu.pipeline_mode<synchronous>, transform_indices = @transform_1, window_bounds = array<i64: 3, 9, 32, 32>}, {pipeline_mode = #tpu.pipeline_mode<synchronous>, transform_indices = @transform_2, window_bounds = array<i64: 3, 32, 1>}, {pipeline_mode = #tpu.pipeline_mode<synchronous>, transform_indices = @transform_3, window_bounds = array<i64: 3, 9, 1, 256>}, {transform_indices = @transform_4, window_bounds = array<i64: 1, 32, 256>}]} {
    %c0 = arith.constant 0 : index
    %c0_0 = arith.constant 0 : index
    %c0_1 = arith.constant 0 : index
    %0 = vector.load %arg1[%c0, %c0_0, %c0_1] : memref<1x32x256xf32, #tpu.memory_space<vmem>>, vector<1x32x256xf32>
    %1 = vector.shape_cast %0 : vector<1x32x256xf32> to vector<32x256xf32>
    %c0_2 = arith.constant 0 : index
    %c0_3 = arith.constant 0 : index
    %2 = vector.load %arg6[%c0_2, %c0_3] : memref<32x256xf32, #tpu.memory_space<vmem>>, vector<32x256xf32>
    tpu.vector_store %arg6[%c0_2, %c0_3], %1 {strides = array<i32>} : memref<32x256xf32, #tpu.memory_space<vmem>>, vector<32x256xf32>,
    %c0_4 = arith.constant 0 : index
    %c0_5 = arith.constant 0 : index
    %3 = vector.load %arg6[%c0_4, %c0_5] : memref<32x256xf32, #tpu.memory_space<vmem>>, vector<32x256xf32>
    %c0_6 = arith.constant 0 : index
    %c4 = arith.constant 4 : index
    %c0_7 = arith.constant 0 : index
    %c0_8 = arith.constant 0 : index
    %4 = vector.load %arg2[%c0_6, %c4, %c0_7, %c0_8] : memref<3x9x32x32xf32, #tpu.memory_space<vmem>>, vector<1x1x32x32xf32>
    %5 = vector.shape_cast %4 : vector<1x1x32x32xf32> to vector<32x32xf32>
    %cst = arith.constant dense<0.000000e+00> : vector<32x256xf32>
    %6 = tpu.matmul %5, %3, %cst {dimension_numbers = #tpu.dot_dimension_numbers<[1], [0], [0], [1], [0, 0, 1, 1], [], []>} : vector<32x32xf32>, vector<32x256xf32>, vector<32x256xf32> -> vector<32x256xf32>
    %c0_9 = arith.constant 0 : index
    %c0_10 = arith.constant 0 : index
    %7 = vector.load %arg7[%c0_9, %c0_10] : memref<32x256xf32, #tpu.memory_space<vmem>>, vector<32x256xf32>
    tpu.vector_store %arg7[%c0_9, %c0_10], %6 {strides = array<i32>} : memref<32x256xf32, #tpu.memory_space<vmem>>, vector<32x256xf32>,
    %c17_i32 = arith.constant 17 : i32
    %8 = tpu.dynamic_rotate %3 by %c17_i32 dim 1 : vector<32x256xf32>, i32 -> vector<32x256xf32>
    %c0_11 = arith.constant 0 : index
    %c0_12 = arith.constant 0 : index
    %c0_13 = arith.constant 0 : index
    %c0_14 = arith.constant 0 : index
    %9 = vector.load %arg4[%c0_11, %c0_12, %c0_13, %c0_14] : memref<3x9x1x256xf32, #tpu.memory_space<vmem>>, vector<1x1x1x256xf32>
    %10 = vector.shape_cast %9 : vector<1x1x1x256xf32> to vector<1x256xf32>
    %11 = vector.broadcast %10 : vector<1x256xf32> to vector<32x256xf32>
    %12 = arith.mulf %8, %11 : vector<32x256xf32>
    %c0_15 = arith.constant 0 : index
    %c0_16 = arith.constant 0 : index
    %13 = vector.load %arg7[%c0_15, %c0_16] : memref<32x256xf32, #tpu.memory_space<vmem>>, vector<32x256xf32>
    %c0_17 = arith.constant 0 : index
    %c0_18 = arith.constant 0 : index
    %c0_19 = arith.constant 0 : index
    %c0_20 = arith.constant 0 : index
    %14 = vector.load %arg2[%c0_17, %c0_18, %c0_19, %c0_20] : memref<3x9x32x32xf32, #tpu.memory_space<vmem>>, vector<1x1x32x32xf32>
    %15 = vector.shape_cast %14 : vector<1x1x32x32xf32> to vector<32x32xf32>
    %cst_21 = arith.constant dense<0.000000e+00> : vector<32x256xf32>
    %16 = tpu.matmul %15, %12, %cst_21 {dimension_numbers = #tpu.dot_dimension_numbers<[1], [0], [0], [1], [0, 0, 1, 1], [], []>} : vector<32x32xf32>, vector<32x256xf32>, vector<32x256xf32> -> vector<32x256xf32>
    %17 = arith.addf %13, %16 : vector<32x256xf32>
    %c0_22 = arith.constant 0 : index
    %c0_23 = arith.constant 0 : index
    %18 = vector.load %arg7[%c0_22, %c0_23] : memref<32x256xf32, #tpu.memory_space<vmem>>, vector<32x256xf32>
    tpu.vector_store %arg7[%c0_22, %c0_23], %17 {strides = array<i32>} : memref<32x256xf32, #tpu.memory_space<vmem>>, vector<32x256xf32>,
    %c16_i32 = arith.constant 16 : i32
    %19 = tpu.dynamic_rotate %3 by %c16_i32 dim 1 : vector<32x256xf32>, i32 -> vector<32x256xf32>
    %c0_24 = arith.constant 0 : index
    %c1 = arith.constant 1 : index
    %c0_25 = arith.constant 0 : index
    %c0_26 = arith.constant 0 : index
    %20 = vector.load %arg4[%c0_24, %c1, %c0_25, %c0_26] : memref<3x9x1x256xf32, #tpu.memory_space<vmem>>, vector<1x1x1x256xf32>
    %21 = vector.shape_cast %20 : vector<1x1x1x256xf32> to vector<1x256xf32>
    %22 = vector.broadcast %21 : vector<1x256xf32> to vector<32x256xf32>
    %23 = arith.mulf %19, %22 : vector<32x256xf32>
    %c0_27 = arith.constant 0 : index
    %c0_28 = arith.constant 0 : index
    %24 = vector.load %arg7[%c0_27, %c0_28] : memref<32x256xf32, #tpu.memory_space<vmem>>, vector<32x256xf32>
    %c0_29 = arith.constant 0 : index
    %c1_30 = arith.constant 1 : index
    %c0_31 = arith.constant 0 : index
    %c0_32 = arith.constant 0 : index
    %25 = vector.load %arg2[%c0_29, %c1_30, %c0_31, %c0_32] : memref<3x9x32x32xf32, #tpu.memory_space<vmem>>, vector<1x1x32x32xf32>
    %26 = vector.shape_cast %25 : vector<1x1x32x32xf32> to vector<32x32xf32>
    %cst_33 = arith.constant dense<0.000000e+00> : vector<32x256xf32>
    %27 = tpu.matmul %26, %23, %cst_33 {dimension_numbers = #tpu.dot_dimension_numbers<[1], [0], [0], [1], [0, 0, 1, 1], [], []>} : vector<32x32xf32>, vector<32x256xf32>, vector<32x256xf32> -> vector<32x256xf32>
    %28 = arith.addf %24, %27 : vector<32x256xf32>
    %c0_34 = arith.constant 0 : index
    %c0_35 = arith.constant 0 : index
    %29 = vector.load %arg7[%c0_34, %c0_35] : memref<32x256xf32, #tpu.memory_space<vmem>>, vector<32x256xf32>
    tpu.vector_store %arg7[%c0_34, %c0_35], %28 {strides = array<i32>} : memref<32x256xf32, #tpu.memory_space<vmem>>, vector<32x256xf32>,
    %c15_i32 = arith.constant 15 : i32
    %30 = tpu.dynamic_rotate %3 by %c15_i32 dim 1 : vector<32x256xf32>, i32 -> vector<32x256xf32>
    %c0_36 = arith.constant 0 : index
    %c2 = arith.constant 2 : index
    %c0_37 = arith.constant 0 : index
    %c0_38 = arith.constant 0 : index
    %31 = vector.load %arg4[%c0_36, %c2, %c0_37, %c0_38] : memref<3x9x1x256xf32, #tpu.memory_space<vmem>>, vector<1x1x1x256xf32>
    %32 = vector.shape_cast %31 : vector<1x1x1x256xf32> to vector<1x256xf32>
    %33 = vector.broadcast %32 : vector<1x256xf32> to vector<32x256xf32>
    %34 = arith.mulf %30, %33 : vector<32x256xf32>
    %c0_39 = arith.constant 0 : index
    %c0_40 = arith.constant 0 : index
    %35 = vector.load %arg7[%c0_39, %c0_40] : memref<32x256xf32, #tpu.memory_space<vmem>>, vector<32x256xf32>
    %c0_41 = arith.constant 0 : index
    %c2_42 = arith.constant 2 : index
    %c0_43 = arith.constant 0 : index
    %c0_44 = arith.constant 0 : index
    %36 = vector.load %arg2[%c0_41, %c2_42, %c0_43, %c0_44] : memref<3x9x32x32xf32, #tpu.memory_space<vmem>>, vector<1x1x32x32xf32>
    %37 = vector.shape_cast %36 : vector<1x1x32x32xf32> to vector<32x32xf32>
    %cst_45 = arith.constant dense<0.000000e+00> : vector<32x256xf32>
    %38 = tpu.matmul %37, %34, %cst_45 {dimension_numbers = #tpu.dot_dimension_numbers<[1], [0], [0], [1], [0, 0, 1, 1], [], []>} : vector<32x32xf32>, vector<32x256xf32>, vector<32x256xf32> -> vector<32x256xf32>
    %39 = arith.addf %35, %38 : vector<32x256xf32>
    %c0_46 = arith.constant 0 : index
    %c0_47 = arith.constant 0 : index
    %40 = vector.load %arg7[%c0_46, %c0_47] : memref<32x256xf32, #tpu.memory_space<vmem>>, vector<32x256xf32>
    tpu.vector_store %arg7[%c0_46, %c0_47], %39 {strides = array<i32>} : memref<32x256xf32, #tpu.memory_space<vmem>>, vector<32x256xf32>,
    %c1_i32 = arith.constant 1 : i32
    %41 = tpu.dynamic_rotate %3 by %c1_i32 dim 1 : vector<32x256xf32>, i32 -> vector<32x256xf32>
    %c0_48 = arith.constant 0 : index
    %c3 = arith.constant 3 : index
    %c0_49 = arith.constant 0 : index
    %c0_50 = arith.constant 0 : index
    %42 = vector.load %arg4[%c0_48, %c3, %c0_49, %c0_50] : memref<3x9x1x256xf32, #tpu.memory_space<vmem>>, vector<1x1x1x256xf32>
    %43 = vector.shape_cast %42 : vector<1x1x1x256xf32> to vector<1x256xf32>
    %44 = vector.broadcast %43 : vector<1x256xf32> to vector<32x256xf32>
    %45 = arith.mulf %41, %44 : vector<32x256xf32>
    %c0_51 = arith.constant 0 : index
    %c0_52 = arith.constant 0 : index
    %46 = vector.load %arg7[%c0_51, %c0_52] : memref<32x256xf32, #tpu.memory_space<vmem>>, vector<32x256xf32>
    %c0_53 = arith.constant 0 : index
    %c3_54 = arith.constant 3 : index
    %c0_55 = arith.constant 0 : index
    %c0_56 = arith.constant 0 : index
    %47 = vector.load %arg2[%c0_53, %c3_54, %c0_55, %c0_56] : memref<3x9x32x32xf32, #tpu.memory_space<vmem>>, vector<1x1x32x32xf32>
    %48 = vector.shape_cast %47 : vector<1x1x32x32xf32> to vector<32x32xf32>
    %cst_57 = arith.constant dense<0.000000e+00> : vector<32x256xf32>
    %49 = tpu.matmul %48, %45, %cst_57 {dimension_numbers = #tpu.dot_dimension_numbers<[1], [0], [0], [1], [0, 0, 1, 1], [], []>} : vector<32x32xf32>, vector<32x256xf32>, vector<32x256xf32> -> vector<32x256xf32>
    %50 = arith.addf %46, %49 : vector<32x256xf32>
    %c0_58 = arith.constant 0 : index
    %c0_59 = arith.constant 0 : index
    %51 = vector.load %arg7[%c0_58, %c0_59] : memref<32x256xf32, #tpu.memory_space<vmem>>, vector<32x256xf32>
    tpu.vector_store %arg7[%c0_58, %c0_59], %50 {strides = array<i32>} : memref<32x256xf32, #tpu.memory_space<vmem>>, vector<32x256xf32>,
    %c255_i32 = arith.constant 255 : i32
    %52 = tpu.dynamic_rotate %3 by %c255_i32 dim 1 : vector<32x256xf32>, i32 -> vector<32x256xf32>
    %c0_60 = arith.constant 0 : index
    %c5 = arith.constant 5 : index
    %c0_61 = arith.constant 0 : index
    %c0_62 = arith.constant 0 : index
    %53 = vector.load %arg4[%c0_60, %c5, %c0_61, %c0_62] : memref<3x9x1x256xf32, #tpu.memory_space<vmem>>, vector<1x1x1x256xf32>
    %54 = vector.shape_cast %53 : vector<1x1x1x256xf32> to vector<1x256xf32>
    %55 = vector.broadcast %54 : vector<1x256xf32> to vector<32x256xf32>
    %56 = arith.mulf %52, %55 : vector<32x256xf32>
    %c0_63 = arith.constant 0 : index
    %c0_64 = arith.constant 0 : index
    %57 = vector.load %arg7[%c0_63, %c0_64] : memref<32x256xf32, #tpu.memory_space<vmem>>, vector<32x256xf32>
    %c0_65 = arith.constant 0 : index
    %c5_66 = arith.constant 5 : index
    %c0_67 = arith.constant 0 : index
    %c0_68 = arith.constant 0 : index
    %58 = vector.load %arg2[%c0_65, %c5_66, %c0_67, %c0_68] : memref<3x9x32x32xf32, #tpu.memory_space<vmem>>, vector<1x1x32x32xf32>
    %59 = vector.shape_cast %58 : vector<1x1x32x32xf32> to vector<32x32xf32>
    %cst_69 = arith.constant dense<0.000000e+00> : vector<32x256xf32>
    %60 = tpu.matmul %59, %56, %cst_69 {dimension_numbers = #tpu.dot_dimension_numbers<[1], [0], [0], [1], [0, 0, 1, 1], [], []>} : vector<32x32xf32>, vector<32x256xf32>, vector<32x256xf32> -> vector<32x256xf32>
    %61 = arith.addf %57, %60 : vector<32x256xf32>
    %c0_70 = arith.constant 0 : index
    %c0_71 = arith.constant 0 : index
    %62 = vector.load %arg7[%c0_70, %c0_71] : memref<32x256xf32, #tpu.memory_space<vmem>>, vector<32x256xf32>
    tpu.vector_store %arg7[%c0_70, %c0_71], %61 {strides = array<i32>} : memref<32x256xf32, #tpu.memory_space<vmem>>, vector<32x256xf32>,
    %c241_i32 = arith.constant 241 : i32
    %63 = tpu.dynamic_rotate %3 by %c241_i32 dim 1 : vector<32x256xf32>, i32 -> vector<32x256xf32>
    %c0_72 = arith.constant 0 : index
    %c6 = arith.constant 6 : index
    %c0_73 = arith.constant 0 : index
    %c0_74 = arith.constant 0 : index
    %64 = vector.load %arg4[%c0_72, %c6, %c0_73, %c0_74] : memref<3x9x1x256xf32, #tpu.memory_space<vmem>>, vector<1x1x1x256xf32>
    %65 = vector.shape_cast %64 : vector<1x1x1x256xf32> to vector<1x256xf32>
    %66 = vector.broadcast %65 : vector<1x256xf32> to vector<32x256xf32>
    %67 = arith.mulf %63, %66 : vector<32x256xf32>
    %c0_75 = arith.constant 0 : index
    %c0_76 = arith.constant 0 : index
    %68 = vector.load %arg7[%c0_75, %c0_76] : memref<32x256xf32, #tpu.memory_space<vmem>>, vector<32x256xf32>
    %c0_77 = arith.constant 0 : index
    %c6_78 = arith.constant 6 : index
    %c0_79 = arith.constant 0 : index
    %c0_80 = arith.constant 0 : index
    %69 = vector.load %arg2[%c0_77, %c6_78, %c0_79, %c0_80] : memref<3x9x32x32xf32, #tpu.memory_space<vmem>>, vector<1x1x32x32xf32>
    %70 = vector.shape_cast %69 : vector<1x1x32x32xf32> to vector<32x32xf32>
    %cst_81 = arith.constant dense<0.000000e+00> : vector<32x256xf32>
    %71 = tpu.matmul %70, %67, %cst_81 {dimension_numbers = #tpu.dot_dimension_numbers<[1], [0], [0], [1], [0, 0, 1, 1], [], []>} : vector<32x32xf32>, vector<32x256xf32>, vector<32x256xf32> -> vector<32x256xf32>
    %72 = arith.addf %68, %71 : vector<32x256xf32>
    %c0_82 = arith.constant 0 : index
    %c0_83 = arith.constant 0 : index
    %73 = vector.load %arg7[%c0_82, %c0_83] : memref<32x256xf32, #tpu.memory_space<vmem>>, vector<32x256xf32>
    tpu.vector_store %arg7[%c0_82, %c0_83], %72 {strides = array<i32>} : memref<32x256xf32, #tpu.memory_space<vmem>>, vector<32x256xf32>,
    %c240_i32 = arith.constant 240 : i32
    %74 = tpu.dynamic_rotate %3 by %c240_i32 dim 1 : vector<32x256xf32>, i32 -> vector<32x256xf32>
    %c0_84 = arith.constant 0 : index
    %c7 = arith.constant 7 : index
    %c0_85 = arith.constant 0 : index
    %c0_86 = arith.constant 0 : index
    %75 = vector.load %arg4[%c0_84, %c7, %c0_85, %c0_86] : memref<3x9x1x256xf32, #tpu.memory_space<vmem>>, vector<1x1x1x256xf32>
    %76 = vector.shape_cast %75 : vector<1x1x1x256xf32> to vector<1x256xf32>
    %77 = vector.broadcast %76 : vector<1x256xf32> to vector<32x256xf32>
    %78 = arith.mulf %74, %77 : vector<32x256xf32>
    %c0_87 = arith.constant 0 : index
    %c0_88 = arith.constant 0 : index
    %79 = vector.load %arg7[%c0_87, %c0_88] : memref<32x256xf32, #tpu.memory_space<vmem>>, vector<32x256xf32>
    %c0_89 = arith.constant 0 : index
    %c7_90 = arith.constant 7 : index
    %c0_91 = arith.constant 0 : index
    %c0_92 = arith.constant 0 : index
    %80 = vector.load %arg2[%c0_89, %c7_90, %c0_91, %c0_92] : memref<3x9x32x32xf32, #tpu.memory_space<vmem>>, vector<1x1x32x32xf32>
    %81 = vector.shape_cast %80 : vector<1x1x32x32xf32> to vector<32x32xf32>
    %cst_93 = arith.constant dense<0.000000e+00> : vector<32x256xf32>
    %82 = tpu.matmul %81, %78, %cst_93 {dimension_numbers = #tpu.dot_dimension_numbers<[1], [0], [0], [1], [0, 0, 1, 1], [], []>} : vector<32x32xf32>, vector<32x256xf32>, vector<32x256xf32> -> vector<32x256xf32>
    %83 = arith.addf %79, %82 : vector<32x256xf32>
    %c0_94 = arith.constant 0 : index
    %c0_95 = arith.constant 0 : index
    %84 = vector.load %arg7[%c0_94, %c0_95] : memref<32x256xf32, #tpu.memory_space<vmem>>, vector<32x256xf32>
    tpu.vector_store %arg7[%c0_94, %c0_95], %83 {strides = array<i32>} : memref<32x256xf32, #tpu.memory_space<vmem>>, vector<32x256xf32>,
    %c239_i32 = arith.constant 239 : i32
    %85 = tpu.dynamic_rotate %3 by %c239_i32 dim 1 : vector<32x256xf32>, i32 -> vector<32x256xf32>
    %c0_96 = arith.constant 0 : index
    %c8 = arith.constant 8 : index
    %c0_97 = arith.constant 0 : index
    %c0_98 = arith.constant 0 : index
    %86 = vector.load %arg4[%c0_96, %c8, %c0_97, %c0_98] : memref<3x9x1x256xf32, #tpu.memory_space<vmem>>, vector<1x1x1x256xf32>
    %87 = vector.shape_cast %86 : vector<1x1x1x256xf32> to vector<1x256xf32>
    %88 = vector.broadcast %87 : vector<1x256xf32> to vector<32x256xf32>
    %89 = arith.mulf %85, %88 : vector<32x256xf32>
    %c0_99 = arith.constant 0 : index
    %c0_100 = arith.constant 0 : index
    %90 = vector.load %arg7[%c0_99, %c0_100] : memref<32x256xf32, #tpu.memory_space<vmem>>, vector<32x256xf32>
    %c0_101 = arith.constant 0 : index
    %c8_102 = arith.constant 8 : index
    %c0_103 = arith.constant 0 : index
    %c0_104 = arith.constant 0 : index
    %91 = vector.load %arg2[%c0_101, %c8_102, %c0_103, %c0_104] : memref<3x9x32x32xf32, #tpu.memory_space<vmem>>, vector<1x1x32x32xf32>
    %92 = vector.shape_cast %91 : vector<1x1x32x32xf32> to vector<32x32xf32>
    %cst_105 = arith.constant dense<0.000000e+00> : vector<32x256xf32>
    %93 = tpu.matmul %92, %89, %cst_105 {dimension_numbers = #tpu.dot_dimension_numbers<[1], [0], [0], [1], [0, 0, 1, 1], [], []>} : vector<32x32xf32>, vector<32x256xf32>, vector<32x256xf32> -> vector<32x256xf32>
    %94 = arith.addf %90, %93 : vector<32x256xf32>
    %c0_106 = arith.constant 0 : index
    %c0_107 = arith.constant 0 : index
    %95 = vector.load %arg7[%c0_106, %c0_107] : memref<32x256xf32, #tpu.memory_space<vmem>>, vector<32x256xf32>
    tpu.vector_store %arg7[%c0_106, %c0_107], %94 {strides = array<i32>} : memref<32x256xf32, #tpu.memory_space<vmem>>, vector<32x256xf32>,
    %c0_108 = arith.constant 0 : index
    %c0_109 = arith.constant 0 : index
    %96 = vector.load %arg7[%c0_108, %c0_109] : memref<32x256xf32, #tpu.memory_space<vmem>>, vector<32x256xf32>
    %c0_110 = arith.constant 0 : index
    %c0_111 = arith.constant 0 : index
    %c0_112 = arith.constant 0 : index
    %97 = vector.load %arg3[%c0_110, %c0_111, %c0_112] : memref<3x32x1xf32, #tpu.memory_space<vmem>>, vector<1x32x1xf32>
    %98 = vector.shape_cast %97 : vector<1x32x1xf32> to vector<32x1xf32>
    %99 = vector.broadcast %98 : vector<32x1xf32> to vector<32x256xf32>
    %100 = arith.addf %96, %99 : vector<32x256xf32>
    %cst_113 = arith.constant 0.000000e+00 : f32
    %101 = vector.broadcast %cst_113 : f32 to vector<32x256xf32>
    %102 = arith.cmpf oge, %100, %101 : vector<32x256xf32>
    %cst_114 = arith.constant 0.00999999977 : f32
    %103 = vector.broadcast %cst_114 : f32 to vector<32x256xf32>
    %104 = arith.mulf %103, %100 : vector<32x256xf32>
    %105 = arith.select %102, %100, %104 : vector<32x256xi1>, vector<32x256xf32>
    %c0_115 = arith.constant 0 : index
    %c0_116 = arith.constant 0 : index
    %106 = vector.load %arg6[%c0_115, %c0_116] : memref<32x256xf32, #tpu.memory_space<vmem>>, vector<32x256xf32>
    tpu.vector_store %arg6[%c0_115, %c0_116], %105 {strides = array<i32>} : memref<32x256xf32, #tpu.memory_space<vmem>>, vector<32x256xf32>,
    %c0_117 = arith.constant 0 : index
    %c0_118 = arith.constant 0 : index
    %107 = vector.load %arg6[%c0_117, %c0_118] : memref<32x256xf32, #tpu.memory_space<vmem>>, vector<32x256xf32>
    %c1_119 = arith.constant 1 : index
    %c4_120 = arith.constant 4 : index
    %c0_121 = arith.constant 0 : index
    %c0_122 = arith.constant 0 : index
    %108 = vector.load %arg2[%c1_119, %c4_120, %c0_121, %c0_122] : memref<3x9x32x32xf32, #tpu.memory_space<vmem>>, vector<1x1x32x32xf32>
    %109 = vector.shape_cast %108 : vector<1x1x32x32xf32> to vector<32x32xf32>
    %cst_123 = arith.constant dense<0.000000e+00> : vector<32x256xf32>
    %110 = tpu.matmul %109, %107, %cst_123 {dimension_numbers = #tpu.dot_dimension_numbers<[1], [0], [0], [1], [0, 0, 1, 1], [], []>} : vector<32x32xf32>, vector<32x256xf32>, vector<32x256xf32> -> vector<32x256xf32>
    %c0_124 = arith.constant 0 : index
    %c0_125 = arith.constant 0 : index
    %111 = vector.load %arg7[%c0_124, %c0_125] : memref<32x256xf32, #tpu.memory_space<vmem>>, vector<32x256xf32>
    tpu.vector_store %arg7[%c0_124, %c0_125], %110 {strides = array<i32>} : memref<32x256xf32, #tpu.memory_space<vmem>>, vector<32x256xf32>,
    %c34_i32 = arith.constant 34 : i32
    %112 = tpu.dynamic_rotate %107 by %c34_i32 dim 1 : vector<32x256xf32>, i32 -> vector<32x256xf32>
    %c1_126 = arith.constant 1 : index
    %c0_127 = arith.constant 0 : index
    %c0_128 = arith.constant 0 : index
    %c0_129 = arith.constant 0 : index
    %113 = vector.load %arg4[%c1_126, %c0_127, %c0_128, %c0_129] : memref<3x9x1x256xf32, #tpu.memory_space<vmem>>, vector<1x1x1x256xf32>
    %114 = vector.shape_cast %113 : vector<1x1x1x256xf32> to vector<1x256xf32>
    %115 = vector.broadcast %114 : vector<1x256xf32> to vector<32x256xf32>
    %116 = arith.mulf %112, %115 : vector<32x256xf32>
    %c0_130 = arith.constant 0 : index
    %c0_131 = arith.constant 0 : index
    %117 = vector.load %arg7[%c0_130, %c0_131] : memref<32x256xf32, #tpu.memory_space<vmem>>, vector<32x256xf32>
    %c1_132 = arith.constant 1 : index
    %c0_133 = arith.constant 0 : index
    %c0_134 = arith.constant 0 : index
    %c0_135 = arith.constant 0 : index
    %118 = vector.load %arg2[%c1_132, %c0_133, %c0_134, %c0_135] : memref<3x9x32x32xf32, #tpu.memory_space<vmem>>, vector<1x1x32x32xf32>
    %119 = vector.shape_cast %118 : vector<1x1x32x32xf32> to vector<32x32xf32>
    %cst_136 = arith.constant dense<0.000000e+00> : vector<32x256xf32>
    %120 = tpu.matmul %119, %116, %cst_136 {dimension_numbers = #tpu.dot_dimension_numbers<[1], [0], [0], [1], [0, 0, 1, 1], [], []>} : vector<32x32xf32>, vector<32x256xf32>, vector<32x256xf32> -> vector<32x256xf32>
    %121 = arith.addf %117, %120 : vector<32x256xf32>
    %c0_137 = arith.constant 0 : index
    %c0_138 = arith.constant 0 : index
    %122 = vector.load %arg7[%c0_137, %c0_138] : memref<32x256xf32, #tpu.memory_space<vmem>>, vector<32x256xf32>
    tpu.vector_store %arg7[%c0_137, %c0_138], %121 {strides = array<i32>} : memref<32x256xf32, #tpu.memory_space<vmem>>, vector<32x256xf32>,
    %c32_i32 = arith.constant 32 : i32
    %123 = tpu.dynamic_rotate %107 by %c32_i32 dim 1 : vector<32x256xf32>, i32 -> vector<32x256xf32>
    %c1_139 = arith.constant 1 : index
    %c1_140 = arith.constant 1 : index
    %c0_141 = arith.constant 0 : index
    %c0_142 = arith.constant 0 : index
    %124 = vector.load %arg4[%c1_139, %c1_140, %c0_141, %c0_142] : memref<3x9x1x256xf32, #tpu.memory_space<vmem>>, vector<1x1x1x256xf32>
    %125 = vector.shape_cast %124 : vector<1x1x1x256xf32> to vector<1x256xf32>
    %126 = vector.broadcast %125 : vector<1x256xf32> to vector<32x256xf32>
    %127 = arith.mulf %123, %126 : vector<32x256xf32>
    %c0_143 = arith.constant 0 : index
    %c0_144 = arith.constant 0 : index
    %128 = vector.load %arg7[%c0_143, %c0_144] : memref<32x256xf32, #tpu.memory_space<vmem>>, vector<32x256xf32>
    %c1_145 = arith.constant 1 : index
    %c1_146 = arith.constant 1 : index
    %c0_147 = arith.constant 0 : index
    %c0_148 = arith.constant 0 : index
    %129 = vector.load %arg2[%c1_145, %c1_146, %c0_147, %c0_148] : memref<3x9x32x32xf32, #tpu.memory_space<vmem>>, vector<1x1x32x32xf32>
    %130 = vector.shape_cast %129 : vector<1x1x32x32xf32> to vector<32x32xf32>
    %cst_149 = arith.constant dense<0.000000e+00> : vector<32x256xf32>
    %131 = tpu.matmul %130, %127, %cst_149 {dimension_numbers = #tpu.dot_dimension_numbers<[1], [0], [0], [1], [0, 0, 1, 1], [], []>} : vector<32x32xf32>, vector<32x256xf32>, vector<32x256xf32> -> vector<32x256xf32>
    %132 = arith.addf %128, %131 : vector<32x256xf32>
    %c0_150 = arith.constant 0 : index
    %c0_151 = arith.constant 0 : index
    %133 = vector.load %arg7[%c0_150, %c0_151] : memref<32x256xf32, #tpu.memory_space<vmem>>, vector<32x256xf32>
    tpu.vector_store %arg7[%c0_150, %c0_151], %132 {strides = array<i32>} : memref<32x256xf32, #tpu.memory_space<vmem>>, vector<32x256xf32>,
    %c30_i32 = arith.constant 30 : i32
    %134 = tpu.dynamic_rotate %107 by %c30_i32 dim 1 : vector<32x256xf32>, i32 -> vector<32x256xf32>
    %c1_152 = arith.constant 1 : index
    %c2_153 = arith.constant 2 : index
    %c0_154 = arith.constant 0 : index
    %c0_155 = arith.constant 0 : index
    %135 = vector.load %arg4[%c1_152, %c2_153, %c0_154, %c0_155] : memref<3x9x1x256xf32, #tpu.memory_space<vmem>>, vector<1x1x1x256xf32>
    %136 = vector.shape_cast %135 : vector<1x1x1x256xf32> to vector<1x256xf32>
    %137 = vector.broadcast %136 : vector<1x256xf32> to vector<32x256xf32>
    %138 = arith.mulf %134, %137 : vector<32x256xf32>
    %c0_156 = arith.constant 0 : index
    %c0_157 = arith.constant 0 : index
    %139 = vector.load %arg7[%c0_156, %c0_157] : memref<32x256xf32, #tpu.memory_space<vmem>>, vector<32x256xf32>
    %c1_158 = arith.constant 1 : index
    %c2_159 = arith.constant 2 : index
    %c0_160 = arith.constant 0 : index
    %c0_161 = arith.constant 0 : index
    %140 = vector.load %arg2[%c1_158, %c2_159, %c0_160, %c0_161] : memref<3x9x32x32xf32, #tpu.memory_space<vmem>>, vector<1x1x32x32xf32>
    %141 = vector.shape_cast %140 : vector<1x1x32x32xf32> to vector<32x32xf32>
    %cst_162 = arith.constant dense<0.000000e+00> : vector<32x256xf32>
    %142 = tpu.matmul %141, %138, %cst_162 {dimension_numbers = #tpu.dot_dimension_numbers<[1], [0], [0], [1], [0, 0, 1, 1], [], []>} : vector<32x32xf32>, vector<32x256xf32>, vector<32x256xf32> -> vector<32x256xf32>
    %143 = arith.addf %139, %142 : vector<32x256xf32>
    %c0_163 = arith.constant 0 : index
    %c0_164 = arith.constant 0 : index
    %144 = vector.load %arg7[%c0_163, %c0_164] : memref<32x256xf32, #tpu.memory_space<vmem>>, vector<32x256xf32>
    tpu.vector_store %arg7[%c0_163, %c0_164], %143 {strides = array<i32>} : memref<32x256xf32, #tpu.memory_space<vmem>>, vector<32x256xf32>,
    %c2_i32 = arith.constant 2 : i32
    %145 = tpu.dynamic_rotate %107 by %c2_i32 dim 1 : vector<32x256xf32>, i32 -> vector<32x256xf32>
    %c1_165 = arith.constant 1 : index
    %c3_166 = arith.constant 3 : index
    %c0_167 = arith.constant 0 : index
    %c0_168 = arith.constant 0 : index
    %146 = vector.load %arg4[%c1_165, %c3_166, %c0_167, %c0_168] : memref<3x9x1x256xf32, #tpu.memory_space<vmem>>, vector<1x1x1x256xf32>
    %147 = vector.shape_cast %146 : vector<1x1x1x256xf32> to vector<1x256xf32>
    %148 = vector.broadcast %147 : vector<1x256xf32> to vector<32x256xf32>
    %149 = arith.mulf %145, %148 : vector<32x256xf32>
    %c0_169 = arith.constant 0 : index
    %c0_170 = arith.constant 0 : index
    %150 = vector.load %arg7[%c0_169, %c0_170] : memref<32x256xf32, #tpu.memory_space<vmem>>, vector<32x256xf32>
    %c1_171 = arith.constant 1 : index
    %c3_172 = arith.constant 3 : index
    %c0_173 = arith.constant 0 : index
    %c0_174 = arith.constant 0 : index
    %151 = vector.load %arg2[%c1_171, %c3_172, %c0_173, %c0_174] : memref<3x9x32x32xf32, #tpu.memory_space<vmem>>, vector<1x1x32x32xf32>
    %152 = vector.shape_cast %151 : vector<1x1x32x32xf32> to vector<32x32xf32>
    %cst_175 = arith.constant dense<0.000000e+00> : vector<32x256xf32>
    %153 = tpu.matmul %152, %149, %cst_175 {dimension_numbers = #tpu.dot_dimension_numbers<[1], [0], [0], [1], [0, 0, 1, 1], [], []>} : vector<32x32xf32>, vector<32x256xf32>, vector<32x256xf32> -> vector<32x256xf32>
    %154 = arith.addf %150, %153 : vector<32x256xf32>
    %c0_176 = arith.constant 0 : index
    %c0_177 = arith.constant 0 : index
    %155 = vector.load %arg7[%c0_176, %c0_177] : memref<32x256xf32, #tpu.memory_space<vmem>>, vector<32x256xf32>
    tpu.vector_store %arg7[%c0_176, %c0_177], %154 {strides = array<i32>} : memref<32x256xf32, #tpu.memory_space<vmem>>, vector<32x256xf32>,
    %c254_i32 = arith.constant 254 : i32
    %156 = tpu.dynamic_rotate %107 by %c254_i32 dim 1 : vector<32x256xf32>, i32 -> vector<32x256xf32>
    %c1_178 = arith.constant 1 : index
    %c5_179 = arith.constant 5 : index
    %c0_180 = arith.constant 0 : index
    %c0_181 = arith.constant 0 : index
    %157 = vector.load %arg4[%c1_178, %c5_179, %c0_180, %c0_181] : memref<3x9x1x256xf32, #tpu.memory_space<vmem>>, vector<1x1x1x256xf32>
    %158 = vector.shape_cast %157 : vector<1x1x1x256xf32> to vector<1x256xf32>
    %159 = vector.broadcast %158 : vector<1x256xf32> to vector<32x256xf32>
    %160 = arith.mulf %156, %159 : vector<32x256xf32>
    %c0_182 = arith.constant 0 : index
    %c0_183 = arith.constant 0 : index
    %161 = vector.load %arg7[%c0_182, %c0_183] : memref<32x256xf32, #tpu.memory_space<vmem>>, vector<32x256xf32>
    %c1_184 = arith.constant 1 : index
    %c5_185 = arith.constant 5 : index
    %c0_186 = arith.constant 0 : index
    %c0_187 = arith.constant 0 : index
    %162 = vector.load %arg2[%c1_184, %c5_185, %c0_186, %c0_187] : memref<3x9x32x32xf32, #tpu.memory_space<vmem>>, vector<1x1x32x32xf32>
    %163 = vector.shape_cast %162 : vector<1x1x32x32xf32> to vector<32x32xf32>
    %cst_188 = arith.constant dense<0.000000e+00> : vector<32x256xf32>
    %164 = tpu.matmul %163, %160, %cst_188 {dimension_numbers = #tpu.dot_dimension_numbers<[1], [0], [0], [1], [0, 0, 1, 1], [], []>} : vector<32x32xf32>, vector<32x256xf32>, vector<32x256xf32> -> vector<32x256xf32>
    %165 = arith.addf %161, %164 : vector<32x256xf32>
    %c0_189 = arith.constant 0 : index
    %c0_190 = arith.constant 0 : index
    %166 = vector.load %arg7[%c0_189, %c0_190] : memref<32x256xf32, #tpu.memory_space<vmem>>, vector<32x256xf32>
    tpu.vector_store %arg7[%c0_189, %c0_190], %165 {strides = array<i32>} : memref<32x256xf32, #tpu.memory_space<vmem>>, vector<32x256xf32>,
    %c226_i32 = arith.constant 226 : i32
    %167 = tpu.dynamic_rotate %107 by %c226_i32 dim 1 : vector<32x256xf32>, i32 -> vector<32x256xf32>
    %c1_191 = arith.constant 1 : index
    %c6_192 = arith.constant 6 : index
    %c0_193 = arith.constant 0 : index
    %c0_194 = arith.constant 0 : index
    %168 = vector.load %arg4[%c1_191, %c6_192, %c0_193, %c0_194] : memref<3x9x1x256xf32, #tpu.memory_space<vmem>>, vector<1x1x1x256xf32>
    %169 = vector.shape_cast %168 : vector<1x1x1x256xf32> to vector<1x256xf32>
    %170 = vector.broadcast %169 : vector<1x256xf32> to vector<32x256xf32>
    %171 = arith.mulf %167, %170 : vector<32x256xf32>
    %c0_195 = arith.constant 0 : index
    %c0_196 = arith.constant 0 : index
    %172 = vector.load %arg7[%c0_195, %c0_196] : memref<32x256xf32, #tpu.memory_space<vmem>>, vector<32x256xf32>
    %c1_197 = arith.constant 1 : index
    %c6_198 = arith.constant 6 : index
    %c0_199 = arith.constant 0 : index
    %c0_200 = arith.constant 0 : index
    %173 = vector.load %arg2[%c1_197, %c6_198, %c0_199, %c0_200] : memref<3x9x32x32xf32, #tpu.memory_space<vmem>>, vector<1x1x32x32xf32>
    %174 = vector.shape_cast %173 : vector<1x1x32x32xf32> to vector<32x32xf32>
    %cst_201 = arith.constant dense<0.000000e+00> : vector<32x256xf32>
    %175 = tpu.matmul %174, %171, %cst_201 {dimension_numbers = #tpu.dot_dimension_numbers<[1], [0], [0], [1], [0, 0, 1, 1], [], []>} : vector<32x32xf32>, vector<32x256xf32>, vector<32x256xf32> -> vector<32x256xf32>
    %176 = arith.addf %172, %175 : vector<32x256xf32>
    %c0_202 = arith.constant 0 : index
    %c0_203 = arith.constant 0 : index
    %177 = vector.load %arg7[%c0_202, %c0_203] : memref<32x256xf32, #tpu.memory_space<vmem>>, vector<32x256xf32>
    tpu.vector_store %arg7[%c0_202, %c0_203], %176 {strides = array<i32>} : memref<32x256xf32, #tpu.memory_space<vmem>>, vector<32x256xf32>,
    %c224_i32 = arith.constant 224 : i32
    %178 = tpu.dynamic_rotate %107 by %c224_i32 dim 1 : vector<32x256xf32>, i32 -> vector<32x256xf32>
    %c1_204 = arith.constant 1 : index
    %c7_205 = arith.constant 7 : index
    %c0_206 = arith.constant 0 : index
    %c0_207 = arith.constant 0 : index
    %179 = vector.load %arg4[%c1_204, %c7_205, %c0_206, %c0_207] : memref<3x9x1x256xf32, #tpu.memory_space<vmem>>, vector<1x1x1x256xf32>
    %180 = vector.shape_cast %179 : vector<1x1x1x256xf32> to vector<1x256xf32>
    %181 = vector.broadcast %180 : vector<1x256xf32> to vector<32x256xf32>
    %182 = arith.mulf %178, %181 : vector<32x256xf32>
    %c0_208 = arith.constant 0 : index
    %c0_209 = arith.constant 0 : index
    %183 = vector.load %arg7[%c0_208, %c0_209] : memref<32x256xf32, #tpu.memory_space<vmem>>, vector<32x256xf32>
    %c1_210 = arith.constant 1 : index
    %c7_211 = arith.constant 7 : index
    %c0_212 = arith.constant 0 : index
    %c0_213 = arith.constant 0 : index
    %184 = vector.load %arg2[%c1_210, %c7_211, %c0_212, %c0_213] : memref<3x9x32x32xf32, #tpu.memory_space<vmem>>, vector<1x1x32x32xf32>
    %185 = vector.shape_cast %184 : vector<1x1x32x32xf32> to vector<32x32xf32>
    %cst_214 = arith.constant dense<0.000000e+00> : vector<32x256xf32>
    %186 = tpu.matmul %185, %182, %cst_214 {dimension_numbers = #tpu.dot_dimension_numbers<[1], [0], [0], [1], [0, 0, 1, 1], [], []>} : vector<32x32xf32>, vector<32x256xf32>, vector<32x256xf32> -> vector<32x256xf32>
    %187 = arith.addf %183, %186 : vector<32x256xf32>
    %c0_215 = arith.constant 0 : index
    %c0_216 = arith.constant 0 : index
    %188 = vector.load %arg7[%c0_215, %c0_216] : memref<32x256xf32, #tpu.memory_space<vmem>>, vector<32x256xf32>
    tpu.vector_store %arg7[%c0_215, %c0_216], %187 {strides = array<i32>} : memref<32x256xf32, #tpu.memory_space<vmem>>, vector<32x256xf32>,
    %c222_i32 = arith.constant 222 : i32
    %189 = tpu.dynamic_rotate %107 by %c222_i32 dim 1 : vector<32x256xf32>, i32 -> vector<32x256xf32>
    %c1_217 = arith.constant 1 : index
    %c8_218 = arith.constant 8 : index
    %c0_219 = arith.constant 0 : index
    %c0_220 = arith.constant 0 : index
    %190 = vector.load %arg4[%c1_217, %c8_218, %c0_219, %c0_220] : memref<3x9x1x256xf32, #tpu.memory_space<vmem>>, vector<1x1x1x256xf32>
    %191 = vector.shape_cast %190 : vector<1x1x1x256xf32> to vector<1x256xf32>
    %192 = vector.broadcast %191 : vector<1x256xf32> to vector<32x256xf32>
    %193 = arith.mulf %189, %192 : vector<32x256xf32>
    %c0_221 = arith.constant 0 : index
    %c0_222 = arith.constant 0 : index
    %194 = vector.load %arg7[%c0_221, %c0_222] : memref<32x256xf32, #tpu.memory_space<vmem>>, vector<32x256xf32>
    %c1_223 = arith.constant 1 : index
    %c8_224 = arith.constant 8 : index
    %c0_225 = arith.constant 0 : index
    %c0_226 = arith.constant 0 : index
    %195 = vector.load %arg2[%c1_223, %c8_224, %c0_225, %c0_226] : memref<3x9x32x32xf32, #tpu.memory_space<vmem>>, vector<1x1x32x32xf32>
    %196 = vector.shape_cast %195 : vector<1x1x32x32xf32> to vector<32x32xf32>
    %cst_227 = arith.constant dense<0.000000e+00> : vector<32x256xf32>
    %197 = tpu.matmul %196, %193, %cst_227 {dimension_numbers = #tpu.dot_dimension_numbers<[1], [0], [0], [1], [0, 0, 1, 1], [], []>} : vector<32x32xf32>, vector<32x256xf32>, vector<32x256xf32> -> vector<32x256xf32>
    %198 = arith.addf %194, %197 : vector<32x256xf32>
    %c0_228 = arith.constant 0 : index
    %c0_229 = arith.constant 0 : index
    %199 = vector.load %arg7[%c0_228, %c0_229] : memref<32x256xf32, #tpu.memory_space<vmem>>, vector<32x256xf32>
    tpu.vector_store %arg7[%c0_228, %c0_229], %198 {strides = array<i32>} : memref<32x256xf32, #tpu.memory_space<vmem>>, vector<32x256xf32>,
    %c0_230 = arith.constant 0 : index
    %c0_231 = arith.constant 0 : index
    %200 = vector.load %arg7[%c0_230, %c0_231] : memref<32x256xf32, #tpu.memory_space<vmem>>, vector<32x256xf32>
    %c1_232 = arith.constant 1 : index
    %c0_233 = arith.constant 0 : index
    %c0_234 = arith.constant 0 : index
    %201 = vector.load %arg3[%c1_232, %c0_233, %c0_234] : memref<3x32x1xf32, #tpu.memory_space<vmem>>, vector<1x32x1xf32>
    %202 = vector.shape_cast %201 : vector<1x32x1xf32> to vector<32x1xf32>
    %203 = vector.broadcast %202 : vector<32x1xf32> to vector<32x256xf32>
    %204 = arith.addf %200, %203 : vector<32x256xf32>
    %cst_235 = arith.constant 0.000000e+00 : f32
    %205 = vector.broadcast %cst_235 : f32 to vector<32x256xf32>
    %206 = arith.cmpf oge, %204, %205 : vector<32x256xf32>
    %cst_236 = arith.constant 0.00999999977 : f32
    %207 = vector.broadcast %cst_236 : f32 to vector<32x256xf32>
    %208 = arith.mulf %207, %204 : vector<32x256xf32>
    %209 = arith.select %206, %204, %208 : vector<32x256xi1>, vector<32x256xf32>
    %c0_237 = arith.constant 0 : index
    %c0_238 = arith.constant 0 : index
    %210 = vector.load %arg6[%c0_237, %c0_238] : memref<32x256xf32, #tpu.memory_space<vmem>>, vector<32x256xf32>
    tpu.vector_store %arg6[%c0_237, %c0_238], %209 {strides = array<i32>} : memref<32x256xf32, #tpu.memory_space<vmem>>, vector<32x256xf32>,
    %c0_239 = arith.constant 0 : index
    %c0_240 = arith.constant 0 : index
    %211 = vector.load %arg6[%c0_239, %c0_240] : memref<32x256xf32, #tpu.memory_space<vmem>>, vector<32x256xf32>
    %c2_241 = arith.constant 2 : index
    %c4_242 = arith.constant 4 : index
    %c0_243 = arith.constant 0 : index
    %c0_244 = arith.constant 0 : index
    %212 = vector.load %arg2[%c2_241, %c4_242, %c0_243, %c0_244] : memref<3x9x32x32xf32, #tpu.memory_space<vmem>>, vector<1x1x32x32xf32>
    %213 = vector.shape_cast %212 : vector<1x1x32x32xf32> to vector<32x32xf32>
    %cst_245 = arith.constant dense<0.000000e+00> : vector<32x256xf32>
    %214 = tpu.matmul %213, %211, %cst_245 {dimension_numbers = #tpu.dot_dimension_numbers<[1], [0], [0], [1], [0, 0, 1, 1], [], []>} : vector<32x32xf32>, vector<32x256xf32>, vector<32x256xf32> -> vector<32x256xf32>
    %c0_246 = arith.constant 0 : index
    %c0_247 = arith.constant 0 : index
    %215 = vector.load %arg7[%c0_246, %c0_247] : memref<32x256xf32, #tpu.memory_space<vmem>>, vector<32x256xf32>
    tpu.vector_store %arg7[%c0_246, %c0_247], %214 {strides = array<i32>} : memref<32x256xf32, #tpu.memory_space<vmem>>, vector<32x256xf32>,
    %c51_i32 = arith.constant 51 : i32
    %216 = tpu.dynamic_rotate %211 by %c51_i32 dim 1 : vector<32x256xf32>, i32 -> vector<32x256xf32>
    %c2_248 = arith.constant 2 : index
    %c0_249 = arith.constant 0 : index
    %c0_250 = arith.constant 0 : index
    %c0_251 = arith.constant 0 : index
    %217 = vector.load %arg4[%c2_248, %c0_249, %c0_250, %c0_251] : memref<3x9x1x256xf32, #tpu.memory_space<vmem>>, vector<1x1x1x256xf32>
    %218 = vector.shape_cast %217 : vector<1x1x1x256xf32> to vector<1x256xf32>
    %219 = vector.broadcast %218 : vector<1x256xf32> to vector<32x256xf32>
    %220 = arith.mulf %216, %219 : vector<32x256xf32>
    %c0_252 = arith.constant 0 : index
    %c0_253 = arith.constant 0 : index
    %221 = vector.load %arg7[%c0_252, %c0_253] : memref<32x256xf32, #tpu.memory_space<vmem>>, vector<32x256xf32>
    %c2_254 = arith.constant 2 : index
    %c0_255 = arith.constant 0 : index
    %c0_256 = arith.constant 0 : index
    %c0_257 = arith.constant 0 : index
    %222 = vector.load %arg2[%c2_254, %c0_255, %c0_256, %c0_257] : memref<3x9x32x32xf32, #tpu.memory_space<vmem>>, vector<1x1x32x32xf32>
    %223 = vector.shape_cast %222 : vector<1x1x32x32xf32> to vector<32x32xf32>
    %cst_258 = arith.constant dense<0.000000e+00> : vector<32x256xf32>
    %224 = tpu.matmul %223, %220, %cst_258 {dimension_numbers = #tpu.dot_dimension_numbers<[1], [0], [0], [1], [0, 0, 1, 1], [], []>} : vector<32x32xf32>, vector<32x256xf32>, vector<32x256xf32> -> vector<32x256xf32>
    %225 = arith.addf %221, %224 : vector<32x256xf32>
    %c0_259 = arith.constant 0 : index
    %c0_260 = arith.constant 0 : index
    %226 = vector.load %arg7[%c0_259, %c0_260] : memref<32x256xf32, #tpu.memory_space<vmem>>, vector<32x256xf32>
    tpu.vector_store %arg7[%c0_259, %c0_260], %225 {strides = array<i32>} : memref<32x256xf32, #tpu.memory_space<vmem>>, vector<32x256xf32>,
    %c48_i32 = arith.constant 48 : i32
    %227 = tpu.dynamic_rotate %211 by %c48_i32 dim 1 : vector<32x256xf32>, i32 -> vector<32x256xf32>
    %c2_261 = arith.constant 2 : index
    %c1_262 = arith.constant 1 : index
    %c0_263 = arith.constant 0 : index
    %c0_264 = arith.constant 0 : index
    %228 = vector.load %arg4[%c2_261, %c1_262, %c0_263, %c0_264] : memref<3x9x1x256xf32, #tpu.memory_space<vmem>>, vector<1x1x1x256xf32>
    %229 = vector.shape_cast %228 : vector<1x1x1x256xf32> to vector<1x256xf32>
    %230 = vector.broadcast %229 : vector<1x256xf32> to vector<32x256xf32>
    %231 = arith.mulf %227, %230 : vector<32x256xf32>
    %c0_265 = arith.constant 0 : index
    %c0_266 = arith.constant 0 : index
    %232 = vector.load %arg7[%c0_265, %c0_266] : memref<32x256xf32, #tpu.memory_space<vmem>>, vector<32x256xf32>
    %c2_267 = arith.constant 2 : index
    %c1_268 = arith.constant 1 : index
    %c0_269 = arith.constant 0 : index
    %c0_270 = arith.constant 0 : index
    %233 = vector.load %arg2[%c2_267, %c1_268, %c0_269, %c0_270] : memref<3x9x32x32xf32, #tpu.memory_space<vmem>>, vector<1x1x32x32xf32>
    %234 = vector.shape_cast %233 : vector<1x1x32x32xf32> to vector<32x32xf32>
    %cst_271 = arith.constant dense<0.000000e+00> : vector<32x256xf32>
    %235 = tpu.matmul %234, %231, %cst_271 {dimension_numbers = #tpu.dot_dimension_numbers<[1], [0], [0], [1], [0, 0, 1, 1], [], []>} : vector<32x32xf32>, vector<32x256xf32>, vector<32x256xf32> -> vector<32x256xf32>
    %236 = arith.addf %232, %235 : vector<32x256xf32>
    %c0_272 = arith.constant 0 : index
    %c0_273 = arith.constant 0 : index
    %237 = vector.load %arg7[%c0_272, %c0_273] : memref<32x256xf32, #tpu.memory_space<vmem>>, vector<32x256xf32>
    tpu.vector_store %arg7[%c0_272, %c0_273], %236 {strides = array<i32>} : memref<32x256xf32, #tpu.memory_space<vmem>>, vector<32x256xf32>,
    %c45_i32 = arith.constant 45 : i32
    %238 = tpu.dynamic_rotate %211 by %c45_i32 dim 1 : vector<32x256xf32>, i32 -> vector<32x256xf32>
    %c2_274 = arith.constant 2 : index
    %c2_275 = arith.constant 2 : index
    %c0_276 = arith.constant 0 : index
    %c0_277 = arith.constant 0 : index
    %239 = vector.load %arg4[%c2_274, %c2_275, %c0_276, %c0_277] : memref<3x9x1x256xf32, #tpu.memory_space<vmem>>, vector<1x1x1x256xf32>
    %240 = vector.shape_cast %239 : vector<1x1x1x256xf32> to vector<1x256xf32>
    %241 = vector.broadcast %240 : vector<1x256xf32> to vector<32x256xf32>
    %242 = arith.mulf %238, %241 : vector<32x256xf32>
    %c0_278 = arith.constant 0 : index
    %c0_279 = arith.constant 0 : index
    %243 = vector.load %arg7[%c0_278, %c0_279] : memref<32x256xf32, #tpu.memory_space<vmem>>, vector<32x256xf32>
    %c2_280 = arith.constant 2 : index
    %c2_281 = arith.constant 2 : index
    %c0_282 = arith.constant 0 : index
    %c0_283 = arith.constant 0 : index
    %244 = vector.load %arg2[%c2_280, %c2_281, %c0_282, %c0_283] : memref<3x9x32x32xf32, #tpu.memory_space<vmem>>, vector<1x1x32x32xf32>
    %245 = vector.shape_cast %244 : vector<1x1x32x32xf32> to vector<32x32xf32>
    %cst_284 = arith.constant dense<0.000000e+00> : vector<32x256xf32>
    %246 = tpu.matmul %245, %242, %cst_284 {dimension_numbers = #tpu.dot_dimension_numbers<[1], [0], [0], [1], [0, 0, 1, 1], [], []>} : vector<32x32xf32>, vector<32x256xf32>, vector<32x256xf32> -> vector<32x256xf32>
    %247 = arith.addf %243, %246 : vector<32x256xf32>
    %c0_285 = arith.constant 0 : index
    %c0_286 = arith.constant 0 : index
    %248 = vector.load %arg7[%c0_285, %c0_286] : memref<32x256xf32, #tpu.memory_space<vmem>>, vector<32x256xf32>
    tpu.vector_store %arg7[%c0_285, %c0_286], %247 {strides = array<i32>} : memref<32x256xf32, #tpu.memory_space<vmem>>, vector<32x256xf32>,
    %c3_i32 = arith.constant 3 : i32
    %249 = tpu.dynamic_rotate %211 by %c3_i32 dim 1 : vector<32x256xf32>, i32 -> vector<32x256xf32>
    %c2_287 = arith.constant 2 : index
    %c3_288 = arith.constant 3 : index
    %c0_289 = arith.constant 0 : index
    %c0_290 = arith.constant 0 : index
    %250 = vector.load %arg4[%c2_287, %c3_288, %c0_289, %c0_290] : memref<3x9x1x256xf32, #tpu.memory_space<vmem>>, vector<1x1x1x256xf32>
    %251 = vector.shape_cast %250 : vector<1x1x1x256xf32> to vector<1x256xf32>
    %252 = vector.broadcast %251 : vector<1x256xf32> to vector<32x256xf32>
    %253 = arith.mulf %249, %252 : vector<32x256xf32>
    %c0_291 = arith.constant 0 : index
    %c0_292 = arith.constant 0 : index
    %254 = vector.load %arg7[%c0_291, %c0_292] : memref<32x256xf32, #tpu.memory_space<vmem>>, vector<32x256xf32>
    %c2_293 = arith.constant 2 : index
    %c3_294 = arith.constant 3 : index
    %c0_295 = arith.constant 0 : index
    %c0_296 = arith.constant 0 : index
    %255 = vector.load %arg2[%c2_293, %c3_294, %c0_295, %c0_296] : memref<3x9x32x32xf32, #tpu.memory_space<vmem>>, vector<1x1x32x32xf32>
    %256 = vector.shape_cast %255 : vector<1x1x32x32xf32> to vector<32x32xf32>
    %cst_297 = arith.constant dense<0.000000e+00> : vector<32x256xf32>
    %257 = tpu.matmul %256, %253, %cst_297 {dimension_numbers = #tpu.dot_dimension_numbers<[1], [0], [0], [1], [0, 0, 1, 1], [], []>} : vector<32x32xf32>, vector<32x256xf32>, vector<32x256xf32> -> vector<32x256xf32>
    %258 = arith.addf %254, %257 : vector<32x256xf32>
    %c0_298 = arith.constant 0 : index
    %c0_299 = arith.constant 0 : index
    %259 = vector.load %arg7[%c0_298, %c0_299] : memref<32x256xf32, #tpu.memory_space<vmem>>, vector<32x256xf32>
    tpu.vector_store %arg7[%c0_298, %c0_299], %258 {strides = array<i32>} : memref<32x256xf32, #tpu.memory_space<vmem>>, vector<32x256xf32>,
    %c253_i32 = arith.constant 253 : i32
    %260 = tpu.dynamic_rotate %211 by %c253_i32 dim 1 : vector<32x256xf32>, i32 -> vector<32x256xf32>
    %c2_300 = arith.constant 2 : index
    %c5_301 = arith.constant 5 : index
    %c0_302 = arith.constant 0 : index
    %c0_303 = arith.constant 0 : index
    %261 = vector.load %arg4[%c2_300, %c5_301, %c0_302, %c0_303] : memref<3x9x1x256xf32, #tpu.memory_space<vmem>>, vector<1x1x1x256xf32>
    %262 = vector.shape_cast %261 : vector<1x1x1x256xf32> to vector<1x256xf32>
    %263 = vector.broadcast %262 : vector<1x256xf32> to vector<32x256xf32>
    %264 = arith.mulf %260, %263 : vector<32x256xf32>
    %c0_304 = arith.constant 0 : index
    %c0_305 = arith.constant 0 : index
    %265 = vector.load %arg7[%c0_304, %c0_305] : memref<32x256xf32, #tpu.memory_space<vmem>>, vector<32x256xf32>
    %c2_306 = arith.constant 2 : index
    %c5_307 = arith.constant 5 : index
    %c0_308 = arith.constant 0 : index
    %c0_309 = arith.constant 0 : index
    %266 = vector.load %arg2[%c2_306, %c5_307, %c0_308, %c0_309] : memref<3x9x32x32xf32, #tpu.memory_space<vmem>>, vector<1x1x32x32xf32>
    %267 = vector.shape_cast %266 : vector<1x1x32x32xf32> to vector<32x32xf32>
    %cst_310 = arith.constant dense<0.000000e+00> : vector<32x256xf32>
    %268 = tpu.matmul %267, %264, %cst_310 {dimension_numbers = #tpu.dot_dimension_numbers<[1], [0], [0], [1], [0, 0, 1, 1], [], []>} : vector<32x32xf32>, vector<32x256xf32>, vector<32x256xf32> -> vector<32x256xf32>
    %269 = arith.addf %265, %268 : vector<32x256xf32>
    %c0_311 = arith.constant 0 : index
    %c0_312 = arith.constant 0 : index
    %270 = vector.load %arg7[%c0_311, %c0_312] : memref<32x256xf32, #tpu.memory_space<vmem>>, vector<32x256xf32>
    tpu.vector_store %arg7[%c0_311, %c0_312], %269 {strides = array<i32>} : memref<32x256xf32, #tpu.memory_space<vmem>>, vector<32x256xf32>,
    %c211_i32 = arith.constant 211 : i32
    %271 = tpu.dynamic_rotate %211 by %c211_i32 dim 1 : vector<32x256xf32>, i32 -> vector<32x256xf32>
    %c2_313 = arith.constant 2 : index
    %c6_314 = arith.constant 6 : index
    %c0_315 = arith.constant 0 : index
    %c0_316 = arith.constant 0 : index
    %272 = vector.load %arg4[%c2_313, %c6_314, %c0_315, %c0_316] : memref<3x9x1x256xf32, #tpu.memory_space<vmem>>, vector<1x1x1x256xf32>
    %273 = vector.shape_cast %272 : vector<1x1x1x256xf32> to vector<1x256xf32>
    %274 = vector.broadcast %273 : vector<1x256xf32> to vector<32x256xf32>
    %275 = arith.mulf %271, %274 : vector<32x256xf32>
    %c0_317 = arith.constant 0 : index
    %c0_318 = arith.constant 0 : index
    %276 = vector.load %arg7[%c0_317, %c0_318] : memref<32x256xf32, #tpu.memory_space<vmem>>, vector<32x256xf32>
    %c2_319 = arith.constant 2 : index
    %c6_320 = arith.constant 6 : index
    %c0_321 = arith.constant 0 : index
    %c0_322 = arith.constant 0 : index
    %277 = vector.load %arg2[%c2_319, %c6_320, %c0_321, %c0_322] : memref<3x9x32x32xf32, #tpu.memory_space<vmem>>, vector<1x1x32x32xf32>
    %278 = vector.shape_cast %277 : vector<1x1x32x32xf32> to vector<32x32xf32>
    %cst_323 = arith.constant dense<0.000000e+00> : vector<32x256xf32>
    %279 = tpu.matmul %278, %275, %cst_323 {dimension_numbers = #tpu.dot_dimension_numbers<[1], [0], [0], [1], [0, 0, 1, 1], [], []>} : vector<32x32xf32>, vector<32x256xf32>, vector<32x256xf32> -> vector<32x256xf32>
    %280 = arith.addf %276, %279 : vector<32x256xf32>
    %c0_324 = arith.constant 0 : index
    %c0_325 = arith.constant 0 : index
    %281 = vector.load %arg7[%c0_324, %c0_325] : memref<32x256xf32, #tpu.memory_space<vmem>>, vector<32x256xf32>
    tpu.vector_store %arg7[%c0_324, %c0_325], %280 {strides = array<i32>} : memref<32x256xf32, #tpu.memory_space<vmem>>, vector<32x256xf32>,
    %c208_i32 = arith.constant 208 : i32
    %282 = tpu.dynamic_rotate %211 by %c208_i32 dim 1 : vector<32x256xf32>, i32 -> vector<32x256xf32>
    %c2_326 = arith.constant 2 : index
    %c7_327 = arith.constant 7 : index
    %c0_328 = arith.constant 0 : index
    %c0_329 = arith.constant 0 : index
    %283 = vector.load %arg4[%c2_326, %c7_327, %c0_328, %c0_329] : memref<3x9x1x256xf32, #tpu.memory_space<vmem>>, vector<1x1x1x256xf32>
    %284 = vector.shape_cast %283 : vector<1x1x1x256xf32> to vector<1x256xf32>
    %285 = vector.broadcast %284 : vector<1x256xf32> to vector<32x256xf32>
    %286 = arith.mulf %282, %285 : vector<32x256xf32>
    %c0_330 = arith.constant 0 : index
    %c0_331 = arith.constant 0 : index
    %287 = vector.load %arg7[%c0_330, %c0_331] : memref<32x256xf32, #tpu.memory_space<vmem>>, vector<32x256xf32>
    %c2_332 = arith.constant 2 : index
    %c7_333 = arith.constant 7 : index
    %c0_334 = arith.constant 0 : index
    %c0_335 = arith.constant 0 : index
    %288 = vector.load %arg2[%c2_332, %c7_333, %c0_334, %c0_335] : memref<3x9x32x32xf32, #tpu.memory_space<vmem>>, vector<1x1x32x32xf32>
    %289 = vector.shape_cast %288 : vector<1x1x32x32xf32> to vector<32x32xf32>
    %cst_336 = arith.constant dense<0.000000e+00> : vector<32x256xf32>
    %290 = tpu.matmul %289, %286, %cst_336 {dimension_numbers = #tpu.dot_dimension_numbers<[1], [0], [0], [1], [0, 0, 1, 1], [], []>} : vector<32x32xf32>, vector<32x256xf32>, vector<32x256xf32> -> vector<32x256xf32>
    %291 = arith.addf %287, %290 : vector<32x256xf32>
    %c0_337 = arith.constant 0 : index
    %c0_338 = arith.constant 0 : index
    %292 = vector.load %arg7[%c0_337, %c0_338] : memref<32x256xf32, #tpu.memory_space<vmem>>, vector<32x256xf32>
    tpu.vector_store %arg7[%c0_337, %c0_338], %291 {strides = array<i32>} : memref<32x256xf32, #tpu.memory_space<vmem>>, vector<32x256xf32>,
    %c205_i32 = arith.constant 205 : i32
    %293 = tpu.dynamic_rotate %211 by %c205_i32 dim 1 : vector<32x256xf32>, i32 -> vector<32x256xf32>
    %c2_339 = arith.constant 2 : index
    %c8_340 = arith.constant 8 : index
    %c0_341 = arith.constant 0 : index
    %c0_342 = arith.constant 0 : index
    %294 = vector.load %arg4[%c2_339, %c8_340, %c0_341, %c0_342] : memref<3x9x1x256xf32, #tpu.memory_space<vmem>>, vector<1x1x1x256xf32>
    %295 = vector.shape_cast %294 : vector<1x1x1x256xf32> to vector<1x256xf32>
    %296 = vector.broadcast %295 : vector<1x256xf32> to vector<32x256xf32>
    %297 = arith.mulf %293, %296 : vector<32x256xf32>
    %c0_343 = arith.constant 0 : index
    %c0_344 = arith.constant 0 : index
    %298 = vector.load %arg7[%c0_343, %c0_344] : memref<32x256xf32, #tpu.memory_space<vmem>>, vector<32x256xf32>
    %c2_345 = arith.constant 2 : index
    %c8_346 = arith.constant 8 : index
    %c0_347 = arith.constant 0 : index
    %c0_348 = arith.constant 0 : index
    %299 = vector.load %arg2[%c2_345, %c8_346, %c0_347, %c0_348] : memref<3x9x32x32xf32, #tpu.memory_space<vmem>>, vector<1x1x32x32xf32>
    %300 = vector.shape_cast %299 : vector<1x1x32x32xf32> to vector<32x32xf32>
    %cst_349 = arith.constant dense<0.000000e+00> : vector<32x256xf32>
    %301 = tpu.matmul %300, %297, %cst_349 {dimension_numbers = #tpu.dot_dimension_numbers<[1], [0], [0], [1], [0, 0, 1, 1], [], []>} : vector<32x32xf32>, vector<32x256xf32>, vector<32x256xf32> -> vector<32x256xf32>
    %302 = arith.addf %298, %301 : vector<32x256xf32>
    %c0_350 = arith.constant 0 : index
    %c0_351 = arith.constant 0 : index
    %303 = vector.load %arg7[%c0_350, %c0_351] : memref<32x256xf32, #tpu.memory_space<vmem>>, vector<32x256xf32>
    tpu.vector_store %arg7[%c0_350, %c0_351], %302 {strides = array<i32>} : memref<32x256xf32, #tpu.memory_space<vmem>>, vector<32x256xf32>,
    %c0_352 = arith.constant 0 : index
    %c0_353 = arith.constant 0 : index
    %304 = vector.load %arg7[%c0_352, %c0_353] : memref<32x256xf32, #tpu.memory_space<vmem>>, vector<32x256xf32>
    %c2_354 = arith.constant 2 : index
    %c0_355 = arith.constant 0 : index
    %c0_356 = arith.constant 0 : index
    %305 = vector.load %arg3[%c2_354, %c0_355, %c0_356] : memref<3x32x1xf32, #tpu.memory_space<vmem>>, vector<1x32x1xf32>
    %306 = vector.shape_cast %305 : vector<1x32x1xf32> to vector<32x1xf32>
    %307 = vector.broadcast %306 : vector<32x1xf32> to vector<32x256xf32>
    %308 = arith.addf %304, %307 : vector<32x256xf32>
    %cst_357 = arith.constant 0.000000e+00 : f32
    %309 = vector.broadcast %cst_357 : f32 to vector<32x256xf32>
    %310 = arith.cmpf oge, %308, %309 : vector<32x256xf32>
    %cst_358 = arith.constant 0.00999999977 : f32
    %311 = vector.broadcast %cst_358 : f32 to vector<32x256xf32>
    %312 = arith.mulf %311, %308 : vector<32x256xf32>
    %313 = arith.select %310, %308, %312 : vector<32x256xi1>, vector<32x256xf32>
    %c0_359 = arith.constant 0 : index
    %c0_360 = arith.constant 0 : index
    %c0_361 = arith.constant 0 : index
    %314 = vector.load %arg5[%c0_359, %c0_360, %c0_361] : memref<1x32x256xf32, #tpu.memory_space<vmem>>, vector<1x32x256xf32>
    %315 = vector.shape_cast %314 : vector<1x32x256xf32> to vector<32x256xf32>
    %316 = vector.shape_cast %313 : vector<32x256xf32> to vector<1x32x256xf32>
    tpu.vector_store %arg5[%c0_359, %c0_360, %c0_361], %316 {strides = array<i32>} : memref<1x32x256xf32, #tpu.memory_space<vmem>>, vector<1x32x256xf32>,
    return
  }
  func.func @transform_0(%arg0: i32) -> (i32, i32, i32) {
    %c0_i32 = arith.constant 0 : i32
    %c0_i32_0 = arith.constant 0 : i32
    %c0_i32_1 = arith.constant 0 : i32
    return %arg0, %c0_i32, %c0_i32_0 : i32, i32, i32
  }
  func.func @transform_1(%arg0: i32) -> (i32, i32, i32, i32) {
    %c0_i32 = arith.constant 0 : i32
    %c0_i32_0 = arith.constant 0 : i32
    %c0_i32_1 = arith.constant 0 : i32
    %c0_i32_2 = arith.constant 0 : i32
    %c0_i32_3 = arith.constant 0 : i32
    return %c0_i32, %c0_i32_0, %c0_i32_1, %c0_i32_2 : i32, i32, i32, i32
  }
  func.func @transform_2(%arg0: i32) -> (i32, i32, i32) {
    %c0_i32 = arith.constant 0 : i32
    %c0_i32_0 = arith.constant 0 : i32
    %c0_i32_1 = arith.constant 0 : i32
    %c0_i32_2 = arith.constant 0 : i32
    return %c0_i32, %c0_i32_0, %c0_i32_1 : i32, i32, i32
  }
  func.func @transform_3(%arg0: i32) -> (i32, i32, i32, i32) {
    %c0_i32 = arith.constant 0 : i32
    %c0_i32_0 = arith.constant 0 : i32
    %c0_i32_1 = arith.constant 0 : i32
    %c0_i32_2 = arith.constant 0 : i32
    %c0_i32_3 = arith.constant 0 : i32
    return %c0_i32, %c0_i32_0, %c0_i32_1, %c0_i32_2 : i32, i32, i32, i32
  }
  func.func @transform_4(%arg0: i32) -> (i32, i32, i32) {
    %c0_i32 = arith.constant 0 : i32
    %c0_i32_0 = arith.constant 0 : i32
    %c0_i32_1 = arith.constant 0 : i32
    return %arg0, %c0_i32, %c0_i32_0 : i32, i32, i32
  }
}

</mosaic_0001>

<llo_original>
// kernel: dilated_conv_block.1
$region0: #{dilated_conv_block.1}
  #allocation0 [shape = 'u32[]', space=smem, size = 0x4, offset = 0x4, fixed_abs, tag = 'smem constant byte address 0x4 - core index']
  #allocation1 [shape = 'u32[72,128]{1,0:T(1,128)}', space=vmem, size = 0x9000, scoped, tag = 'internal scratch']
  #allocation2 [shape = 'f32[32,256]{1,0:T(8,128)}', space=vmem, size = 0x8000, scoped, tag = 'scratch operand']
  #allocation3 [shape = 'f32[32,256]{1,0:T(8,128)}', space=vmem, size = 0x8000, scoped, tag = 'scratch operand']
  %s0 = inlined_call_operand.vmem [shape: f32[2,32,256], index: 0, kind: input, shape index: {}]
  %s1 = inlined_call_operand.hbm [shape: f32[3,9,32,32], index: 1, kind: input, shape index: {}]
  %s2 = inlined_call_operand.vmem [shape: f32[3,32,1], index: 2, kind: input, shape index: {}]
  %s3 = inlined_call_operand.vmem [shape: f32[3,9,1,256], index: 3, kind: input, shape index: {}]
  %s4 = inlined_call_operand.vmem [shape: f32[2,32,256], index: 4, kind: output, shape index: {}]
  %s5 = sld [smem:[#allocation0]]
  $region53: #{dilated_conv_block.1} parent=0
    _
  %s7 = ssub.s32 1, %s5
  %s8 = scalar_select 0, %s7, %s5
  $region1: #{dilated_conv_block.1} parent=0
    #allocation4 [shape = 'u8[442368]{0}', space=vmem, size = 0x6c000, scoped, tag = 'input window, operand 1, single buffered']
    #allocation5 [shape = 's32[2]{0}', space=sflag, size = 0x8, scoped, tag = 'scoped memory for dilated_conv_block.1']
    %9 = vsyncpa [#allocation5], 0
    loop: start=0, step=1, limit=4
    $region2: #{dilated_conv_block.1} parent=1 // loop_pre_header
      _
    $region3: #{dilated_conv_block.1} parent=1 // loop_header
      %s11 = sphi 0, %s15
      %p12 = scmp.ge.s32.totalorder %s11, 4
      %s21 = sphi 0, %s23
      %s24 = sphi 0, %s21
      %s25 = sphi 0, %s24
      %s41 = sphi 0, %s25
      %s45 = sphi 0, %s45
      %s47 = sphi 0, %s45
      %s48 = sphi 0, %s47
      %s62 = sphi 0, %s48
      %s66 = sphi 0, %s66
      %s68 = sphi 0, %s66
      %s69 = sphi 0, %s68
      %s83 = sphi 0, %s69
      %s87 = sphi 0, %s87
      %s89 = sphi 0, %s87
      %s90 = sphi 0, %s89
      %s104 = sphi 0, %s90
      %s110 = sphi 0, %s112
      %s113 = sphi 0, %s110
      %s114 = sphi 0, %s113
      %s130 = sphi 0, %s114
    $region4: #{dilated_conv_block.1} parent=1 // loop_header_branch
      %14 = sbr.rel (%p12) target = $region8
    $region5: #{dilated_conv_block.1} parent=1 // loop_body
      %s16 = ssub.s32 %s11, 1
      %s17 = ssub.s32 %s11, 2
      %s18 = sadd.s32 %s11, 1
      %s19 = ssub.s32 %s11, %s18
      %p20 = scmp.eq.s32.totalorder %s19, 0
      %s22 = sadd.s32 %s21, 1
      %s23 = scalar_select %p20, %s21, %s22
      %p26 = pneg %p20
      %p27 = scmp.eq.s32.totalorder %s11, 1
      %p28 = por %p26, %p27
      %p29 = scmp.ne.s32.totalorder %s21, %s24
      %p30 = scmp.eq.s32.totalorder %s11, 0
      %p31 = por %p29, %p30
      %p32 = scmp.ne.s32.totalorder %s21, %s24
      %p33 = scmp.eq.s32.totalorder %s16, 1
      %p34 = por %p32, %p33
      %p35 = scmp.ne.s32.totalorder %s24, %s25
      %p36 = scmp.eq.s32.totalorder %s16, 0
      %p37 = por %p35, %p36
      %p38 = scmp.ne.s32.totalorder %s24, %s25
      %p39 = scmp.eq.s32.totalorder %s17, 1
      %p40 = por %p38, %p39
      %p42 = scmp.ne.s32.totalorder %s25, %s41
      %p43 = scmp.eq.s32.totalorder %s17, 0
      %p44 = por %p42, %p43
      %s46 = sadd.s32 %s45, 1
      %p49 = scmp.eq.s32.totalorder %s11, 1
      %p50 = scmp.ne.s32.totalorder %s45, %s47
      %p51 = scmp.eq.s32.totalorder %s11, 0
      %p52 = por %p50, %p51
      %p53 = scmp.ne.s32.totalorder %s45, %s47
      %p54 = scmp.eq.s32.totalorder %s16, 1
      %p55 = por %p53, %p54
      %p56 = scmp.ne.s32.totalorder %s47, %s48
      %p57 = scmp.eq.s32.totalorder %s16, 0
      %p58 = por %p56, %p57
      %p59 = scmp.ne.s32.totalorder %s47, %s48
      %p60 = scmp.eq.s32.totalorder %s17, 1
      %p61 = por %p59, %p60
      %p63 = scmp.ne.s32.totalorder %s48, %s62
      %p64 = scmp.eq.s32.totalorder %s17, 0
      %p65 = por %p63, %p64
      %s67 = sadd.s32 %s66, 1
      %p70 = scmp.eq.s32.totalorder %s11, 1
      %p71 = scmp.ne.s32.totalorder %s66, %s68
      %p72 = scmp.eq.s32.totalorder %s11, 0
      %p73 = por %p71, %p72
      %p74 = scmp.ne.s32.totalorder %s66, %s68
      %p75 = scmp.eq.s32.totalorder %s16, 1
      %p76 = por %p74, %p75
      %p77 = scmp.ne.s32.totalorder %s68, %s69
      %p78 = scmp.eq.s32.totalorder %s16, 0
      %p79 = por %p77, %p78
      %p80 = scmp.ne.s32.totalorder %s68, %s69
      %p81 = scmp.eq.s32.totalorder %s17, 1
      %p82 = por %p80, %p81
      %p84 = scmp.ne.s32.totalorder %s69, %s83
      %p85 = scmp.eq.s32.totalorder %s17, 0
      %p86 = por %p84, %p85
      %s88 = sadd.s32 %s87, 1
      %p91 = scmp.eq.s32.totalorder %s11, 1
      %p92 = scmp.ne.s32.totalorder %s87, %s89
      %p93 = scmp.eq.s32.totalorder %s11, 0
      %p94 = por %p92, %p93
      %p95 = scmp.ne.s32.totalorder %s87, %s89
      %p96 = scmp.eq.s32.totalorder %s16, 1
      %p97 = por %p95, %p96
      %p98 = scmp.ne.s32.totalorder %s89, %s90
      %p99 = scmp.eq.s32.totalorder %s16, 0
      %p100 = por %p98, %p99
      %p101 = scmp.ne.s32.totalorder %s89, %s90
      %p102 = scmp.eq.s32.totalorder %s17, 1
      %p103 = por %p101, %p102
      %p105 = scmp.ne.s32.totalorder %s90, %s104
      %p106 = scmp.eq.s32.totalorder %s17, 0
      %p107 = por %p105, %p106
      %s108 = ssub.s32 %s11, %s18
      %p109 = scmp.eq.s32.totalorder %s108, 0
      %s111 = sadd.s32 %s110, 1
      %s112 = scalar_select %p109, %s110, %s111
      %p115 = pneg %p109
      %p116 = scmp.eq.s32.totalorder %s11, 1
      %p117 = por %p115, %p116
      %p118 = scmp.ne.s32.totalorder %s110, %s113
      %p119 = scmp.eq.s32.totalorder %s11, 0
      %p120 = por %p118, %p119
      %p121 = scmp.ne.s32.totalorder %s110, %s113
      %p122 = scmp.eq.s32.totalorder %s16, 1
      %p123 = por %p121, %p122
      %p124 = scmp.ne.s32.totalorder %s113, %s114
      %p125 = scmp.eq.s32.totalorder %s16, 0
      %p126 = por %p124, %p125
      %p127 = scmp.ne.s32.totalorder %s113, %s114
      %p128 = scmp.eq.s32.totalorder %s17, 1
      %p129 = por %p127, %p128
      %p131 = scmp.ne.s32.totalorder %s114, %s130
      %p132 = scmp.eq.s32.totalorder %s17, 0
      %p133 = por %p131, %p132
      %p134 = scmp.le.s32.totalorder 1, %s11
      %p135 = scmp.lt.s32.totalorder %s11, 3
      %p136 = pnand %p134, %p135
      %p137 = pneg %p136
      // Predicated region
      $region9: #{dilated_conv_block.1} parent=5 // pred_check
        _
      $region10: #{dilated_conv_block.1} parent=5 // pred_check_branch
        %139 = sbr.rel (%p136) target = $region12
      $region11: #{dilated_conv_block.1} parent=5 // pred_region
        %s140 = ssub.s32 %s11, 1
        // Predicated region
        $region13: #{dilated_conv_block.1} parent=11 // pred_check
          %p141 = pneg %p58
        $region14: #{dilated_conv_block.1} parent=11 // pred_check_branch
          %143 = sbr.rel (%p141) target = $region16
        $region15: #{dilated_conv_block.1} parent=11 // pred_region
          %145 = vsyncadd [#allocation5], 0
          %s146 = sshll.u32 %s1, 4
          %s147 = int_to_ptr.hbm [resolvable:$true] %s146
          %s148 = sshll.u32 [#allocation4], 4
          %s149 = int_to_ptr.vmem [resolvable:$true] %s148
          %154 = dma.hbm_to_vmem [thread:$0]  %s147, 13824, %s149, [#allocation5], 128, 128, 8
        $region16: #{dilated_conv_block.1} parent=11 // pred_fallthru
          _
        // Predicated region
        $region17: #{dilated_conv_block.1} parent=11 // pred_check
          %p155 = pneg %p79
        $region18: #{dilated_conv_block.1} parent=11 // pred_check_branch
          %157 = sbr.rel (%p155) target = $region20
        $region19: #{dilated_conv_block.1} parent=11 // pred_region
          _
        $region20: #{dilated_conv_block.1} parent=11 // pred_fallthru
          _
        // Predicated region
        $region21: #{dilated_conv_block.1} parent=11 // pred_check
          %p158 = pneg %p100
        $region22: #{dilated_conv_block.1} parent=11 // pred_check_branch
          %160 = sbr.rel (%p158) target = $region24
        $region23: #{dilated_conv_block.1} parent=11 // pred_region
          _
        $region24: #{dilated_conv_block.1} parent=11 // pred_fallthru
          _
      $region12: #{dilated_conv_block.1} parent=5 // pred_fallthru
        _
      %p161 = scmp.lt.s32.totalorder %s11, 2
      // Predicated region
      $region25: #{dilated_conv_block.1} parent=5 // pred_check
        %p162 = pneg %p161
      $region26: #{dilated_conv_block.1} parent=5 // pred_check_branch
        %164 = sbr.rel (%p162) target = $region28
      $region27: #{dilated_conv_block.1} parent=5 // pred_region
        // Predicated region
        $region29: #{dilated_conv_block.1} parent=27 // pred_check
          %p165 = pneg %p31
        $region30: #{dilated_conv_block.1} parent=27 // pred_check_branch
          %167 = sbr.rel (%p165) target = $region32
        $region31: #{dilated_conv_block.1} parent=27 // pred_region
          %p168 = scmp.lt.s32.totalorder %s11, 1
          %s169 = scalar_select %p168, %s11, 1
          %s170 = smul.addr %s169, 8
          %s171 = smul.addr %s170, 8
          %s172 = scalar_lea.vmem %s0, %s171
        $region32: #{dilated_conv_block.1} parent=27 // pred_fallthru
          _
      $region28: #{dilated_conv_block.1} parent=5 // pred_fallthru
        _
      %p173 = scmp.le.s32.totalorder 1, %s11
      %p174 = scmp.lt.s32.totalorder %s11, 3
      %p175 = pnand %p173, %p174
      %p176 = pneg %p175
      // Predicated region
      $region33: #{dilated_conv_block.1} parent=5 // pred_check
        _
      $region34: #{dilated_conv_block.1} parent=5 // pred_check_branch
        %178 = sbr.rel (%p175) target = $region36
      $region35: #{dilated_conv_block.1} parent=5 // pred_region
        %s179 = ssub.s32 %s11, 1
        // Predicated region
        $region37: #{dilated_conv_block.1} parent=35 // pred_check
          %p180 = pneg %p58
        $region38: #{dilated_conv_block.1} parent=35 // pred_check_branch
          %182 = sbr.rel (%p180) target = $region40
        $region39: #{dilated_conv_block.1} parent=35 // pred_region
          %184 = dma.done [#allocation5], 13824
        $region40: #{dilated_conv_block.1} parent=35 // pred_fallthru
          _
        %p185 = scmp.lt.s32.totalorder %s16, 1
        %s186 = scalar_select %p185, %s16, 1
        %s187 = smul.addr %s186, 8
        %s188 = smul.addr %s187, 8
        %s189 = scalar_lea.vmem %s0, %s188
        %p190 = pneg %p37
        %p191 = pneg %p34
        %p192 = pneg %p58
        %p193 = pneg %p55
        %p194 = pneg %p79
        %p195 = pneg %p76
        %p196 = pneg %p100
        %p197 = pneg %p97
        %p198 = pneg %p126
        %p199 = pneg %p123
        %p200 = scmp.lt.s32.totalorder %s16, 1
        %s201 = scalar_select %p200, %s16, 1
        %s202 = smul.addr %s201, 8
        %s203 = smul.addr %s202, 8
        %s204 = scalar_lea.vmem %s4, %s203
        %p205 = scmp.lt.s32.totalorder %s16, 1
        %s206 = scalar_select %p205, %s16, 1
        %s207 = smul.addr %s206, 8
        %s208 = smul.addr %s207, 8
        %s209 = scalar_lea.vmem %s0, %s208
        %p210 = scmp.lt.s32.totalorder %s16, 1
        %s211 = scalar_select %p210, %s16, 1
        %s212 = smul.addr %s211, 8
        %s213 = smul.addr %s212, 8
        %s214 = scalar_lea.vmem %s4, %s213
        %v215 = vld [vmem:[%s209] sm:$0xff]
        %v216 = vld [vmem:[%s209 + $0x8] sm:$0xff]
        %v217 = vld [vmem:[%s209 + $0x10] sm:$0xff]
        %v218 = vld [vmem:[%s209 + $0x18] sm:$0xff]
        %v219 = vld [vmem:[%s209 + $0x20] sm:$0xff]
        %v220 = vld [vmem:[%s209 + $0x28] sm:$0xff]
        %v221 = vld [vmem:[%s209 + $0x30] sm:$0xff]
        %v222 = vld [vmem:[%s209 + $0x38] sm:$0xff]
        %223 = vst [vmem:[#allocation2] sm:$0xff] %v215
        %224 = vst [vmem:[#allocation2 + $0x8] sm:$0xff] %v216
        %225 = vst [vmem:[#allocation2 + $0x10] sm:$0xff] %v217
        %226 = vst [vmem:[#allocation2 + $0x18] sm:$0xff] %v218
        %227 = vst [vmem:[#allocation2 + $0x20] sm:$0xff] %v219
        %228 = vst [vmem:[#allocation2 + $0x28] sm:$0xff] %v220
        %229 = vst [vmem:[#allocation2 + $0x30] sm:$0xff] %v221
        %230 = vst [vmem:[#allocation2 + $0x38] sm:$0xff] %v222
        %v231 = vld [vmem:[#allocation2] sm:$0xff]
        %v232 = vld [vmem:[#allocation2 + $0x8] sm:$0xff]
        %v233 = vld [vmem:[#allocation2 + $0x10] sm:$0xff]
        %v234 = vld [vmem:[#allocation2 + $0x18] sm:$0xff]
        %v235 = vld [vmem:[#allocation2 + $0x20] sm:$0xff]
        %v236 = vld [vmem:[#allocation2 + $0x28] sm:$0xff]
        %v237 = vld [vmem:[#allocation2 + $0x30] sm:$0xff]
        %v238 = vld [vmem:[#allocation2 + $0x38] sm:$0xff]
        %s239 = scalar_lea.vmem [#allocation4], 128
        %v240 = vld [vmem:[%s239] sm:$0xff]
        %v241 = vld [vmem:[%s239 + $0x8] sm:$0xff]
        %v242 = vld [vmem:[%s239 + $0x10] sm:$0xff]
        %v243 = vld [vmem:[%s239 + $0x18] sm:$0xff]
        %vm244 = vcmask 261120
        %v246 = vsel %vm244, %v240, 0
        %v249 = vsel %vm244, %v241, 0
        %v252 = vsel %vm244, %v242, 0
        %v255 = vsel %vm244, %v243, 0
        %257 = vmatpush.msra.mxu0 0.0
        %258 = vmatpush.msra.mxu0 0.0
        %259 = vmatpush.msra.mxu0 0.0
        %260 = vmatpush.msra.mxu0 0.0
        %261 = vmatpush.msra.mxu0 0.0
        %262 = vmatpush.msra.mxu0 0.0
        %263 = vmatpush.msra.mxu0 0.0
        %264 = vmatpush.msra.mxu0 0.0
        %265 = vmatpush.msra.mxu0 0.0
        %266 = vmatpush.msra.mxu0 0.0
        %267 = vmatpush.msra.mxu0 0.0
        %268 = vmatpush.msra.mxu0 0.0
        %269 = vmatpush.msra.mxu0 %v237
        %270 = vmatpush.msra.mxu0 %v235
        %271 = vmatpush.msra.mxu0 %v233
        %272 = vmatpush.msra.mxu0 %v231
        %273 = vmatmul.f32.gmra.mxu0 %v246
        %v274 = vpop.f32.mrf.mxu0
        %v275 = vadd.f32 0.0, %v274
        %276 = vmatmul.f32.gmra.mxu0 %v249
        %v277 = vpop.f32.mrf.mxu0
        %v278 = vadd.f32 0.0, %v277
        %279 = vmatmul.f32.gmra.mxu0 %v252
        %v280 = vpop.f32.mrf.mxu0
        %v281 = vadd.f32 0.0, %v280
        %282 = vmatmul.f32.gmra.mxu0 %v255
        %v283 = vpop.f32.mrf.mxu0
        %v284 = vadd.f32 0.0, %v283
        %285 = vdwg.mxu0
        %286 = vmatpush.msra.mxu0 0.0
        %287 = vmatpush.msra.mxu0 0.0
        %288 = vmatpush.msra.mxu0 0.0
        %289 = vmatpush.msra.mxu0 0.0
        %290 = vmatpush.msra.mxu0 0.0
        %291 = vmatpush.msra.mxu0 0.0
        %292 = vmatpush.msra.mxu0 0.0
        %293 = vmatpush.msra.mxu0 0.0
        %294 = vmatpush.msra.mxu0 0.0
        %295 = vmatpush.msra.mxu0 0.0
        %296 = vmatpush.msra.mxu0 0.0
        %297 = vmatpush.msra.mxu0 0.0
        %298 = vmatpush.msra.mxu0 %v238
        %299 = vmatpush.msra.mxu0 %v236
        %300 = vmatpush.msra.mxu0 %v234
        %301 = vmatpush.msra.mxu0 %v232
        %302 = vmatmul.f32.gmra.mxu0 %v246
        %v303 = vpop.f32.mrf.mxu0
        %v304 = vadd.f32 0.0, %v303
        %305 = vmatmul.f32.gmra.mxu0 %v249
        %v306 = vpop.f32.mrf.mxu0
        %v307 = vadd.f32 0.0, %v306
        %308 = vmatmul.f32.gmra.mxu0 %v252
        %v309 = vpop.f32.mrf.mxu0
        %v310 = vadd.f32 0.0, %v309
        %311 = vmatmul.f32.gmra.mxu0 %v255
        %v312 = vpop.f32.mrf.mxu0
        %v313 = vadd.f32 0.0, %v312
        %314 = vdwg.mxu0
        %315 = vst [vmem:[#allocation3] sm:$0xff] %v275
        %316 = vst [vmem:[#allocation3 + $0x8] sm:$0xff] %v304
        %317 = vst [vmem:[#allocation3 + $0x10] sm:$0xff] %v278
        %318 = vst [vmem:[#allocation3 + $0x18] sm:$0xff] %v307
        %319 = vst [vmem:[#allocation3 + $0x20] sm:$0xff] %v281
        %320 = vst [vmem:[#allocation3 + $0x28] sm:$0xff] %v310
        %321 = vst [vmem:[#allocation3 + $0x30] sm:$0xff] %v284
        %322 = vst [vmem:[#allocation3 + $0x38] sm:$0xff] %v313
        %323 = vrot.lane.b32.xlu0 %v231, 17
        %v324 = vpop.permute.xlu0 %323
        %325 = vrot.lane.b32.xlu0 %v233, 17
        %v326 = vpop.permute.xlu0 %325
        %327 = vrot.lane.b32.xlu0 %v235, 17
        %v328 = vpop.permute.xlu0 %327
        %329 = vrot.lane.b32.xlu0 %v237, 17
        %v330 = vpop.permute.xlu0 %329
        %331 = vrot.lane.b32.xlu0 %v232, 17
        %v332 = vpop.permute.xlu0 %331
        %333 = vrot.lane.b32.xlu0 %v234, 17
        %v334 = vpop.permute.xlu0 %333
        %335 = vrot.lane.b32.xlu0 %v236, 17
        %v336 = vpop.permute.xlu0 %335
        %337 = vrot.lane.b32.xlu0 %v238, 17
        %v338 = vpop.permute.xlu0 %337
        %v339 = vlaneseq
        %v340 = vand.u32 %v339, 127
        %vm341 = vcmp.lt.s32.totalorder %v340, 17
        %v342 = vsel %vm341, %v324, %v332
        %v343 = vsel %vm341, %v326, %v334
        %v344 = vsel %vm341, %v328, %v336
        %v345 = vsel %vm341, %v330, %v338
        %v346 = vsel %vm341, %v332, %v324
        %v347 = vsel %vm341, %v334, %v326
        %v348 = vsel %vm341, %v336, %v328
        %v349 = vsel %vm341, %v338, %v330
        %v350 = vld [vmem:[%s3] sm:$0x3]
        %v352 = vperm.slane %v350, 0
        %v353 = vperm.slane %v350, 1
        %v356 = vmul.f32 %v346, %v352
        %v357 = vmul.f32 %v342, %v353
        %v358 = vmul.f32 %v347, %v352
        %v359 = vmul.f32 %v343, %v353
        %v360 = vmul.f32 %v348, %v352
        %v361 = vmul.f32 %v344, %v353
        %v362 = vmul.f32 %v349, %v352
        %v363 = vmul.f32 %v345, %v353
        %v364 = vld [vmem:[#allocation3] sm:$0xff]
        %v365 = vld [vmem:[#allocation3 + $0x8] sm:$0xff]
        %v366 = vld [vmem:[#allocation3 + $0x10] sm:$0xff]
        %v367 = vld [vmem:[#allocation3 + $0x18] sm:$0xff]
        %v368 = vld [vmem:[#allocation3 + $0x20] sm:$0xff]
        %v369 = vld [vmem:[#allocation3 + $0x28] sm:$0xff]
        %v370 = vld [vmem:[#allocation3 + $0x30] sm:$0xff]
        %v371 = vld [vmem:[#allocation3 + $0x38] sm:$0xff]
        %v372 = vld [vmem:[#allocation4] sm:$0xff]
        %v373 = vld [vmem:[#allocation4 + $0x8] sm:$0xff]
        %v374 = vld [vmem:[#allocation4 + $0x10] sm:$0xff]
        %v375 = vld [vmem:[#allocation4 + $0x18] sm:$0xff]
        %v377 = vsel %vm244, %v372, 0
        %v380 = vsel %vm244, %v373, 0
        %v383 = vsel %vm244, %v374, 0
        %v386 = vsel %vm244, %v375, 0
        %388 = vmatpush.msra.mxu0 0.0
        %389 = vmatpush.msra.mxu0 0.0
        %390 = vmatpush.msra.mxu0 0.0
        %391 = vmatpush.msra.mxu0 0.0
        %392 = vmatpush.msra.mxu0 0.0
        %393 = vmatpush.msra.mxu0 0.0
        %394 = vmatpush.msra.mxu0 0.0
        %395 = vmatpush.msra.mxu0 0.0
        %396 = vmatpush.msra.mxu0 0.0
        %397 = vmatpush.msra.mxu0 0.0
        %398 = vmatpush.msra.mxu0 0.0
        %399 = vmatpush.msra.mxu0 0.0
        %400 = vmatpush.msra.mxu0 %v362
        %401 = vmatpush.msra.mxu0 %v360
        %402 = vmatpush.msra.mxu0 %v358
        %403 = vmatpush.msra.mxu0 %v356
        %404 = vmatmul.f32.gmra.mxu0 %v377
        %v405 = vpop.f32.mrf.mxu0
        %v406 = vadd.f32 0.0, %v405
        %407 = vmatmul.f32.gmra.mxu0 %v380
        %v408 = vpop.f32.mrf.mxu0
        %v409 = vadd.f32 0.0, %v408
        %410 = vmatmul.f32.gmra.mxu0 %v383
        %v411 = vpop.f32.mrf.mxu0
        %v412 = vadd.f32 0.0, %v411
        %413 = vmatmul.f32.gmra.mxu0 %v386
        %v414 = vpop.f32.mrf.mxu0
        %v415 = vadd.f32 0.0, %v414
        %416 = vdwg.mxu0
        %417 = vmatpush.msra.mxu0 0.0
        %418 = vmatpush.msra.mxu0 0.0
        %419 = vmatpush.msra.mxu0 0.0
        %420 = vmatpush.msra.mxu0 0.0
        %421 = vmatpush.msra.mxu0 0.0
        %422 = vmatpush.msra.mxu0 0.0
        %423 = vmatpush.msra.mxu0 0.0
        %424 = vmatpush.msra.mxu0 0.0
        %425 = vmatpush.msra.mxu0 0.0
        %426 = vmatpush.msra.mxu0 0.0
        %427 = vmatpush.msra.mxu0 0.0
        %428 = vmatpush.msra.mxu0 0.0
        %429 = vmatpush.msra.mxu0 %v363
        %430 = vmatpush.msra.mxu0 %v361
        %431 = vmatpush.msra.mxu0 %v359
        %432 = vmatpush.msra.mxu0 %v357
        %433 = vmatmul.f32.gmra.mxu0 %v377
        %v434 = vpop.f32.mrf.mxu0
        %v435 = vadd.f32 0.0, %v434
        %436 = vmatmul.f32.gmra.mxu0 %v380
        %v437 = vpop.f32.mrf.mxu0
        %v438 = vadd.f32 0.0, %v437
        %439 = vmatmul.f32.gmra.mxu0 %v383
        %v440 = vpop.f32.mrf.mxu0
        %v441 = vadd.f32 0.0, %v440
        %442 = vmatmul.f32.gmra.mxu0 %v386
        %v443 = vpop.f32.mrf.mxu0
        %v444 = vadd.f32 0.0, %v443
        %445 = vdwg.mxu0
        %v446 = vadd.f32 %v364, %v406
        %v447 = vadd.f32 %v365, %v435
        %v448 = vadd.f32 %v366, %v409
        %v449 = vadd.f32 %v367, %v438
        %v450 = vadd.f32 %v368, %v412
        %v451 = vadd.f32 %v369, %v441
        %v452 = vadd.f32 %v370, %v415
        %v453 = vadd.f32 %v371, %v444
        %454 = vst [vmem:[#allocation3] sm:$0xff] %v446
        %455 = vst [vmem:[#allocation3 + $0x8] sm:$0xff] %v447
        %456 = vst [vmem:[#allocation3 + $0x10] sm:$0xff] %v448
        %457 = vst [vmem:[#allocation3 + $0x18] sm:$0xff] %v449
        %458 = vst [vmem:[#allocation3 + $0x20] sm:$0xff] %v450
        %459 = vst [vmem:[#allocation3 + $0x28] sm:$0xff] %v451
        %460 = vst [vmem:[#allocation3 + $0x30] sm:$0xff] %v452
        %461 = vst [vmem:[#allocation3 + $0x38] sm:$0xff] %v453
        %462 = vrot.lane.b32.xlu0 %v231, 16
        %v463 = vpop.permute.xlu0 %462
        %464 = vrot.lane.b32.xlu0 %v233, 16
        %v465 = vpop.permute.xlu0 %464
        %466 = vrot.lane.b32.xlu0 %v235, 16
        %v467 = vpop.permute.xlu0 %466
        %468 = vrot.lane.b32.xlu0 %v237, 16
        %v469 = vpop.permute.xlu0 %468
        %470 = vrot.lane.b32.xlu0 %v232, 16
        %v471 = vpop.permute.xlu0 %470
        %472 = vrot.lane.b32.xlu0 %v234, 16
        %v473 = vpop.permute.xlu0 %472
        %474 = vrot.lane.b32.xlu0 %v236, 16
        %v475 = vpop.permute.xlu0 %474
        %476 = vrot.lane.b32.xlu0 %v238, 16
        %v477 = vpop.permute.xlu0 %476
        %vm478 = vcmp.lt.s32.totalorder %v340, 16
        %v479 = vsel %vm478, %v463, %v471
        %v480 = vsel %vm478, %v465, %v473
        %v481 = vsel %vm478, %v467, %v475
        %v482 = vsel %vm478, %v469, %v477
        %v483 = vsel %vm478, %v471, %v463
        %v484 = vsel %vm478, %v473, %v465
        %v485 = vsel %vm478, %v475, %v467
        %v486 = vsel %vm478, %v477, %v469
        %s487 = scalar_lea.vmem %s3, 2
        %v488 = vld [vmem:[%s487] sm:$0x3]
        %v490 = vperm.slane %v488, 0
        %v491 = vperm.slane %v488, 1
        %v494 = vmul.f32 %v483, %v490
        %v495 = vmul.f32 %v479, %v491
        %v496 = vmul.f32 %v484, %v490
        %v497 = vmul.f32 %v480, %v491
        %v498 = vmul.f32 %v485, %v490
        %v499 = vmul.f32 %v481, %v491
        %v500 = vmul.f32 %v486, %v490
        %v501 = vmul.f32 %v482, %v491
        %v502 = vld [vmem:[#allocation3] sm:$0xff]
        %v503 = vld [vmem:[#allocation3 + $0x8] sm:$0xff]
        %v504 = vld [vmem:[#allocation3 + $0x10] sm:$0xff]
        %v505 = vld [vmem:[#allocation3 + $0x18] sm:$0xff]
        %v506 = vld [vmem:[#allocation3 + $0x20] sm:$0xff]
        %v507 = vld [vmem:[#allocation3 + $0x28] sm:$0xff]
        %v508 = vld [vmem:[#allocation3 + $0x30] sm:$0xff]
        %v509 = vld [vmem:[#allocation3 + $0x38] sm:$0xff]
        %s510 = scalar_lea.vmem [#allocation4], 32
        %v511 = vld [vmem:[%s510] sm:$0xff]
        %v512 = vld [vmem:[%s510 + $0x8] sm:$0xff]
        %v513 = vld [vmem:[%s510 + $0x10] sm:$0xff]
        %v514 = vld [vmem:[%s510 + $0x18] sm:$0xff]
        %v516 = vsel %vm244, %v511, 0
        %v519 = vsel %vm244, %v512, 0
        %v522 = vsel %vm244, %v513, 0
        %v525 = vsel %vm244, %v514, 0
        %527 = vmatpush.msra.mxu0 0.0
        %528 = vmatpush.msra.mxu0 0.0
        %529 = vmatpush.msra.mxu0 0.0
        %530 = vmatpush.msra.mxu0 0.0
        %531 = vmatpush.msra.mxu0 0.0
        %532 = vmatpush.msra.mxu0 0.0
        %533 = vmatpush.msra.mxu0 0.0
        %534 = vmatpush.msra.mxu0 0.0
        %535 = vmatpush.msra.mxu0 0.0
        %536 = vmatpush.msra.mxu0 0.0
        %537 = vmatpush.msra.mxu0 0.0
        %538 = vmatpush.msra.mxu0 0.0
        %539 = vmatpush.msra.mxu0 %v500
        %540 = vmatpush.msra.mxu0 %v498
        %541 = vmatpush.msra.mxu0 %v496
        %542 = vmatpush.msra.mxu0 %v494
        %543 = vmatmul.f32.gmra.mxu0 %v516
        %v544 = vpop.f32.mrf.mxu0
        %v545 = vadd.f32 0.0, %v544
        %546 = vmatmul.f32.gmra.mxu0 %v519
        %v547 = vpop.f32.mrf.mxu0
        %v548 = vadd.f32 0.0, %v547
        %549 = vmatmul.f32.gmra.mxu0 %v522
        %v550 = vpop.f32.mrf.mxu0
        %v551 = vadd.f32 0.0, %v550
        %552 = vmatmul.f32.gmra.mxu0 %v525
        %v553 = vpop.f32.mrf.mxu0
        %v554 = vadd.f32 0.0, %v553
        %555 = vdwg.mxu0
        %556 = vmatpush.msra.mxu0 0.0
        %557 = vmatpush.msra.mxu0 0.0
        %558 = vmatpush.msra.mxu0 0.0
        %559 = vmatpush.msra.mxu0 0.0
        %560 = vmatpush.msra.mxu0 0.0
        %561 = vmatpush.msra.mxu0 0.0
        %562 = vmatpush.msra.mxu0 0.0
        %563 = vmatpush.msra.mxu0 0.0
        %564 = vmatpush.msra.mxu0 0.0
        %565 = vmatpush.msra.mxu0 0.0
        %566 = vmatpush.msra.mxu0 0.0
        %567 = vmatpush.msra.mxu0 0.0
        %568 = vmatpush.msra.mxu0 %v501
        %569 = vmatpush.msra.mxu0 %v499
        %570 = vmatpush.msra.mxu0 %v497
        %571 = vmatpush.msra.mxu0 %v495
        %572 = vmatmul.f32.gmra.mxu0 %v516
        %v573 = vpop.f32.mrf.mxu0
        %v574 = vadd.f32 0.0, %v573
        %575 = vmatmul.f32.gmra.mxu0 %v519
        %v576 = vpop.f32.mrf.mxu0
        %v577 = vadd.f32 0.0, %v576
        %578 = vmatmul.f32.gmra.mxu0 %v522
        %v579 = vpop.f32.mrf.mxu0
        %v580 = vadd.f32 0.0, %v579
        %581 = vmatmul.f32.gmra.mxu0 %v525
        %v582 = vpop.f32.mrf.mxu0
        %v583 = vadd.f32 0.0, %v582
        %584 = vdwg.mxu0
        %v585 = vadd.f32 %v502, %v545
        %v586 = vadd.f32 %v503, %v574
        %v587 = vadd.f32 %v504, %v548
        %v588 = vadd.f32 %v505, %v577
        %v589 = vadd.f32 %v506, %v551
        %v590 = vadd.f32 %v507, %v580
        %v591 = vadd.f32 %v508, %v554
        %v592 = vadd.f32 %v509, %v583
        %593 = vst [vmem:[#allocation3] sm:$0xff] %v585
        %594 = vst [vmem:[#allocation3 + $0x8] sm:$0xff] %v586
        %595 = vst [vmem:[#allocation3 + $0x10] sm:$0xff] %v587
        %596 = vst [vmem:[#allocation3 + $0x18] sm:$0xff] %v588
        %597 = vst [vmem:[#allocation3 + $0x20] sm:$0xff] %v589
        %598 = vst [vmem:[#allocation3 + $0x28] sm:$0xff] %v590
        %599 = vst [vmem:[#allocation3 + $0x30] sm:$0xff] %v591
        %600 = vst [vmem:[#allocation3 + $0x38] sm:$0xff] %v592
        %601 = vrot.lane.b32.xlu0 %v231, 15
        %v602 = vpop.permute.xlu0 %601
        %603 = vrot.lane.b32.xlu0 %v233, 15
        %v604 = vpop.permute.xlu0 %603
        %605 = vrot.lane.b32.xlu0 %v235, 15
        %v606 = vpop.permute.xlu0 %605
        %607 = vrot.lane.b32.xlu0 %v237, 15
        %v608 = vpop.permute.xlu0 %607
        %609 = vrot.lane.b32.xlu0 %v232, 15
        %v610 = vpop.permute.xlu0 %609
        %611 = vrot.lane.b32.xlu0 %v234, 15
        %v612 = vpop.permute.xlu0 %611
        %613 = vrot.lane.b32.xlu0 %v236, 15
        %v614 = vpop.permute.xlu0 %613
        %615 = vrot.lane.b32.xlu0 %v238, 15
        %v616 = vpop.permute.xlu0 %615
        %vm617 = vcmp.lt.s32.totalorder %v340, 15
        %v618 = vsel %vm617, %v602, %v610
        %v619 = vsel %vm617, %v604, %v612
        %v620 = vsel %vm617, %v606, %v614
        %v621 = vsel %vm617, %v608, %v616
        %v622 = vsel %vm617, %v610, %v602
        %v623 = vsel %vm617, %v612, %v604
        %v624 = vsel %vm617, %v614, %v606
        %v625 = vsel %vm617, %v616, %v608
        %s626 = scalar_lea.vmem %s3, 4
        %v627 = vld [vmem:[%s626] sm:$0x3]
        %v629 = vperm.slane %v627, 0
        %v630 = vperm.slane %v627, 1
        %v633 = vmul.f32 %v622, %v629
        %v634 = vmul.f32 %v618, %v630
        %v635 = vmul.f32 %v623, %v629
        %v636 = vmul.f32 %v619, %v630
        %v637 = vmul.f32 %v624, %v629
        %v638 = vmul.f32 %v620, %v630
        %v639 = vmul.f32 %v625, %v629
        %v640 = vmul.f32 %v621, %v630
        %v641 = vld [vmem:[#allocation3] sm:$0xff]
        %v642 = vld [vmem:[#allocation3 + $0x8] sm:$0xff]
        %v643 = vld [vmem:[#allocation3 + $0x10] sm:$0xff]
        %v644 = vld [vmem:[#allocation3 + $0x18] sm:$0xff]
        %v645 = vld [vmem:[#allocation3 + $0x20] sm:$0xff]
        %v646 = vld [vmem:[#allocation3 + $0x28] sm:$0xff]
        %v647 = vld [vmem:[#allocation3 + $0x30] sm:$0xff]
        %v648 = vld [vmem:[#allocation3 + $0x38] sm:$0xff]
        %s649 = scalar_lea.vmem [#allocation4], 64
        %v650 = vld [vmem:[%s649] sm:$0xff]
        %v651 = vld [vmem:[%s649 + $0x8] sm:$0xff]
        %v652 = vld [vmem:[%s649 + $0x10] sm:$0xff]
        %v653 = vld [vmem:[%s649 + $0x18] sm:$0xff]
        %v655 = vsel %vm244, %v650, 0
        %v658 = vsel %vm244, %v651, 0
        %v661 = vsel %vm244, %v652, 0
        %v664 = vsel %vm244, %v653, 0
        %666 = vmatpush.msra.mxu0 0.0
        %667 = vmatpush.msra.mxu0 0.0
        %668 = vmatpush.msra.mxu0 0.0
        %669 = vmatpush.msra.mxu0 0.0
        %670 = vmatpush.msra.mxu0 0.0
        %671 = vmatpush.msra.mxu0 0.0
        %672 = vmatpush.msra.mxu0 0.0
        %673 = vmatpush.msra.mxu0 0.0
        %674 = vmatpush.msra.mxu0 0.0
        %675 = vmatpush.msra.mxu0 0.0
        %676 = vmatpush.msra.mxu0 0.0
        %677 = vmatpush.msra.mxu0 0.0
        %678 = vmatpush.msra.mxu0 %v639
        %679 = vmatpush.msra.mxu0 %v637
        %680 = vmatpush.msra.mxu0 %v635
        %681 = vmatpush.msra.mxu0 %v633
        %682 = vmatmul.f32.gmra.mxu0 %v655
        %v683 = vpop.f32.mrf.mxu0
        %v684 = vadd.f32 0.0, %v683
        %685 = vmatmul.f32.gmra.mxu0 %v658
        %v686 = vpop.f32.mrf.mxu0
        %v687 = vadd.f32 0.0, %v686
        %688 = vmatmul.f32.gmra.mxu0 %v661
        %v689 = vpop.f32.mrf.mxu0
        %v690 = vadd.f32 0.0, %v689
        %691 = vmatmul.f32.gmra.mxu0 %v664
        %v692 = vpop.f32.mrf.mxu0
        %v693 = vadd.f32 0.0, %v692
        %694 = vdwg.mxu0
        %695 = vmatpush.msra.mxu0 0.0
        %696 = vmatpush.msra.mxu0 0.0
        %697 = vmatpush.msra.mxu0 0.0
        %698 = vmatpush.msra.mxu0 0.0
        %699 = vmatpush.msra.mxu0 0.0
        %700 = vmatpush.msra.mxu0 0.0
        %701 = vmatpush.msra.mxu0 0.0
        %702 = vmatpush.msra.mxu0 0.0
        %703 = vmatpush.msra.mxu0 0.0
        %704 = vmatpush.msra.mxu0 0.0
        %705 = vmatpush.msra.mxu0 0.0
        %706 = vmatpush.msra.mxu0 0.0
        %707 = vmatpush.msra.mxu0 %v640
        %708 = vmatpush.msra.mxu0 %v638
        %709 = vmatpush.msra.mxu0 %v636
        %710 = vmatpush.msra.mxu0 %v634
        %711 = vmatmul.f32.gmra.mxu0 %v655
        %v712 = vpop.f32.mrf.mxu0
        %v713 = vadd.f32 0.0, %v712
        %714 = vmatmul.f32.gmra.mxu0 %v658
        %v715 = vpop.f32.mrf.mxu0
        %v716 = vadd.f32 0.0, %v715
        %717 = vmatmul.f32.gmra.mxu0 %v661
        %v718 = vpop.f32.mrf.mxu0
        %v719 = vadd.f32 0.0, %v718
        %720 = vmatmul.f32.gmra.mxu0 %v664
        %v721 = vpop.f32.mrf.mxu0
        %v722 = vadd.f32 0.0, %v721
        %723 = vdwg.mxu0
        %v724 = vadd.f32 %v641, %v684
        %v725 = vadd.f32 %v642, %v713
        %v726 = vadd.f32 %v643, %v687
        %v727 = vadd.f32 %v644, %v716
        %v728 = vadd.f32 %v645, %v690
        %v729 = vadd.f32 %v646, %v719
        %v730 = vadd.f32 %v647, %v693
        %v731 = vadd.f32 %v648, %v722
        %732 = vst [vmem:[#allocation3] sm:$0xff] %v724
        %733 = vst [vmem:[#allocation3 + $0x8] sm:$0xff] %v725
        %734 = vst [vmem:[#allocation3 + $0x10] sm:$0xff] %v726
        %735 = vst [vmem:[#allocation3 + $0x18] sm:$0xff] %v727
        %736 = vst [vmem:[#allocation3 + $0x20] sm:$0xff] %v728
        %737 = vst [vmem:[#allocation3 + $0x28] sm:$0xff] %v729
        %738 = vst [vmem:[#allocation3 + $0x30] sm:$0xff] %v730
        %739 = vst [vmem:[#allocation3 + $0x38] sm:$0xff] %v731
        %740 = vrot.lane.b32.xlu0 %v231, 1
        %v741 = vpop.permute.xlu0 %740
        %742 = vrot.lane.b32.xlu0 %v233, 1
        %v743 = vpop.permute.xlu0 %742
        %744 = vrot.lane.b32.xlu0 %v235, 1
        %v745 = vpop.permute.xlu0 %744
        %746 = vrot.lane.b32.xlu0 %v237, 1
        %v747 = vpop.permute.xlu0 %746
        %748 = vrot.lane.b32.xlu0 %v232, 1
        %v749 = vpop.permute.xlu0 %748
        %750 = vrot.lane.b32.xlu0 %v234, 1
        %v751 = vpop.permute.xlu0 %750
        %752 = vrot.lane.b32.xlu0 %v236, 1
        %v753 = vpop.permute.xlu0 %752
        %754 = vrot.lane.b32.xlu0 %v238, 1
        %v755 = vpop.permute.xlu0 %754
        %vm756 = vcmp.lt.s32.totalorder %v340, 1
        %v757 = vsel %vm756, %v741, %v749
        %v758 = vsel %vm756, %v743, %v751
        %v759 = vsel %vm756, %v745, %v753
        %v760 = vsel %vm756, %v747, %v755
        %v761 = vsel %vm756, %v749, %v741
        %v762 = vsel %vm756, %v751, %v743
        %v763 = vsel %vm756, %v753, %v745
        %v764 = vsel %vm756, %v755, %v747
        %s765 = scalar_lea.vmem %s3, 6
        %v766 = vld [vmem:[%s765] sm:$0x3]
        %v768 = vperm.slane %v766, 0
        %v769 = vperm.slane %v766, 1
        %v772 = vmul.f32 %v761, %v768
        %v773 = vmul.f32 %v757, %v769
        %v774 = vmul.f32 %v762, %v768
        %v775 = vmul.f32 %v758, %v769
        %v776 = vmul.f32 %v763, %v768
        %v777 = vmul.f32 %v759, %v769
        %v778 = vmul.f32 %v764, %v768
        %v779 = vmul.f32 %v760, %v769
        %v780 = vld [vmem:[#allocation3] sm:$0xff]
        %v781 = vld [vmem:[#allocation3 + $0x8] sm:$0xff]
        %v782 = vld [vmem:[#allocation3 + $0x10] sm:$0xff]
        %v783 = vld [vmem:[#allocation3 + $0x18] sm:$0xff]
        %v784 = vld [vmem:[#allocation3 + $0x20] sm:$0xff]
        %v785 = vld [vmem:[#allocation3 + $0x28] sm:$0xff]
        %v786 = vld [vmem:[#allocation3 + $0x30] sm:$0xff]
        %v787 = vld [vmem:[#allocation3 + $0x38] sm:$0xff]
        %s788 = scalar_lea.vmem [#allocation4], 96
        %v789 = vld [vmem:[%s788] sm:$0xff]
        %v790 = vld [vmem:[%s788 + $0x8] sm:$0xff]
        %v791 = vld [vmem:[%s788 + $0x10] sm:$0xff]
        %v792 = vld [vmem:[%s788 + $0x18] sm:$0xff]
        %v794 = vsel %vm244, %v789, 0
        %v797 = vsel %vm244, %v790, 0
        %v800 = vsel %vm244, %v791, 0
        %v803 = vsel %vm244, %v792, 0
        %805 = vmatpush.msra.mxu0 0.0
        %806 = vmatpush.msra.mxu0 0.0
        %807 = vmatpush.msra.mxu0 0.0
        %808 = vmatpush.msra.mxu0 0.0
        %809 = vmatpush.msra.mxu0 0.0
        %810 = vmatpush.msra.mxu0 0.0
        %811 = vmatpush.msra.mxu0 0.0
        %812 = vmatpush.msra.mxu0 0.0
        %813 = vmatpush.msra.mxu0 0.0
        %814 = vmatpush.msra.mxu0 0.0
        %815 = vmatpush.msra.mxu0 0.0
        %816 = vmatpush.msra.mxu0 0.0
        %817 = vmatpush.msra.mxu0 %v778
        %818 = vmatpush.msra.mxu0 %v776
        %819 = vmatpush.msra.mxu0 %v774
        %820 = vmatpush.msra.mxu0 %v772
        %821 = vmatmul.f32.gmra.mxu0 %v794
        %v822 = vpop.f32.mrf.mxu0
        %v823 = vadd.f32 0.0, %v822
        %824 = vmatmul.f32.gmra.mxu0 %v797
        %v825 = vpop.f32.mrf.mxu0
        %v826 = vadd.f32 0.0, %v825
        %827 = vmatmul.f32.gmra.mxu0 %v800
        %v828 = vpop.f32.mrf.mxu0
        %v829 = vadd.f32 0.0, %v828
        %830 = vmatmul.f32.gmra.mxu0 %v803
        %v831 = vpop.f32.mrf.mxu0
        %v832 = vadd.f32 0.0, %v831
        %833 = vdwg.mxu0
        %834 = vmatpush.msra.mxu0 0.0
        %835 = vmatpush.msra.mxu0 0.0
        %836 = vmatpush.msra.mxu0 0.0
        %837 = vmatpush.msra.mxu0 0.0
        %838 = vmatpush.msra.mxu0 0.0
        %839 = vmatpush.msra.mxu0 0.0
        %840 = vmatpush.msra.mxu0 0.0
        %841 = vmatpush.msra.mxu0 0.0
        %842 = vmatpush.msra.mxu0 0.0
        %843 = vmatpush.msra.mxu0 0.0
        %844 = vmatpush.msra.mxu0 0.0
        %845 = vmatpush.msra.mxu0 0.0
        %846 = vmatpush.msra.mxu0 %v779
        %847 = vmatpush.msra.mxu0 %v777
        %848 = vmatpush.msra.mxu0 %v775
        %849 = vmatpush.msra.mxu0 %v773
        %850 = vmatmul.f32.gmra.mxu0 %v794
        %v851 = vpop.f32.mrf.mxu0
        %v852 = vadd.f32 0.0, %v851
        %853 = vmatmul.f32.gmra.mxu0 %v797
        %v854 = vpop.f32.mrf.mxu0
        %v855 = vadd.f32 0.0, %v854
        %856 = vmatmul.f32.gmra.mxu0 %v800
        %v857 = vpop.f32.mrf.mxu0
        %v858 = vadd.f32 0.0, %v857
        %859 = vmatmul.f32.gmra.mxu0 %v803
        %v860 = vpop.f32.mrf.mxu0
        %v861 = vadd.f32 0.0, %v860
        %862 = vdwg.mxu0
        %v863 = vadd.f32 %v780, %v823
        %v864 = vadd.f32 %v781, %v852
        %v865 = vadd.f32 %v782, %v826
        %v866 = vadd.f32 %v783, %v855
        %v867 = vadd.f32 %v784, %v829
        %v868 = vadd.f32 %v785, %v858
        %v869 = vadd.f32 %v786, %v832
        %v870 = vadd.f32 %v787, %v861
        %871 = vst [vmem:[#allocation3] sm:$0xff] %v863
        %872 = vst [vmem:[#allocation3 + $0x8] sm:$0xff] %v864
        %873 = vst [vmem:[#allocation3 + $0x10] sm:$0xff] %v865
        %874 = vst [vmem:[#allocation3 + $0x18] sm:$0xff] %v866
        %875 = vst [vmem:[#allocation3 + $0x20] sm:$0xff] %v867
        %876 = vst [vmem:[#allocation3 + $0x28] sm:$0xff] %v868
        %877 = vst [vmem:[#allocation3 + $0x30] sm:$0xff] %v869
        %878 = vst [vmem:[#allocation3 + $0x38] sm:$0xff] %v870
        %879 = vrot.lane.b32.xlu0 %v231, 127
        %v880 = vpop.permute.xlu0 %879
        %881 = vrot.lane.b32.xlu0 %v233, 127
        %v882 = vpop.permute.xlu0 %881
        %883 = vrot.lane.b32.xlu0 %v235, 127
        %v884 = vpop.permute.xlu0 %883
        %885 = vrot.lane.b32.xlu0 %v237, 127
        %v886 = vpop.permute.xlu0 %885
        %887 = vrot.lane.b32.xlu0 %v232, 127
        %v888 = vpop.permute.xlu0 %887
        %889 = vrot.lane.b32.xlu0 %v234, 127
        %v890 = vpop.permute.xlu0 %889
        %891 = vrot.lane.b32.xlu0 %v236, 127
        %v892 = vpop.permute.xlu0 %891
        %893 = vrot.lane.b32.xlu0 %v238, 127
        %v894 = vpop.permute.xlu0 %893
        %vm895 = vcmp.lt.s32.totalorder %v340, 127
        %v896 = vsel %vm895, %v880, %v888
        %v897 = vsel %vm895, %v882, %v890
        %v898 = vsel %vm895, %v884, %v892
        %v899 = vsel %vm895, %v886, %v894
        %v900 = vsel %vm895, %v888, %v880
        %v901 = vsel %vm895, %v890, %v882
        %v902 = vsel %vm895, %v892, %v884
        %v903 = vsel %vm895, %v894, %v886
        %s904 = scalar_lea.vmem %s3, 10
        %v905 = vld [vmem:[%s904] sm:$0x3]
        %v907 = vperm.slane %v905, 0
        %v908 = vperm.slane %v905, 1
        %v911 = vmul.f32 %v896, %v907
        %v912 = vmul.f32 %v900, %v908
        %v913 = vmul.f32 %v897, %v907
        %v914 = vmul.f32 %v901, %v908
        %v915 = vmul.f32 %v898, %v907
        %v916 = vmul.f32 %v902, %v908
        %v917 = vmul.f32 %v899, %v907
        %v918 = vmul.f32 %v903, %v908
        %v919 = vld [vmem:[#allocation3] sm:$0xff]
        %v920 = vld [vmem:[#allocation3 + $0x8] sm:$0xff]
        %v921 = vld [vmem:[#allocation3 + $0x10] sm:$0xff]
        %v922 = vld [vmem:[#allocation3 + $0x18] sm:$0xff]
        %v923 = vld [vmem:[#allocation3 + $0x20] sm:$0xff]
        %v924 = vld [vmem:[#allocation3 + $0x28] sm:$0xff]
        %v925 = vld [vmem:[#allocation3 + $0x30] sm:$0xff]
        %v926 = vld [vmem:[#allocation3 + $0x38] sm:$0xff]
        %s927 = scalar_lea.vmem [#allocation4], 160
        %v928 = vld [vmem:[%s927] sm:$0xff]
        %v929 = vld [vmem:[%s927 + $0x8] sm:$0xff]
        %v930 = vld [vmem:[%s927 + $0x10] sm:$0xff]
        %v931 = vld [vmem:[%s927 + $0x18] sm:$0xff]
        %v933 = vsel %vm244, %v928, 0
        %v936 = vsel %vm244, %v929, 0
        %v939 = vsel %vm244, %v930, 0
        %v942 = vsel %vm244, %v931, 0
        %944 = vmatpush.msra.mxu0 0.0
        %945 = vmatpush.msra.mxu0 0.0
        %946 = vmatpush.msra.mxu0 0.0
        %947 = vmatpush.msra.mxu0 0.0
        %948 = vmatpush.msra.mxu0 0.0
        %949 = vmatpush.msra.mxu0 0.0
        %950 = vmatpush.msra.mxu0 0.0
        %951 = vmatpush.msra.mxu0 0.0
        %952 = vmatpush.msra.mxu0 0.0
        %953 = vmatpush.msra.mxu0 0.0
        %954 = vmatpush.msra.mxu0 0.0
        %955 = vmatpush.msra.mxu0 0.0
        %956 = vmatpush.msra.mxu0 %v917
        %957 = vmatpush.msra.mxu0 %v915
        %958 = vmatpush.msra.mxu0 %v913
        %959 = vmatpush.msra.mxu0 %v911
        %960 = vmatmul.f32.gmra.mxu0 %v933
        %v961 = vpop.f32.mrf.mxu0
        %v962 = vadd.f32 0.0, %v961
        %963 = vmatmul.f32.gmra.mxu0 %v936
        %v964 = vpop.f32.mrf.mxu0
        %v965 = vadd.f32 0.0, %v964
        %966 = vmatmul.f32.gmra.mxu0 %v939
        %v967 = vpop.f32.mrf.mxu0
        %v968 = vadd.f32 0.0, %v967
        %969 = vmatmul.f32.gmra.mxu0 %v942
        %v970 = vpop.f32.mrf.mxu0
        %v971 = vadd.f32 0.0, %v970
        %972 = vdwg.mxu0
        %973 = vmatpush.msra.mxu0 0.0
        %974 = vmatpush.msra.mxu0 0.0
        %975 = vmatpush.msra.mxu0 0.0
        %976 = vmatpush.msra.mxu0 0.0
        %977 = vmatpush.msra.mxu0 0.0
        %978 = vmatpush.msra.mxu0 0.0
        %979 = vmatpush.msra.mxu0 0.0
        %980 = vmatpush.msra.mxu0 0.0
        %981 = vmatpush.msra.mxu0 0.0
        %982 = vmatpush.msra.mxu0 0.0
        %983 = vmatpush.msra.mxu0 0.0
        %984 = vmatpush.msra.mxu0 0.0
        %985 = vmatpush.msra.mxu0 %v918
        %986 = vmatpush.msra.mxu0 %v916
        %987 = vmatpush.msra.mxu0 %v914
        %988 = vmatpush.msra.mxu0 %v912
        %989 = vmatmul.f32.gmra.mxu0 %v933
        %v990 = vpop.f32.mrf.mxu0
        %v991 = vadd.f32 0.0, %v990
        %992 = vmatmul.f32.gmra.mxu0 %v936
        %v993 = vpop.f32.mrf.mxu0
        %v994 = vadd.f32 0.0, %v993
        %995 = vmatmul.f32.gmra.mxu0 %v939
        %v996 = vpop.f32.mrf.mxu0
        %v997 = vadd.f32 0.0, %v996
        %998 = vmatmul.f32.gmra.mxu0 %v942
        %v999 = vpop.f32.mrf.mxu0
        %v1000 = vadd.f32 0.0, %v999
        %1001 = vdwg.mxu0
        %v1002 = vadd.f32 %v919, %v962
        %v1003 = vadd.f32 %v920, %v991
        %v1004 = vadd.f32 %v921, %v965
        %v1005 = vadd.f32 %v922, %v994
        %v1006 = vadd.f32 %v923, %v968
        %v1007 = vadd.f32 %v924, %v997
        %v1008 = vadd.f32 %v925, %v971
        %v1009 = vadd.f32 %v926, %v1000
        %1010 = vst [vmem:[#allocation3] sm:$0xff] %v1002
        %1011 = vst [vmem:[#allocation3 + $0x8] sm:$0xff] %v1003
        %1012 = vst [vmem:[#allocation3 + $0x10] sm:$0xff] %v1004
        %1013 = vst [vmem:[#allocation3 + $0x18] sm:$0xff] %v1005
        %1014 = vst [vmem:[#allocation3 + $0x20] sm:$0xff] %v1006
        %1015 = vst [vmem:[#allocation3 + $0x28] sm:$0xff] %v1007
        %1016 = vst [vmem:[#allocation3 + $0x30] sm:$0xff] %v1008
        %1017 = vst [vmem:[#allocation3 + $0x38] sm:$0xff] %v1009
        %1018 = vrot.lane.b32.xlu0 %v231, 113
        %v1019 = vpop.permute.xlu0 %1018
        %1020 = vrot.lane.b32.xlu0 %v233, 113
        %v1021 = vpop.permute.xlu0 %1020
        %1022 = vrot.lane.b32.xlu0 %v235, 113
        %v1023 = vpop.permute.xlu0 %1022
        %1024 = vrot.lane.b32.xlu0 %v237, 113
        %v1025 = vpop.permute.xlu0 %1024
        %1026 = vrot.lane.b32.xlu0 %v232, 113
        %v1027 = vpop.permute.xlu0 %1026
        %1028 = vrot.lane.b32.xlu0 %v234, 113
        %v1029 = vpop.permute.xlu0 %1028
        %1030 = vrot.lane.b32.xlu0 %v236, 113
        %v1031 = vpop.permute.xlu0 %1030
        %1032 = vrot.lane.b32.xlu0 %v238, 113
        %v1033 = vpop.permute.xlu0 %1032
        %vm1034 = vcmp.lt.s32.totalorder %v340, 113
        %v1035 = vsel %vm1034, %v1019, %v1027
        %v1036 = vsel %vm1034, %v1021, %v1029
        %v1037 = vsel %vm1034, %v1023, %v1031
        %v1038 = vsel %vm1034, %v1025, %v1033
        %v1039 = vsel %vm1034, %v1027, %v1019
        %v1040 = vsel %vm1034, %v1029, %v1021
        %v1041 = vsel %vm1034, %v1031, %v1023
        %v1042 = vsel %vm1034, %v1033, %v1025
        %s1043 = scalar_lea.vmem %s3, 12
        %v1044 = vld [vmem:[%s1043] sm:$0x3]
        %v1046 = vperm.slane %v1044, 0
        %v1047 = vperm.slane %v1044, 1
        %v1050 = vmul.f32 %v1035, %v1046
        %v1051 = vmul.f32 %v1039, %v1047
        %v1052 = vmul.f32 %v1036, %v1046
        %v1053 = vmul.f32 %v1040, %v1047
        %v1054 = vmul.f32 %v1037, %v1046
        %v1055 = vmul.f32 %v1041, %v1047
        %v1056 = vmul.f32 %v1038, %v1046
        %v1057 = vmul.f32 %v1042, %v1047
        %v1058 = vld [vmem:[#allocation3] sm:$0xff]
        %v1059 = vld [vmem:[#allocation3 + $0x8] sm:$0xff]
        %v1060 = vld [vmem:[#allocation3 + $0x10] sm:$0xff]
        %v1061 = vld [vmem:[#allocation3 + $0x18] sm:$0xff]
        %v1062 = vld [vmem:[#allocation3 + $0x20] sm:$0xff]
        %v1063 = vld [vmem:[#allocation3 + $0x28] sm:$0xff]
        %v1064 = vld [vmem:[#allocation3 + $0x30] sm:$0xff]
        %v1065 = vld [vmem:[#allocation3 + $0x38] sm:$0xff]
        %s1066 = scalar_lea.vmem [#allocation4], 192
        %v1067 = vld [vmem:[%s1066] sm:$0xff]
        %v1068 = vld [vmem:[%s1066 + $0x8] sm:$0xff]
        %v1069 = vld [vmem:[%s1066 + $0x10] sm:$0xff]
        %v1070 = vld [vmem:[%s1066 + $0x18] sm:$0xff]
        %v1072 = vsel %vm244, %v1067, 0
        %v1075 = vsel %vm244, %v1068, 0
        %v1078 = vsel %vm244, %v1069, 0
        %v1081 = vsel %vm244, %v1070, 0
        %1083 = vmatpush.msra.mxu0 0.0
        %1084 = vmatpush.msra.mxu0 0.0
        %1085 = vmatpush.msra.mxu0 0.0
        %1086 = vmatpush.msra.mxu0 0.0
        %1087 = vmatpush.msra.mxu0 0.0
        %1088 = vmatpush.msra.mxu0 0.0
        %1089 = vmatpush.msra.mxu0 0.0
        %1090 = vmatpush.msra.mxu0 0.0
        %1091 = vmatpush.msra.mxu0 0.0
        %1092 = vmatpush.msra.mxu0 0.0
        %1093 = vmatpush.msra.mxu0 0.0
        %1094 = vmatpush.msra.mxu0 0.0
        %1095 = vmatpush.msra.mxu0 %v1056
        %1096 = vmatpush.msra.mxu0 %v1054
        %1097 = vmatpush.msra.mxu0 %v1052
        %1098 = vmatpush.msra.mxu0 %v1050
        %1099 = vmatmul.f32.gmra.mxu0 %v1072
        %v1100 = vpop.f32.mrf.mxu0
        %v1101 = vadd.f32 0.0, %v1100
        %1102 = vmatmul.f32.gmra.mxu0 %v1075
        %v1103 = vpop.f32.mrf.mxu0
        %v1104 = vadd.f32 0.0, %v1103
        %1105 = vmatmul.f32.gmra.mxu0 %v1078
        %v1106 = vpop.f32.mrf.mxu0
        %v1107 = vadd.f32 0.0, %v1106
        %1108 = vmatmul.f32.gmra.mxu0 %v1081
        %v1109 = vpop.f32.mrf.mxu0
        %v1110 = vadd.f32 0.0, %v1109
        %1111 = vdwg.mxu0
        %1112 = vmatpush.msra.mxu0 0.0
        %1113 = vmatpush.msra.mxu0 0.0
        %1114 = vmatpush.msra.mxu0 0.0
        %1115 = vmatpush.msra.mxu0 0.0
        %1116 = vmatpush.msra.mxu0 0.0
        %1117 = vmatpush.msra.mxu0 0.0
        %1118 = vmatpush.msra.mxu0 0.0
        %1119 = vmatpush.msra.mxu0 0.0
        %1120 = vmatpush.msra.mxu0 0.0
        %1121 = vmatpush.msra.mxu0 0.0
        %1122 = vmatpush.msra.mxu0 0.0
        %1123 = vmatpush.msra.mxu0 0.0
        %1124 = vmatpush.msra.mxu0 %v1057
        %1125 = vmatpush.msra.mxu0 %v1055
        %1126 = vmatpush.msra.mxu0 %v1053
        %1127 = vmatpush.msra.mxu0 %v1051
        %1128 = vmatmul.f32.gmra.mxu0 %v1072
        %v1129 = vpop.f32.mrf.mxu0
        %v1130 = vadd.f32 0.0, %v1129
        %1131 = vmatmul.f32.gmra.mxu0 %v1075
        %v1132 = vpop.f32.mrf.mxu0
        %v1133 = vadd.f32 0.0, %v1132
        %1134 = vmatmul.f32.gmra.mxu0 %v1078
        %v1135 = vpop.f32.mrf.mxu0
        %v1136 = vadd.f32 0.0, %v1135
        %1137 = vmatmul.f32.gmra.mxu0 %v1081
        %v1138 = vpop.f32.mrf.mxu0
        %v1139 = vadd.f32 0.0, %v1138
        %1140 = vdwg.mxu0
        %v1141 = vadd.f32 %v1058, %v1101
        %v1142 = vadd.f32 %v1059, %v1130
        %v1143 = vadd.f32 %v1060, %v1104
        %v1144 = vadd.f32 %v1061, %v1133
        %v1145 = vadd.f32 %v1062, %v1107
        %v1146 = vadd.f32 %v1063, %v1136
        %v1147 = vadd.f32 %v1064, %v1110
        %v1148 = vadd.f32 %v1065, %v1139
        %1149 = vst [vmem:[#allocation3] sm:$0xff] %v1141
        %1150 = vst [vmem:[#allocation3 + $0x8] sm:$0xff] %v1142
        %1151 = vst [vmem:[#allocation3 + $0x10] sm:$0xff] %v1143
        %1152 = vst [vmem:[#allocation3 + $0x18] sm:$0xff] %v1144
        %1153 = vst [vmem:[#allocation3 + $0x20] sm:$0xff] %v1145
        %1154 = vst [vmem:[#allocation3 + $0x28] sm:$0xff] %v1146
        %1155 = vst [vmem:[#allocation3 + $0x30] sm:$0xff] %v1147
        %1156 = vst [vmem:[#allocation3 + $0x38] sm:$0xff] %v1148
        %1157 = vrot.lane.b32.xlu0 %v231, 112
        %v1158 = vpop.permute.xlu0 %1157
        %1159 = vrot.lane.b32.xlu0 %v233, 112
        %v1160 = vpop.permute.xlu0 %1159
        %1161 = vrot.lane.b32.xlu0 %v235, 112
        %v1162 = vpop.permute.xlu0 %1161
        %1163 = vrot.lane.b32.xlu0 %v237, 112
        %v1164 = vpop.permute.xlu0 %1163
        %1165 = vrot.lane.b32.xlu0 %v232, 112
        %v1166 = vpop.permute.xlu0 %1165
        %1167 = vrot.lane.b32.xlu0 %v234, 112
        %v1168 = vpop.permute.xlu0 %1167
        %1169 = vrot.lane.b32.xlu0 %v236, 112
        %v1170 = vpop.permute.xlu0 %1169
        %1171 = vrot.lane.b32.xlu0 %v238, 112
        %v1172 = vpop.permute.xlu0 %1171
        %vm1173 = vcmp.lt.s32.totalorder %v340, 112
        %v1174 = vsel %vm1173, %v1158, %v1166
        %v1175 = vsel %vm1173, %v1160, %v1168
        %v1176 = vsel %vm1173, %v1162, %v1170
        %v1177 = vsel %vm1173, %v1164, %v1172
        %v1178 = vsel %vm1173, %v1166, %v1158
        %v1179 = vsel %vm1173, %v1168, %v1160
        %v1180 = vsel %vm1173, %v1170, %v1162
        %v1181 = vsel %vm1173, %v1172, %v1164
        %s1182 = scalar_lea.vmem %s3, 14
        %v1183 = vld [vmem:[%s1182] sm:$0x3]
        %v1185 = vperm.slane %v1183, 0
        %v1186 = vperm.slane %v1183, 1
        %v1189 = vmul.f32 %v1174, %v1185
        %v1190 = vmul.f32 %v1178, %v1186
        %v1191 = vmul.f32 %v1175, %v1185
        %v1192 = vmul.f32 %v1179, %v1186
        %v1193 = vmul.f32 %v1176, %v1185
        %v1194 = vmul.f32 %v1180, %v1186
        %v1195 = vmul.f32 %v1177, %v1185
        %v1196 = vmul.f32 %v1181, %v1186
        %v1197 = vld [vmem:[#allocation3] sm:$0xff]
        %v1198 = vld [vmem:[#allocation3 + $0x8] sm:$0xff]
        %v1199 = vld [vmem:[#allocation3 + $0x10] sm:$0xff]
        %v1200 = vld [vmem:[#allocation3 + $0x18] sm:$0xff]
        %v1201 = vld [vmem:[#allocation3 + $0x20] sm:$0xff]
        %v1202 = vld [vmem:[#allocation3 + $0x28] sm:$0xff]
        %v1203 = vld [vmem:[#allocation3 + $0x30] sm:$0xff]
        %v1204 = vld [vmem:[#allocation3 + $0x38] sm:$0xff]
        %s1205 = scalar_lea.vmem [#allocation4], 224
        %v1206 = vld [vmem:[%s1205] sm:$0xff]
        %v1207 = vld [vmem:[%s1205 + $0x8] sm:$0xff]
        %v1208 = vld [vmem:[%s1205 + $0x10] sm:$0xff]
        %v1209 = vld [vmem:[%s1205 + $0x18] sm:$0xff]
        %v1211 = vsel %vm244, %v1206, 0
        %v1214 = vsel %vm244, %v1207, 0
        %v1217 = vsel %vm244, %v1208, 0
        %v1220 = vsel %vm244, %v1209, 0
        %1222 = vmatpush.msra.mxu0 0.0
        %1223 = vmatpush.msra.mxu0 0.0
        %1224 = vmatpush.msra.mxu0 0.0
        %1225 = vmatpush.msra.mxu0 0.0
        %1226 = vmatpush.msra.mxu0 0.0
        %1227 = vmatpush.msra.mxu0 0.0
        %1228 = vmatpush.msra.mxu0 0.0
        %1229 = vmatpush.msra.mxu0 0.0
        %1230 = vmatpush.msra.mxu0 0.0
        %1231 = vmatpush.msra.mxu0 0.0
        %1232 = vmatpush.msra.mxu0 0.0
        %1233 = vmatpush.msra.mxu0 0.0
        %1234 = vmatpush.msra.mxu0 %v1195
        %1235 = vmatpush.msra.mxu0 %v1193
        %1236 = vmatpush.msra.mxu0 %v1191
        %1237 = vmatpush.msra.mxu0 %v1189
        %1238 = vmatmul.f32.gmra.mxu0 %v1211
        %v1239 = vpop.f32.mrf.mxu0
        %v1240 = vadd.f32 0.0, %v1239
        %1241 = vmatmul.f32.gmra.mxu0 %v1214
        %v1242 = vpop.f32.mrf.mxu0
        %v1243 = vadd.f32 0.0, %v1242
        %1244 = vmatmul.f32.gmra.mxu0 %v1217
        %v1245 = vpop.f32.mrf.mxu0
        %v1246 = vadd.f32 0.0, %v1245
        %1247 = vmatmul.f32.gmra.mxu0 %v1220
        %v1248 = vpop.f32.mrf.mxu0
        %v1249 = vadd.f32 0.0, %v1248
        %1250 = vdwg.mxu0
        %1251 = vmatpush.msra.mxu0 0.0
        %1252 = vmatpush.msra.mxu0 0.0
        %1253 = vmatpush.msra.mxu0 0.0
        %1254 = vmatpush.msra.mxu0 0.0
        %1255 = vmatpush.msra.mxu0 0.0
        %1256 = vmatpush.msra.mxu0 0.0
        %1257 = vmatpush.msra.mxu0 0.0
        %1258 = vmatpush.msra.mxu0 0.0
        %1259 = vmatpush.msra.mxu0 0.0
        %1260 = vmatpush.msra.mxu0 0.0
        %1261 = vmatpush.msra.mxu0 0.0
        %1262 = vmatpush.msra.mxu0 0.0
        %1263 = vmatpush.msra.mxu0 %v1196
        %1264 = vmatpush.msra.mxu0 %v1194
        %1265 = vmatpush.msra.mxu0 %v1192
        %1266 = vmatpush.msra.mxu0 %v1190
        %1267 = vmatmul.f32.gmra.mxu0 %v1211
        %v1268 = vpop.f32.mrf.mxu0
        %v1269 = vadd.f32 0.0, %v1268
        %1270 = vmatmul.f32.gmra.mxu0 %v1214
        %v1271 = vpop.f32.mrf.mxu0
        %v1272 = vadd.f32 0.0, %v1271
        %1273 = vmatmul.f32.gmra.mxu0 %v1217
        %v1274 = vpop.f32.mrf.mxu0
        %v1275 = vadd.f32 0.0, %v1274
        %1276 = vmatmul.f32.gmra.mxu0 %v1220
        %v1277 = vpop.f32.mrf.mxu0
        %v1278 = vadd.f32 0.0, %v1277
        %1279 = vdwg.mxu0
        %v1280 = vadd.f32 %v1197, %v1240
        %v1281 = vadd.f32 %v1198, %v1269
        %v1282 = vadd.f32 %v1199, %v1243
        %v1283 = vadd.f32 %v1200, %v1272
        %v1284 = vadd.f32 %v1201, %v1246
        %v1285 = vadd.f32 %v1202, %v1275
        %v1286 = vadd.f32 %v1203, %v1249
        %v1287 = vadd.f32 %v1204, %v1278
        %1288 = vst [vmem:[#allocation3] sm:$0xff] %v1280
        %1289 = vst [vmem:[#allocation3 + $0x8] sm:$0xff] %v1281
        %1290 = vst [vmem:[#allocation3 + $0x10] sm:$0xff] %v1282
        %1291 = vst [vmem:[#allocation3 + $0x18] sm:$0xff] %v1283
        %1292 = vst [vmem:[#allocation3 + $0x20] sm:$0xff] %v1284
        %1293 = vst [vmem:[#allocation3 + $0x28] sm:$0xff] %v1285
        %1294 = vst [vmem:[#allocation3 + $0x30] sm:$0xff] %v1286
        %1295 = vst [vmem:[#allocation3 + $0x38] sm:$0xff] %v1287
        %1296 = vrot.lane.b32.xlu0 %v231, 111
        %v1297 = vpop.permute.xlu0 %1296
        %1298 = vrot.lane.b32.xlu0 %v233, 111
        %v1299 = vpop.permute.xlu0 %1298
        %1300 = vrot.lane.b32.xlu0 %v235, 111
        %v1301 = vpop.permute.xlu0 %1300
        %1302 = vrot.lane.b32.xlu0 %v237, 111
        %v1303 = vpop.permute.xlu0 %1302
        %1304 = vrot.lane.b32.xlu0 %v232, 111
        %v1305 = vpop.permute.xlu0 %1304
        %1306 = vrot.lane.b32.xlu0 %v234, 111
        %v1307 = vpop.permute.xlu0 %1306
        %1308 = vrot.lane.b32.xlu0 %v236, 111
        %v1309 = vpop.permute.xlu0 %1308
        %1310 = vrot.lane.b32.xlu0 %v238, 111
        %v1311 = vpop.permute.xlu0 %1310
        %vm1312 = vcmp.lt.s32.totalorder %v340, 111
        %v1313 = vsel %vm1312, %v1297, %v1305
        %v1314 = vsel %vm1312, %v1299, %v1307
        %v1315 = vsel %vm1312, %v1301, %v1309
        %v1316 = vsel %vm1312, %v1303, %v1311
        %v1317 = vsel %vm1312, %v1305, %v1297
        %v1318 = vsel %vm1312, %v1307, %v1299
        %v1319 = vsel %vm1312, %v1309, %v1301
        %v1320 = vsel %vm1312, %v1311, %v1303
        %s1321 = scalar_lea.vmem %s3, 16
        %v1322 = vld [vmem:[%s1321] sm:$0x3]
        %v1324 = vperm.slane %v1322, 0
        %v1325 = vperm.slane %v1322, 1
        %v1328 = vmul.f32 %v1313, %v1324
        %v1329 = vmul.f32 %v1317, %v1325
        %v1330 = vmul.f32 %v1314, %v1324
        %v1331 = vmul.f32 %v1318, %v1325
        %v1332 = vmul.f32 %v1315, %v1324
        %v1333 = vmul.f32 %v1319, %v1325
        %v1334 = vmul.f32 %v1316, %v1324
        %v1335 = vmul.f32 %v1320, %v1325
        %v1336 = vld [vmem:[#allocation3] sm:$0xff]
        %v1337 = vld [vmem:[#allocation3 + $0x8] sm:$0xff]
        %v1338 = vld [vmem:[#allocation3 + $0x10] sm:$0xff]
        %v1339 = vld [vmem:[#allocation3 + $0x18] sm:$0xff]
        %v1340 = vld [vmem:[#allocation3 + $0x20] sm:$0xff]
        %v1341 = vld [vmem:[#allocation3 + $0x28] sm:$0xff]
        %v1342 = vld [vmem:[#allocation3 + $0x30] sm:$0xff]
        %v1343 = vld [vmem:[#allocation3 + $0x38] sm:$0xff]
        %s1344 = scalar_lea.vmem [#allocation4], 256
        %v1345 = vld [vmem:[%s1344] sm:$0xff]
        %v1346 = vld [vmem:[%s1344 + $0x8] sm:$0xff]
        %v1347 = vld [vmem:[%s1344 + $0x10] sm:$0xff]
        %v1348 = vld [vmem:[%s1344 + $0x18] sm:$0xff]
        %v1350 = vsel %vm244, %v1345, 0
        %v1353 = vsel %vm244, %v1346, 0
        %v1356 = vsel %vm244, %v1347, 0
        %v1359 = vsel %vm244, %v1348, 0
        %1361 = vmatpush.msra.mxu0 0.0
        %1362 = vmatpush.msra.mxu0 0.0
        %1363 = vmatpush.msra.mxu0 0.0
        %1364 = vmatpush.msra.mxu0 0.0
        %1365 = vmatpush.msra.mxu0 0.0
        %1366 = vmatpush.msra.mxu0 0.0
        %1367 = vmatpush.msra.mxu0 0.0
        %1368 = vmatpush.msra.mxu0 0.0
        %1369 = vmatpush.msra.mxu0 0.0
        %1370 = vmatpush.msra.mxu0 0.0
        %1371 = vmatpush.msra.mxu0 0.0
        %1372 = vmatpush.msra.mxu0 0.0
        %1373 = vmatpush.msra.mxu0 %v1334
        %1374 = vmatpush.msra.mxu0 %v1332
        %1375 = vmatpush.msra.mxu0 %v1330
        %1376 = vmatpush.msra.mxu0 %v1328
        %1377 = vmatmul.f32.gmra.mxu0 %v1350
        %v1378 = vpop.f32.mrf.mxu0
        %v1379 = vadd.f32 0.0, %v1378
        %1380 = vmatmul.f32.gmra.mxu0 %v1353
        %v1381 = vpop.f32.mrf.mxu0
        %v1382 = vadd.f32 0.0, %v1381
        %1383 = vmatmul.f32.gmra.mxu0 %v1356
        %v1384 = vpop.f32.mrf.mxu0
        %v1385 = vadd.f32 0.0, %v1384
        %1386 = vmatmul.f32.gmra.mxu0 %v1359
        %v1387 = vpop.f32.mrf.mxu0
        %v1388 = vadd.f32 0.0, %v1387
        %1389 = vdwg.mxu0
        %1390 = vmatpush.msra.mxu0 0.0
        %1391 = vmatpush.msra.mxu0 0.0
        %1392 = vmatpush.msra.mxu0 0.0
        %1393 = vmatpush.msra.mxu0 0.0
        %1394 = vmatpush.msra.mxu0 0.0
        %1395 = vmatpush.msra.mxu0 0.0
        %1396 = vmatpush.msra.mxu0 0.0
        %1397 = vmatpush.msra.mxu0 0.0
        %1398 = vmatpush.msra.mxu0 0.0
        %1399 = vmatpush.msra.mxu0 0.0
        %1400 = vmatpush.msra.mxu0 0.0
        %1401 = vmatpush.msra.mxu0 0.0
        %1402 = vmatpush.msra.mxu0 %v1335
        %1403 = vmatpush.msra.mxu0 %v1333
        %1404 = vmatpush.msra.mxu0 %v1331
        %1405 = vmatpush.msra.mxu0 %v1329
        %1406 = vmatmul.f32.gmra.mxu0 %v1350
        %v1407 = vpop.f32.mrf.mxu0
        %v1408 = vadd.f32 0.0, %v1407
        %1409 = vmatmul.f32.gmra.mxu0 %v1353
        %v1410 = vpop.f32.mrf.mxu0
        %v1411 = vadd.f32 0.0, %v1410
        %1412 = vmatmul.f32.gmra.mxu0 %v1356
        %v1413 = vpop.f32.mrf.mxu0
        %v1414 = vadd.f32 0.0, %v1413
        %1415 = vmatmul.f32.gmra.mxu0 %v1359
        %v1416 = vpop.f32.mrf.mxu0
        %v1417 = vadd.f32 0.0, %v1416
        %1418 = vdwg.mxu0
        %v1419 = vadd.f32 %v1336, %v1379
        %v1420 = vadd.f32 %v1337, %v1408
        %v1421 = vadd.f32 %v1338, %v1382
        %v1422 = vadd.f32 %v1339, %v1411
        %v1423 = vadd.f32 %v1340, %v1385
        %v1424 = vadd.f32 %v1341, %v1414
        %v1425 = vadd.f32 %v1342, %v1388
        %v1426 = vadd.f32 %v1343, %v1417
        %1427 = vst [vmem:[#allocation3] sm:$0xff] %v1419
        %1428 = vst [vmem:[#allocation3 + $0x8] sm:$0xff] %v1420
        %1429 = vst [vmem:[#allocation3 + $0x10] sm:$0xff] %v1421
        %1430 = vst [vmem:[#allocation3 + $0x18] sm:$0xff] %v1422
        %1431 = vst [vmem:[#allocation3 + $0x20] sm:$0xff] %v1423
        %1432 = vst [vmem:[#allocation3 + $0x28] sm:$0xff] %v1424
        %1433 = vst [vmem:[#allocation3 + $0x30] sm:$0xff] %v1425
        %1434 = vst [vmem:[#allocation3 + $0x38] sm:$0xff] %v1426
        %v1435 = vld [vmem:[#allocation3] sm:$0xff]
        %v1436 = vld [vmem:[#allocation3 + $0x8] sm:$0xff]
        %v1437 = vld [vmem:[#allocation3 + $0x10] sm:$0xff]
        %v1438 = vld [vmem:[#allocation3 + $0x18] sm:$0xff]
        %v1439 = vld [vmem:[#allocation3 + $0x20] sm:$0xff]
        %v1440 = vld [vmem:[#allocation3 + $0x28] sm:$0xff]
        %v1441 = vld [vmem:[#allocation3 + $0x30] sm:$0xff]
        %v1442 = vld [vmem:[#allocation3 + $0x38] sm:$0xff]
        %v1443 = vld [vmem:[%s2] sm:$0xff]
        %v1444 = vld [vmem:[%s2 + $0x8] sm:$0xff]
        %v1445 = vld [vmem:[%s2 + $0x10] sm:$0xff]
        %v1446 = vld [vmem:[%s2 + $0x18] sm:$0xff]
        %1448 = vset.pattern.permute.xlu0 0
        %1449 = vperm.xlu0 %1448, %v1443
        %v1450 = vpop.permute.xlu0 %1449
        %1453 = vset.pattern.permute.xlu0 0
        %1454 = vperm.xlu0 %1453, %v1444
        %v1455 = vpop.permute.xlu0 %1454
        %1458 = vset.pattern.permute.xlu0 0
        %1459 = vperm.xlu0 %1458, %v1445
        %v1460 = vpop.permute.xlu0 %1459
        %1463 = vset.pattern.permute.xlu0 0
        %1464 = vperm.xlu0 %1463, %v1446
        %v1465 = vpop.permute.xlu0 %1464
        %v1467 = vadd.f32 %v1435, %v1450
        %v1468 = vadd.f32 %v1436, %v1450
        %v1469 = vadd.f32 %v1437, %v1455
        %v1470 = vadd.f32 %v1438, %v1455
        %v1471 = vadd.f32 %v1439, %v1460
        %v1472 = vadd.f32 %v1440, %v1460
        %v1473 = vadd.f32 %v1441, %v1465
        %v1474 = vadd.f32 %v1442, %v1465
        %vm1475 = vcmp.ge.f32.partialorder %v1467, 0.0
        %vm1476 = vcmp.ge.f32.partialorder %v1468, 0.0
        %vm1477 = vcmp.ge.f32.partialorder %v1469, 0.0
        %vm1478 = vcmp.ge.f32.partialorder %v1470, 0.0
        %vm1479 = vcmp.ge.f32.partialorder %v1471, 0.0
        %vm1480 = vcmp.ge.f32.partialorder %v1472, 0.0
        %vm1481 = vcmp.ge.f32.partialorder %v1473, 0.0
        %vm1482 = vcmp.ge.f32.partialorder %v1474, 0.0
        %v1483 = vmul.f32 %v1467, 0.01
        %v1484 = vmul.f32 %v1468, 0.01
        %v1485 = vmul.f32 %v1469, 0.01
        %v1486 = vmul.f32 %v1470, 0.01
        %v1487 = vmul.f32 %v1471, 0.01
        %v1488 = vmul.f32 %v1472, 0.01
        %v1489 = vmul.f32 %v1473, 0.01
        %v1490 = vmul.f32 %v1474, 0.01
        %v1491 = vsel %vm1475, %v1467, %v1483
        %v1492 = vsel %vm1476, %v1468, %v1484
        %v1493 = vsel %vm1477, %v1469, %v1485
        %v1494 = vsel %vm1478, %v1470, %v1486
        %v1495 = vsel %vm1479, %v1471, %v1487
        %v1496 = vsel %vm1480, %v1472, %v1488
        %v1497 = vsel %vm1481, %v1473, %v1489
        %v1498 = vsel %vm1482, %v1474, %v1490
        %1499 = vst [vmem:[#allocation2] sm:$0xff] %v1491
        %1500 = vst [vmem:[#allocation2 + $0x8] sm:$0xff] %v1492
        %1501 = vst [vmem:[#allocation2 + $0x10] sm:$0xff] %v1493
        %1502 = vst [vmem:[#allocation2 + $0x18] sm:$0xff] %v1494
        %1503 = vst [vmem:[#allocation2 + $0x20] sm:$0xff] %v1495
        %1504 = vst [vmem:[#allocation2 + $0x28] sm:$0xff] %v1496
        %1505 = vst [vmem:[#allocation2 + $0x30] sm:$0xff] %v1497
        %1506 = vst [vmem:[#allocation2 + $0x38] sm:$0xff] %v1498
        %v1507 = vld [vmem:[#allocation2] sm:$0xff]
        %v1508 = vld [vmem:[#allocation2 + $0x8] sm:$0xff]
        %v1509 = vld [vmem:[#allocation2 + $0x10] sm:$0xff]
        %v1510 = vld [vmem:[#allocation2 + $0x18] sm:$0xff]
        %v1511 = vld [vmem:[#allocation2 + $0x20] sm:$0xff]
        %v1512 = vld [vmem:[#allocation2 + $0x28] sm:$0xff]
        %v1513 = vld [vmem:[#allocation2 + $0x30] sm:$0xff]
        %v1514 = vld [vmem:[#allocation2 + $0x38] sm:$0xff]
        %s1515 = scalar_lea.vmem [#allocation4], 416
        %v1516 = vld [vmem:[%s1515] sm:$0xff]
        %v1517 = vld [vmem:[%s1515 + $0x8] sm:$0xff]
        %v1518 = vld [vmem:[%s1515 + $0x10] sm:$0xff]
        %v1519 = vld [vmem:[%s1515 + $0x18] sm:$0xff]
        %v1521 = vsel %vm244, %v1516, 0
        %v1524 = vsel %vm244, %v1517, 0
        %v1527 = vsel %vm244, %v1518, 0
        %v1530 = vsel %vm244, %v1519, 0
        %1532 = vmatpush.msra.mxu0 0.0
        %1533 = vmatpush.msra.mxu0 0.0
        %1534 = vmatpush.msra.mxu0 0.0
        %1535 = vmatpush.msra.mxu0 0.0
        %1536 = vmatpush.msra.mxu0 0.0
        %1537 = vmatpush.msra.mxu0 0.0
        %1538 = vmatpush.msra.mxu0 0.0
        %1539 = vmatpush.msra.mxu0 0.0
        %1540 = vmatpush.msra.mxu0 0.0
        %1541 = vmatpush.msra.mxu0 0.0
        %1542 = vmatpush.msra.mxu0 0.0
        %1543 = vmatpush.msra.mxu0 0.0
        %1544 = vmatpush.msra.mxu0 %v1513
        %1545 = vmatpush.msra.mxu0 %v1511
        %1546 = vmatpush.msra.mxu0 %v1509
        %1547 = vmatpush.msra.mxu0 %v1507
        %1548 = vmatmul.f32.gmra.mxu0 %v1521
        %v1549 = vpop.f32.mrf.mxu0
        %v1550 = vadd.f32 0.0, %v1549
        %1551 = vmatmul.f32.gmra.mxu0 %v1524
        %v1552 = vpop.f32.mrf.mxu0
        %v1553 = vadd.f32 0.0, %v1552
        %1554 = vmatmul.f32.gmra.mxu0 %v1527
        %v1555 = vpop.f32.mrf.mxu0
        %v1556 = vadd.f32 0.0, %v1555
        %1557 = vmatmul.f32.gmra.mxu0 %v1530
        %v1558 = vpop.f32.mrf.mxu0
        %v1559 = vadd.f32 0.0, %v1558
        %1560 = vdwg.mxu0
        %1561 = vmatpush.msra.mxu0 0.0
        %1562 = vmatpush.msra.mxu0 0.0
        %1563 = vmatpush.msra.mxu0 0.0
        %1564 = vmatpush.msra.mxu0 0.0
        %1565 = vmatpush.msra.mxu0 0.0
        %1566 = vmatpush.msra.mxu0 0.0
        %1567 = vmatpush.msra.mxu0 0.0
        %1568 = vmatpush.msra.mxu0 0.0
        %1569 = vmatpush.msra.mxu0 0.0
        %1570 = vmatpush.msra.mxu0 0.0
        %1571 = vmatpush.msra.mxu0 0.0
        %1572 = vmatpush.msra.mxu0 0.0
        %1573 = vmatpush.msra.mxu0 %v1514
        %1574 = vmatpush.msra.mxu0 %v1512
        %1575 = vmatpush.msra.mxu0 %v1510
        %1576 = vmatpush.msra.mxu0 %v1508
        %1577 = vmatmul.f32.gmra.mxu0 %v1521
        %v1578 = vpop.f32.mrf.mxu0
        %v1579 = vadd.f32 0.0, %v1578
        %1580 = vmatmul.f32.gmra.mxu0 %v1524
        %v1581 = vpop.f32.mrf.mxu0
        %v1582 = vadd.f32 0.0, %v1581
        %1583 = vmatmul.f32.gmra.mxu0 %v1527
        %v1584 = vpop.f32.mrf.mxu0
        %v1585 = vadd.f32 0.0, %v1584
        %1586 = vmatmul.f32.gmra.mxu0 %v1530
        %v1587 = vpop.f32.mrf.mxu0
        %v1588 = vadd.f32 0.0, %v1587
        %1589 = vdwg.mxu0
        %1590 = vst [vmem:[#allocation3] sm:$0xff] %v1550
        %1591 = vst [vmem:[#allocation3 + $0x8] sm:$0xff] %v1579
        %1592 = vst [vmem:[#allocation3 + $0x10] sm:$0xff] %v1553
        %1593 = vst [vmem:[#allocation3 + $0x18] sm:$0xff] %v1582
        %1594 = vst [vmem:[#allocation3 + $0x20] sm:$0xff] %v1556
        %1595 = vst [vmem:[#allocation3 + $0x28] sm:$0xff] %v1585
        %1596 = vst [vmem:[#allocation3 + $0x30] sm:$0xff] %v1559
        %1597 = vst [vmem:[#allocation3 + $0x38] sm:$0xff] %v1588
        %1598 = vrot.lane.b32.xlu0 %v1507, 34
        %v1599 = vpop.permute.xlu0 %1598
        %1600 = vrot.lane.b32.xlu0 %v1509, 34
        %v1601 = vpop.permute.xlu0 %1600
        %1602 = vrot.lane.b32.xlu0 %v1511, 34
        %v1603 = vpop.permute.xlu0 %1602
        %1604 = vrot.lane.b32.xlu0 %v1513, 34
        %v1605 = vpop.permute.xlu0 %1604
        %1606 = vrot.lane.b32.xlu0 %v1508, 34
        %v1607 = vpop.permute.xlu0 %1606
        %1608 = vrot.lane.b32.xlu0 %v1510, 34
        %v1609 = vpop.permute.xlu0 %1608
        %1610 = vrot.lane.b32.xlu0 %v1512, 34
        %v1611 = vpop.permute.xlu0 %1610
        %1612 = vrot.lane.b32.xlu0 %v1514, 34
        %v1613 = vpop.permute.xlu0 %1612
        %vm1614 = vcmp.lt.s32.totalorder %v340, 34
        %v1615 = vsel %vm1614, %v1599, %v1607
        %v1616 = vsel %vm1614, %v1601, %v1609
        %v1617 = vsel %vm1614, %v1603, %v1611
        %v1618 = vsel %vm1614, %v1605, %v1613
        %v1619 = vsel %vm1614, %v1607, %v1599
        %v1620 = vsel %vm1614, %v1609, %v1601
        %v1621 = vsel %vm1614, %v1611, %v1603
        %v1622 = vsel %vm1614, %v1613, %v1605
        %s1623 = scalar_lea.vmem %s3, 18
        %v1624 = vld [vmem:[%s1623] sm:$0x3]
        %v1626 = vperm.slane %v1624, 0
        %v1627 = vperm.slane %v1624, 1
        %v1630 = vmul.f32 %v1619, %v1626
        %v1631 = vmul.f32 %v1615, %v1627
        %v1632 = vmul.f32 %v1620, %v1626
        %v1633 = vmul.f32 %v1616, %v1627
        %v1634 = vmul.f32 %v1621, %v1626
        %v1635 = vmul.f32 %v1617, %v1627
        %v1636 = vmul.f32 %v1622, %v1626
        %v1637 = vmul.f32 %v1618, %v1627
        %v1638 = vld [vmem:[#allocation3] sm:$0xff]
        %v1639 = vld [vmem:[#allocation3 + $0x8] sm:$0xff]
        %v1640 = vld [vmem:[#allocation3 + $0x10] sm:$0xff]
        %v1641 = vld [vmem:[#allocation3 + $0x18] sm:$0xff]
        %v1642 = vld [vmem:[#allocation3 + $0x20] sm:$0xff]
        %v1643 = vld [vmem:[#allocation3 + $0x28] sm:$0xff]
        %v1644 = vld [vmem:[#allocation3 + $0x30] sm:$0xff]
        %v1645 = vld [vmem:[#allocation3 + $0x38] sm:$0xff]
        %s1646 = scalar_lea.vmem [#allocation4], 288
        %v1647 = vld [vmem:[%s1646] sm:$0xff]
        %v1648 = vld [vmem:[%s1646 + $0x8] sm:$0xff]
        %v1649 = vld [vmem:[%s1646 + $0x10] sm:$0xff]
        %v1650 = vld [vmem:[%s1646 + $0x18] sm:$0xff]
        %v1652 = vsel %vm244, %v1647, 0
        %v1655 = vsel %vm244, %v1648, 0
        %v1658 = vsel %vm244, %v1649, 0
        %v1661 = vsel %vm244, %v1650, 0
        %1663 = vmatpush.msra.mxu0 0.0
        %1664 = vmatpush.msra.mxu0 0.0
        %1665 = vmatpush.msra.mxu0 0.0
        %1666 = vmatpush.msra.mxu0 0.0
        %1667 = vmatpush.msra.mxu0 0.0
        %1668 = vmatpush.msra.mxu0 0.0
        %1669 = vmatpush.msra.mxu0 0.0
        %1670 = vmatpush.msra.mxu0 0.0
        %1671 = vmatpush.msra.mxu0 0.0
        %1672 = vmatpush.msra.mxu0 0.0
        %1673 = vmatpush.msra.mxu0 0.0
        %1674 = vmatpush.msra.mxu0 0.0
        %1675 = vmatpush.msra.mxu0 %v1636
        %1676 = vmatpush.msra.mxu0 %v1634
        %1677 = vmatpush.msra.mxu0 %v1632
        %1678 = vmatpush.msra.mxu0 %v1630
        %1679 = vmatmul.f32.gmra.mxu0 %v1652
        %v1680 = vpop.f32.mrf.mxu0
        %v1681 = vadd.f32 0.0, %v1680
        %1682 = vmatmul.f32.gmra.mxu0 %v1655
        %v1683 = vpop.f32.mrf.mxu0
        %v1684 = vadd.f32 0.0, %v1683
        %1685 = vmatmul.f32.gmra.mxu0 %v1658
        %v1686 = vpop.f32.mrf.mxu0
        %v1687 = vadd.f32 0.0, %v1686
        %1688 = vmatmul.f32.gmra.mxu0 %v1661
        %v1689 = vpop.f32.mrf.mxu0
        %v1690 = vadd.f32 0.0, %v1689
        %1691 = vdwg.mxu0
        %1692 = vmatpush.msra.mxu0 0.0
        %1693 = vmatpush.msra.mxu0 0.0
        %1694 = vmatpush.msra.mxu0 0.0
        %1695 = vmatpush.msra.mxu0 0.0
        %1696 = vmatpush.msra.mxu0 0.0
        %1697 = vmatpush.msra.mxu0 0.0
        %1698 = vmatpush.msra.mxu0 0.0
        %1699 = vmatpush.msra.mxu0 0.0
        %1700 = vmatpush.msra.mxu0 0.0
        %1701 = vmatpush.msra.mxu0 0.0
        %1702 = vmatpush.msra.mxu0 0.0
        %1703 = vmatpush.msra.mxu0 0.0
        %1704 = vmatpush.msra.mxu0 %v1637
        %1705 = vmatpush.msra.mxu0 %v1635
        %1706 = vmatpush.msra.mxu0 %v1633
        %1707 = vmatpush.msra.mxu0 %v1631
        %1708 = vmatmul.f32.gmra.mxu0 %v1652
        %v1709 = vpop.f32.mrf.mxu0
        %v1710 = vadd.f32 0.0, %v1709
        %1711 = vmatmul.f32.gmra.mxu0 %v1655
        %v1712 = vpop.f32.mrf.mxu0
        %v1713 = vadd.f32 0.0, %v1712
        %1714 = vmatmul.f32.gmra.mxu0 %v1658
        %v1715 = vpop.f32.mrf.mxu0
        %v1716 = vadd.f32 0.0, %v1715
        %1717 = vmatmul.f32.gmra.mxu0 %v1661
        %v1718 = vpop.f32.mrf.mxu0
        %v1719 = vadd.f32 0.0, %v1718
        %1720 = vdwg.mxu0
        %v1721 = vadd.f32 %v1638, %v1681
        %v1722 = vadd.f32 %v1639, %v1710
        %v1723 = vadd.f32 %v1640, %v1684
        %v1724 = vadd.f32 %v1641, %v1713
        %v1725 = vadd.f32 %v1642, %v1687
        %v1726 = vadd.f32 %v1643, %v1716
        %v1727 = vadd.f32 %v1644, %v1690
        %v1728 = vadd.f32 %v1645, %v1719
        %1729 = vst [vmem:[#allocation3] sm:$0xff] %v1721
        %1730 = vst [vmem:[#allocation3 + $0x8] sm:$0xff] %v1722
        %1731 = vst [vmem:[#allocation3 + $0x10] sm:$0xff] %v1723
        %1732 = vst [vmem:[#allocation3 + $0x18] sm:$0xff] %v1724
        %1733 = vst [vmem:[#allocation3 + $0x20] sm:$0xff] %v1725
        %1734 = vst [vmem:[#allocation3 + $0x28] sm:$0xff] %v1726
        %1735 = vst [vmem:[#allocation3 + $0x30] sm:$0xff] %v1727
        %1736 = vst [vmem:[#allocation3 + $0x38] sm:$0xff] %v1728
        %1737 = vrot.lane.b32.xlu0 %v1507, 32
        %v1738 = vpop.permute.xlu0 %1737
        %1739 = vrot.lane.b32.xlu0 %v1509, 32
        %v1740 = vpop.permute.xlu0 %1739
        %1741 = vrot.lane.b32.xlu0 %v1511, 32
        %v1742 = vpop.permute.xlu0 %1741
        %1743 = vrot.lane.b32.xlu0 %v1513, 32
        %v1744 = vpop.permute.xlu0 %1743
        %1745 = vrot.lane.b32.xlu0 %v1508, 32
        %v1746 = vpop.permute.xlu0 %1745
        %1747 = vrot.lane.b32.xlu0 %v1510, 32
        %v1748 = vpop.permute.xlu0 %1747
        %1749 = vrot.lane.b32.xlu0 %v1512, 32
        %v1750 = vpop.permute.xlu0 %1749
        %1751 = vrot.lane.b32.xlu0 %v1514, 32
        %v1752 = vpop.permute.xlu0 %1751
        %vm1753 = vcmp.lt.s32.totalorder %v340, 32
        %v1754 = vsel %vm1753, %v1738, %v1746
        %v1755 = vsel %vm1753, %v1740, %v1748
        %v1756 = vsel %vm1753, %v1742, %v1750
        %v1757 = vsel %vm1753, %v1744, %v1752
        %v1758 = vsel %vm1753, %v1746, %v1738
        %v1759 = vsel %vm1753, %v1748, %v1740
        %v1760 = vsel %vm1753, %v1750, %v1742
        %v1761 = vsel %vm1753, %v1752, %v1744
        %s1762 = scalar_lea.vmem %s3, 20
        %v1763 = vld [vmem:[%s1762] sm:$0x3]
        %v1765 = vperm.slane %v1763, 0
        %v1766 = vperm.slane %v1763, 1
        %v1769 = vmul.f32 %v1758, %v1765
        %v1770 = vmul.f32 %v1754, %v1766
        %v1771 = vmul.f32 %v1759, %v1765
        %v1772 = vmul.f32 %v1755, %v1766
        %v1773 = vmul.f32 %v1760, %v1765
        %v1774 = vmul.f32 %v1756, %v1766
        %v1775 = vmul.f32 %v1761, %v1765
        %v1776 = vmul.f32 %v1757, %v1766
        %v1777 = vld [vmem:[#allocation3] sm:$0xff]
        %v1778 = vld [vmem:[#allocation3 + $0x8] sm:$0xff]
        %v1779 = vld [vmem:[#allocation3 + $0x10] sm:$0xff]
        %v1780 = vld [vmem:[#allocation3 + $0x18] sm:$0xff]
        %v1781 = vld [vmem:[#allocation3 + $0x20] sm:$0xff]
        %v1782 = vld [vmem:[#allocation3 + $0x28] sm:$0xff]
        %v1783 = vld [vmem:[#allocation3 + $0x30] sm:$0xff]
        %v1784 = vld [vmem:[#allocation3 + $0x38] sm:$0xff]
        %s1785 = scalar_lea.vmem [#allocation4], 320
        %v1786 = vld [vmem:[%s1785] sm:$0xff]
        %v1787 = vld [vmem:[%s1785 + $0x8] sm:$0xff]
        %v1788 = vld [vmem:[%s1785 + $0x10] sm:$0xff]
        %v1789 = vld [vmem:[%s1785 + $0x18] sm:$0xff]
        %v1791 = vsel %vm244, %v1786, 0
        %v1794 = vsel %vm244, %v1787, 0
        %v1797 = vsel %vm244, %v1788, 0
        %v1800 = vsel %vm244, %v1789, 0
        %1802 = vmatpush.msra.mxu0 0.0
        %1803 = vmatpush.msra.mxu0 0.0
        %1804 = vmatpush.msra.mxu0 0.0
        %1805 = vmatpush.msra.mxu0 0.0
        %1806 = vmatpush.msra.mxu0 0.0
        %1807 = vmatpush.msra.mxu0 0.0
        %1808 = vmatpush.msra.mxu0 0.0
        %1809 = vmatpush.msra.mxu0 0.0
        %1810 = vmatpush.msra.mxu0 0.0
        %1811 = vmatpush.msra.mxu0 0.0
        %1812 = vmatpush.msra.mxu0 0.0
        %1813 = vmatpush.msra.mxu0 0.0
        %1814 = vmatpush.msra.mxu0 %v1775
        %1815 = vmatpush.msra.mxu0 %v1773
        %1816 = vmatpush.msra.mxu0 %v1771
        %1817 = vmatpush.msra.mxu0 %v1769
        %1818 = vmatmul.f32.gmra.mxu0 %v1791
        %v1819 = vpop.f32.mrf.mxu0
        %v1820 = vadd.f32 0.0, %v1819
        %1821 = vmatmul.f32.gmra.mxu0 %v1794
        %v1822 = vpop.f32.mrf.mxu0
        %v1823 = vadd.f32 0.0, %v1822
        %1824 = vmatmul.f32.gmra.mxu0 %v1797
        %v1825 = vpop.f32.mrf.mxu0
        %v1826 = vadd.f32 0.0, %v1825
        %1827 = vmatmul.f32.gmra.mxu0 %v1800
        %v1828 = vpop.f32.mrf.mxu0
        %v1829 = vadd.f32 0.0, %v1828
        %1830 = vdwg.mxu0
        %1831 = vmatpush.msra.mxu0 0.0
        %1832 = vmatpush.msra.mxu0 0.0
        %1833 = vmatpush.msra.mxu0 0.0
        %1834 = vmatpush.msra.mxu0 0.0
        %1835 = vmatpush.msra.mxu0 0.0
        %1836 = vmatpush.msra.mxu0 0.0
        %1837 = vmatpush.msra.mxu0 0.0
        %1838 = vmatpush.msra.mxu0 0.0
        %1839 = vmatpush.msra.mxu0 0.0
        %1840 = vmatpush.msra.mxu0 0.0
        %1841 = vmatpush.msra.mxu0 0.0
        %1842 = vmatpush.msra.mxu0 0.0
        %1843 = vmatpush.msra.mxu0 %v1776
        %1844 = vmatpush.msra.mxu0 %v1774
        %1845 = vmatpush.msra.mxu0 %v1772
        %1846 = vmatpush.msra.mxu0 %v1770
        %1847 = vmatmul.f32.gmra.mxu0 %v1791
        %v1848 = vpop.f32.mrf.mxu0
        %v1849 = vadd.f32 0.0, %v1848
        %1850 = vmatmul.f32.gmra.mxu0 %v1794
        %v1851 = vpop.f32.mrf.mxu0
        %v1852 = vadd.f32 0.0, %v1851
        %1853 = vmatmul.f32.gmra.mxu0 %v1797
        %v1854 = vpop.f32.mrf.mxu0
        %v1855 = vadd.f32 0.0, %v1854
        %1856 = vmatmul.f32.gmra.mxu0 %v1800
        %v1857 = vpop.f32.mrf.mxu0
        %v1858 = vadd.f32 0.0, %v1857
        %1859 = vdwg.mxu0
        %v1860 = vadd.f32 %v1777, %v1820
        %v1861 = vadd.f32 %v1778, %v1849
        %v1862 = vadd.f32 %v1779, %v1823
        %v1863 = vadd.f32 %v1780, %v1852
        %v1864 = vadd.f32 %v1781, %v1826
        %v1865 = vadd.f32 %v1782, %v1855
        %v1866 = vadd.f32 %v1783, %v1829
        %v1867 = vadd.f32 %v1784, %v1858
        %1868 = vst [vmem:[#allocation3] sm:$0xff] %v1860
        %1869 = vst [vmem:[#allocation3 + $0x8] sm:$0xff] %v1861
        %1870 = vst [vmem:[#allocation3 + $0x10] sm:$0xff] %v1862
        %1871 = vst [vmem:[#allocation3 + $0x18] sm:$0xff] %v1863
        %1872 = vst [vmem:[#allocation3 + $0x20] sm:$0xff] %v1864
        %1873 = vst [vmem:[#allocation3 + $0x28] sm:$0xff] %v1865
        %1874 = vst [vmem:[#allocation3 + $0x30] sm:$0xff] %v1866
        %1875 = vst [vmem:[#allocation3 + $0x38] sm:$0xff] %v1867
        %1876 = vrot.lane.b32.xlu0 %v1507, 30
        %v1877 = vpop.permute.xlu0 %1876
        %1878 = vrot.lane.b32.xlu0 %v1509, 30
        %v1879 = vpop.permute.xlu0 %1878
        %1880 = vrot.lane.b32.xlu0 %v1511, 30
        %v1881 = vpop.permute.xlu0 %1880
        %1882 = vrot.lane.b32.xlu0 %v1513, 30
        %v1883 = vpop.permute.xlu0 %1882
        %1884 = vrot.lane.b32.xlu0 %v1508, 30
        %v1885 = vpop.permute.xlu0 %1884
        %1886 = vrot.lane.b32.xlu0 %v1510, 30
        %v1887 = vpop.permute.xlu0 %1886
        %1888 = vrot.lane.b32.xlu0 %v1512, 30
        %v1889 = vpop.permute.xlu0 %1888
        %1890 = vrot.lane.b32.xlu0 %v1514, 30
        %v1891 = vpop.permute.xlu0 %1890
        %vm1892 = vcmp.lt.s32.totalorder %v340, 30
        %v1893 = vsel %vm1892, %v1877, %v1885
        %v1894 = vsel %vm1892, %v1879, %v1887
        %v1895 = vsel %vm1892, %v1881, %v1889
        %v1896 = vsel %vm1892, %v1883, %v1891
        %v1897 = vsel %vm1892, %v1885, %v1877
        %v1898 = vsel %vm1892, %v1887, %v1879
        %v1899 = vsel %vm1892, %v1889, %v1881
        %v1900 = vsel %vm1892, %v1891, %v1883
        %s1901 = scalar_lea.vmem %s3, 22
        %v1902 = vld [vmem:[%s1901] sm:$0x3]
        %v1904 = vperm.slane %v1902, 0
        %v1905 = vperm.slane %v1902, 1
        %v1908 = vmul.f32 %v1897, %v1904
        %v1909 = vmul.f32 %v1893, %v1905
        %v1910 = vmul.f32 %v1898, %v1904
        %v1911 = vmul.f32 %v1894, %v1905
        %v1912 = vmul.f32 %v1899, %v1904
        %v1913 = vmul.f32 %v1895, %v1905
        %v1914 = vmul.f32 %v1900, %v1904
        %v1915 = vmul.f32 %v1896, %v1905
        %v1916 = vld [vmem:[#allocation3] sm:$0xff]
        %v1917 = vld [vmem:[#allocation3 + $0x8] sm:$0xff]
        %v1918 = vld [vmem:[#allocation3 + $0x10] sm:$0xff]
        %v1919 = vld [vmem:[#allocation3 + $0x18] sm:$0xff]
        %v1920 = vld [vmem:[#allocation3 + $0x20] sm:$0xff]
        %v1921 = vld [vmem:[#allocation3 + $0x28] sm:$0xff]
        %v1922 = vld [vmem:[#allocation3 + $0x30] sm:$0xff]
        %v1923 = vld [vmem:[#allocation3 + $0x38] sm:$0xff]
        %s1924 = scalar_lea.vmem [#allocation4], 352
        %v1925 = vld [vmem:[%s1924] sm:$0xff]
        %v1926 = vld [vmem:[%s1924 + $0x8] sm:$0xff]
        %v1927 = vld [vmem:[%s1924 + $0x10] sm:$0xff]
        %v1928 = vld [vmem:[%s1924 + $0x18] sm:$0xff]
        %v1930 = vsel %vm244, %v1925, 0
        %v1933 = vsel %vm244, %v1926, 0
        %v1936 = vsel %vm244, %v1927, 0
        %v1939 = vsel %vm244, %v1928, 0
        %1941 = vmatpush.msra.mxu0 0.0
        %1942 = vmatpush.msra.mxu0 0.0
        %1943 = vmatpush.msra.mxu0 0.0
        %1944 = vmatpush.msra.mxu0 0.0
        %1945 = vmatpush.msra.mxu0 0.0
        %1946 = vmatpush.msra.mxu0 0.0
        %1947 = vmatpush.msra.mxu0 0.0
        %1948 = vmatpush.msra.mxu0 0.0
        %1949 = vmatpush.msra.mxu0 0.0
        %1950 = vmatpush.msra.mxu0 0.0
        %1951 = vmatpush.msra.mxu0 0.0
        %1952 = vmatpush.msra.mxu0 0.0
        %1953 = vmatpush.msra.mxu0 %v1914
        %1954 = vmatpush.msra.mxu0 %v1912
        %1955 = vmatpush.msra.mxu0 %v1910
        %1956 = vmatpush.msra.mxu0 %v1908
        %1957 = vmatmul.f32.gmra.mxu0 %v1930
        %v1958 = vpop.f32.mrf.mxu0
        %v1959 = vadd.f32 0.0, %v1958
        %1960 = vmatmul.f32.gmra.mxu0 %v1933
        %v1961 = vpop.f32.mrf.mxu0
        %v1962 = vadd.f32 0.0, %v1961
        %1963 = vmatmul.f32.gmra.mxu0 %v1936
        %v1964 = vpop.f32.mrf.mxu0
        %v1965 = vadd.f32 0.0, %v1964
        %1966 = vmatmul.f32.gmra.mxu0 %v1939
        %v1967 = vpop.f32.mrf.mxu0
        %v1968 = vadd.f32 0.0, %v1967
        %1969 = vdwg.mxu0
        %1970 = vmatpush.msra.mxu0 0.0
        %1971 = vmatpush.msra.mxu0 0.0
        %1972 = vmatpush.msra.mxu0 0.0
        %1973 = vmatpush.msra.mxu0 0.0
        %1974 = vmatpush.msra.mxu0 0.0
        %1975 = vmatpush.msra.mxu0 0.0
        %1976 = vmatpush.msra.mxu0 0.0
        %1977 = vmatpush.msra.mxu0 0.0
        %1978 = vmatpush.msra.mxu0 0.0
        %1979 = vmatpush.msra.mxu0 0.0
        %1980 = vmatpush.msra.mxu0 0.0
        %1981 = vmatpush.msra.mxu0 0.0
        %1982 = vmatpush.msra.mxu0 %v1915
        %1983 = vmatpush.msra.mxu0 %v1913
        %1984 = vmatpush.msra.mxu0 %v1911
        %1985 = vmatpush.msra.mxu0 %v1909
        %1986 = vmatmul.f32.gmra.mxu0 %v1930
        %v1987 = vpop.f32.mrf.mxu0
        %v1988 = vadd.f32 0.0, %v1987
        %1989 = vmatmul.f32.gmra.mxu0 %v1933
        %v1990 = vpop.f32.mrf.mxu0
        %v1991 = vadd.f32 0.0, %v1990
        %1992 = vmatmul.f32.gmra.mxu0 %v1936
        %v1993 = vpop.f32.mrf.mxu0
        %v1994 = vadd.f32 0.0, %v1993
        %1995 = vmatmul.f32.gmra.mxu0 %v1939
        %v1996 = vpop.f32.mrf.mxu0
        %v1997 = vadd.f32 0.0, %v1996
        %1998 = vdwg.mxu0
        %v1999 = vadd.f32 %v1916, %v1959
        %v2000 = vadd.f32 %v1917, %v1988
        %v2001 = vadd.f32 %v1918, %v1962
        %v2002 = vadd.f32 %v1919, %v1991
        %v2003 = vadd.f32 %v1920, %v1965
        %v2004 = vadd.f32 %v1921, %v1994
        %v2005 = vadd.f32 %v1922, %v1968
        %v2006 = vadd.f32 %v1923, %v1997
        %2007 = vst [vmem:[#allocation3] sm:$0xff] %v1999
        %2008 = vst [vmem:[#allocation3 + $0x8] sm:$0xff] %v2000
        %2009 = vst [vmem:[#allocation3 + $0x10] sm:$0xff] %v2001
        %2010 = vst [vmem:[#allocation3 + $0x18] sm:$0xff] %v2002
        %2011 = vst [vmem:[#allocation3 + $0x20] sm:$0xff] %v2003
        %2012 = vst [vmem:[#allocation3 + $0x28] sm:$0xff] %v2004
        %2013 = vst [vmem:[#allocation3 + $0x30] sm:$0xff] %v2005
        %2014 = vst [vmem:[#allocation3 + $0x38] sm:$0xff] %v2006
        %2015 = vrot.lane.b32.xlu0 %v1507, 2
        %v2016 = vpop.permute.xlu0 %2015
        %2017 = vrot.lane.b32.xlu0 %v1509, 2
        %v2018 = vpop.permute.xlu0 %2017
        %2019 = vrot.lane.b32.xlu0 %v1511, 2
        %v2020 = vpop.permute.xlu0 %2019
        %2021 = vrot.lane.b32.xlu0 %v1513, 2
        %v2022 = vpop.permute.xlu0 %2021
        %2023 = vrot.lane.b32.xlu0 %v1508, 2
        %v2024 = vpop.permute.xlu0 %2023
        %2025 = vrot.lane.b32.xlu0 %v1510, 2
        %v2026 = vpop.permute.xlu0 %2025
        %2027 = vrot.lane.b32.xlu0 %v1512, 2
        %v2028 = vpop.permute.xlu0 %2027
        %2029 = vrot.lane.b32.xlu0 %v1514, 2
        %v2030 = vpop.permute.xlu0 %2029
        %vm2031 = vcmp.lt.s32.totalorder %v340, 2
        %v2032 = vsel %vm2031, %v2016, %v2024
        %v2033 = vsel %vm2031, %v2018, %v2026
        %v2034 = vsel %vm2031, %v2020, %v2028
        %v2035 = vsel %vm2031, %v2022, %v2030
        %v2036 = vsel %vm2031, %v2024, %v2016
        %v2037 = vsel %vm2031, %v2026, %v2018
        %v2038 = vsel %vm2031, %v2028, %v2020
        %v2039 = vsel %vm2031, %v2030, %v2022
        %s2040 = scalar_lea.vmem %s3, 24
        %v2041 = vld [vmem:[%s2040] sm:$0x3]
        %v2043 = vperm.slane %v2041, 0
        %v2044 = vperm.slane %v2041, 1
        %v2047 = vmul.f32 %v2036, %v2043
        %v2048 = vmul.f32 %v2032, %v2044
        %v2049 = vmul.f32 %v2037, %v2043
        %v2050 = vmul.f32 %v2033, %v2044
        %v2051 = vmul.f32 %v2038, %v2043
        %v2052 = vmul.f32 %v2034, %v2044
        %v2053 = vmul.f32 %v2039, %v2043
        %v2054 = vmul.f32 %v2035, %v2044
        %v2055 = vld [vmem:[#allocation3] sm:$0xff]
        %v2056 = vld [vmem:[#allocation3 + $0x8] sm:$0xff]
        %v2057 = vld [vmem:[#allocation3 + $0x10] sm:$0xff]
        %v2058 = vld [vmem:[#allocation3 + $0x18] sm:$0xff]
        %v2059 = vld [vmem:[#allocation3 + $0x20] sm:$0xff]
        %v2060 = vld [vmem:[#allocation3 + $0x28] sm:$0xff]
        %v2061 = vld [vmem:[#allocation3 + $0x30] sm:$0xff]
        %v2062 = vld [vmem:[#allocation3 + $0x38] sm:$0xff]
        %s2063 = scalar_lea.vmem [#allocation4], 384
        %v2064 = vld [vmem:[%s2063] sm:$0xff]
        %v2065 = vld [vmem:[%s2063 + $0x8] sm:$0xff]
        %v2066 = vld [vmem:[%s2063 + $0x10] sm:$0xff]
        %v2067 = vld [vmem:[%s2063 + $0x18] sm:$0xff]
        %v2069 = vsel %vm244, %v2064, 0
        %v2072 = vsel %vm244, %v2065, 0
        %v2075 = vsel %vm244, %v2066, 0
        %v2078 = vsel %vm244, %v2067, 0
        %2080 = vmatpush.msra.mxu0 0.0
        %2081 = vmatpush.msra.mxu0 0.0
        %2082 = vmatpush.msra.mxu0 0.0
        %2083 = vmatpush.msra.mxu0 0.0
        %2084 = vmatpush.msra.mxu0 0.0
        %2085 = vmatpush.msra.mxu0 0.0
        %2086 = vmatpush.msra.mxu0 0.0
        %2087 = vmatpush.msra.mxu0 0.0
        %2088 = vmatpush.msra.mxu0 0.0
        %2089 = vmatpush.msra.mxu0 0.0
        %2090 = vmatpush.msra.mxu0 0.0
        %2091 = vmatpush.msra.mxu0 0.0
        %2092 = vmatpush.msra.mxu0 %v2053
        %2093 = vmatpush.msra.mxu0 %v2051
        %2094 = vmatpush.msra.mxu0 %v2049
        %2095 = vmatpush.msra.mxu0 %v2047
        %2096 = vmatmul.f32.gmra.mxu0 %v2069
        %v2097 = vpop.f32.mrf.mxu0
        %v2098 = vadd.f32 0.0, %v2097
        %2099 = vmatmul.f32.gmra.mxu0 %v2072
        %v2100 = vpop.f32.mrf.mxu0
        %v2101 = vadd.f32 0.0, %v2100
        %2102 = vmatmul.f32.gmra.mxu0 %v2075
        %v2103 = vpop.f32.mrf.mxu0
        %v2104 = vadd.f32 0.0, %v2103
        %2105 = vmatmul.f32.gmra.mxu0 %v2078
        %v2106 = vpop.f32.mrf.mxu0
        %v2107 = vadd.f32 0.0, %v2106
        %2108 = vdwg.mxu0
        %2109 = vmatpush.msra.mxu0 0.0
        %2110 = vmatpush.msra.mxu0 0.0
        %2111 = vmatpush.msra.mxu0 0.0
        %2112 = vmatpush.msra.mxu0 0.0
        %2113 = vmatpush.msra.mxu0 0.0
        %2114 = vmatpush.msra.mxu0 0.0
        %2115 = vmatpush.msra.mxu0 0.0
        %2116 = vmatpush.msra.mxu0 0.0
        %2117 = vmatpush.msra.mxu0 0.0
        %2118 = vmatpush.msra.mxu0 0.0
        %2119 = vmatpush.msra.mxu0 0.0
        %2120 = vmatpush.msra.mxu0 0.0
        %2121 = vmatpush.msra.mxu0 %v2054
        %2122 = vmatpush.msra.mxu0 %v2052
        %2123 = vmatpush.msra.mxu0 %v2050
        %2124 = vmatpush.msra.mxu0 %v2048
        %2125 = vmatmul.f32.gmra.mxu0 %v2069
        %v2126 = vpop.f32.mrf.mxu0
        %v2127 = vadd.f32 0.0, %v2126
        %2128 = vmatmul.f32.gmra.mxu0 %v2072
        %v2129 = vpop.f32.mrf.mxu0
        %v2130 = vadd.f32 0.0, %v2129
        %2131 = vmatmul.f32.gmra.mxu0 %v2075
        %v2132 = vpop.f32.mrf.mxu0
        %v2133 = vadd.f32 0.0, %v2132
        %2134 = vmatmul.f32.gmra.mxu0 %v2078
        %v2135 = vpop.f32.mrf.mxu0
        %v2136 = vadd.f32 0.0, %v2135
        %2137 = vdwg.mxu0
        %v2138 = vadd.f32 %v2055, %v2098
        %v2139 = vadd.f32 %v2056, %v2127
        %v2140 = vadd.f32 %v2057, %v2101
        %v2141 = vadd.f32 %v2058, %v2130
        %v2142 = vadd.f32 %v2059, %v2104
        %v2143 = vadd.f32 %v2060, %v2133
        %v2144 = vadd.f32 %v2061, %v2107
        %v2145 = vadd.f32 %v2062, %v2136
        %2146 = vst [vmem:[#allocation3] sm:$0xff] %v2138
        %2147 = vst [vmem:[#allocation3 + $0x8] sm:$0xff] %v2139
        %2148 = vst [vmem:[#allocation3 + $0x10] sm:$0xff] %v2140
        %2149 = vst [vmem:[#allocation3 + $0x18] sm:$0xff] %v2141
        %2150 = vst [vmem:[#allocation3 + $0x20] sm:$0xff] %v2142
        %2151 = vst [vmem:[#allocation3 + $0x28] sm:$0xff] %v2143
        %2152 = vst [vmem:[#allocation3 + $0x30] sm:$0xff] %v2144
        %2153 = vst [vmem:[#allocation3 + $0x38] sm:$0xff] %v2145
        %2154 = vrot.lane.b32.xlu0 %v1507, 126
        %v2155 = vpop.permute.xlu0 %2154
        %2156 = vrot.lane.b32.xlu0 %v1509, 126
        %v2157 = vpop.permute.xlu0 %2156
        %2158 = vrot.lane.b32.xlu0 %v1511, 126
        %v2159 = vpop.permute.xlu0 %2158
        %2160 = vrot.lane.b32.xlu0 %v1513, 126
        %v2161 = vpop.permute.xlu0 %2160
        %2162 = vrot.lane.b32.xlu0 %v1508, 126
        %v2163 = vpop.permute.xlu0 %2162
        %2164 = vrot.lane.b32.xlu0 %v1510, 126
        %v2165 = vpop.permute.xlu0 %2164
        %2166 = vrot.lane.b32.xlu0 %v1512, 126
        %v2167 = vpop.permute.xlu0 %2166
        %2168 = vrot.lane.b32.xlu0 %v1514, 126
        %v2169 = vpop.permute.xlu0 %2168
        %vm2170 = vcmp.lt.s32.totalorder %v340, 126
        %v2171 = vsel %vm2170, %v2155, %v2163
        %v2172 = vsel %vm2170, %v2157, %v2165
        %v2173 = vsel %vm2170, %v2159, %v2167
        %v2174 = vsel %vm2170, %v2161, %v2169
        %v2175 = vsel %vm2170, %v2163, %v2155
        %v2176 = vsel %vm2170, %v2165, %v2157
        %v2177 = vsel %vm2170, %v2167, %v2159
        %v2178 = vsel %vm2170, %v2169, %v2161
        %s2179 = scalar_lea.vmem %s3, 28
        %v2180 = vld [vmem:[%s2179] sm:$0x3]
        %v2182 = vperm.slane %v2180, 0
        %v2183 = vperm.slane %v2180, 1
        %v2186 = vmul.f32 %v2171, %v2182
        %v2187 = vmul.f32 %v2175, %v2183
        %v2188 = vmul.f32 %v2172, %v2182
        %v2189 = vmul.f32 %v2176, %v2183
        %v2190 = vmul.f32 %v2173, %v2182
        %v2191 = vmul.f32 %v2177, %v2183
        %v2192 = vmul.f32 %v2174, %v2182
        %v2193 = vmul.f32 %v2178, %v2183
        %v2194 = vld [vmem:[#allocation3] sm:$0xff]
        %v2195 = vld [vmem:[#allocation3 + $0x8] sm:$0xff]
        %v2196 = vld [vmem:[#allocation3 + $0x10] sm:$0xff]
        %v2197 = vld [vmem:[#allocation3 + $0x18] sm:$0xff]
        %v2198 = vld [vmem:[#allocation3 + $0x20] sm:$0xff]
        %v2199 = vld [vmem:[#allocation3 + $0x28] sm:$0xff]
        %v2200 = vld [vmem:[#allocation3 + $0x30] sm:$0xff]
        %v2201 = vld [vmem:[#allocation3 + $0x38] sm:$0xff]
        %s2202 = scalar_lea.vmem [#allocation4], 448
        %v2203 = vld [vmem:[%s2202] sm:$0xff]
        %v2204 = vld [vmem:[%s2202 + $0x8] sm:$0xff]
        %v2205 = vld [vmem:[%s2202 + $0x10] sm:$0xff]
        %v2206 = vld [vmem:[%s2202 + $0x18] sm:$0xff]
        %v2208 = vsel %vm244, %v2203, 0
        %v2211 = vsel %vm244, %v2204, 0
        %v2214 = vsel %vm244, %v2205, 0
        %v2217 = vsel %vm244, %v2206, 0
        %2219 = vmatpush.msra.mxu0 0.0
        %2220 = vmatpush.msra.mxu0 0.0
        %2221 = vmatpush.msra.mxu0 0.0
        %2222 = vmatpush.msra.mxu0 0.0
        %2223 = vmatpush.msra.mxu0 0.0
        %2224 = vmatpush.msra.mxu0 0.0
        %2225 = vmatpush.msra.mxu0 0.0
        %2226 = vmatpush.msra.mxu0 0.0
        %2227 = vmatpush.msra.mxu0 0.0
        %2228 = vmatpush.msra.mxu0 0.0
        %2229 = vmatpush.msra.mxu0 0.0
        %2230 = vmatpush.msra.mxu0 0.0
        %2231 = vmatpush.msra.mxu0 %v2192
        %2232 = vmatpush.msra.mxu0 %v2190
        %2233 = vmatpush.msra.mxu0 %v2188
        %2234 = vmatpush.msra.mxu0 %v2186
        %2235 = vmatmul.f32.gmra.mxu0 %v2208
        %v2236 = vpop.f32.mrf.mxu0
        %v2237 = vadd.f32 0.0, %v2236
        %2238 = vmatmul.f32.gmra.mxu0 %v2211
        %v2239 = vpop.f32.mrf.mxu0
        %v2240 = vadd.f32 0.0, %v2239
        %2241 = vmatmul.f32.gmra.mxu0 %v2214
        %v2242 = vpop.f32.mrf.mxu0
        %v2243 = vadd.f32 0.0, %v2242
        %2244 = vmatmul.f32.gmra.mxu0 %v2217
        %v2245 = vpop.f32.mrf.mxu0
        %v2246 = vadd.f32 0.0, %v2245
        %2247 = vdwg.mxu0
        %2248 = vmatpush.msra.mxu0 0.0
        %2249 = vmatpush.msra.mxu0 0.0
        %2250 = vmatpush.msra.mxu0 0.0
        %2251 = vmatpush.msra.mxu0 0.0
        %2252 = vmatpush.msra.mxu0 0.0
        %2253 = vmatpush.msra.mxu0 0.0
        %2254 = vmatpush.msra.mxu0 0.0
        %2255 = vmatpush.msra.mxu0 0.0
        %2256 = vmatpush.msra.mxu0 0.0
        %2257 = vmatpush.msra.mxu0 0.0
        %2258 = vmatpush.msra.mxu0 0.0
        %2259 = vmatpush.msra.mxu0 0.0
        %2260 = vmatpush.msra.mxu0 %v2193
        %2261 = vmatpush.msra.mxu0 %v2191
        %2262 = vmatpush.msra.mxu0 %v2189
        %2263 = vmatpush.msra.mxu0 %v2187
        %2264 = vmatmul.f32.gmra.mxu0 %v2208
        %v2265 = vpop.f32.mrf.mxu0
        %v2266 = vadd.f32 0.0, %v2265
        %2267 = vmatmul.f32.gmra.mxu0 %v2211
        %v2268 = vpop.f32.mrf.mxu0
        %v2269 = vadd.f32 0.0, %v2268
        %2270 = vmatmul.f32.gmra.mxu0 %v2214
        %v2271 = vpop.f32.mrf.mxu0
        %v2272 = vadd.f32 0.0, %v2271
        %2273 = vmatmul.f32.gmra.mxu0 %v2217
        %v2274 = vpop.f32.mrf.mxu0
        %v2275 = vadd.f32 0.0, %v2274
        %2276 = vdwg.mxu0
        %v2277 = vadd.f32 %v2194, %v2237
        %v2278 = vadd.f32 %v2195, %v2266
        %v2279 = vadd.f32 %v2196, %v2240
        %v2280 = vadd.f32 %v2197, %v2269
        %v2281 = vadd.f32 %v2198, %v2243
        %v2282 = vadd.f32 %v2199, %v2272
        %v2283 = vadd.f32 %v2200, %v2246
        %v2284 = vadd.f32 %v2201, %v2275
        %2285 = vst [vmem:[#allocation3] sm:$0xff] %v2277
        %2286 = vst [vmem:[#allocation3 + $0x8] sm:$0xff] %v2278
        %2287 = vst [vmem:[#allocation3 + $0x10] sm:$0xff] %v2279
        %2288 = vst [vmem:[#allocation3 + $0x18] sm:$0xff] %v2280
        %2289 = vst [vmem:[#allocation3 + $0x20] sm:$0xff] %v2281
        %2290 = vst [vmem:[#allocation3 + $0x28] sm:$0xff] %v2282
        %2291 = vst [vmem:[#allocation3 + $0x30] sm:$0xff] %v2283
        %2292 = vst [vmem:[#allocation3 + $0x38] sm:$0xff] %v2284
        %2293 = vrot.lane.b32.xlu0 %v1507, 98
        %v2294 = vpop.permute.xlu0 %2293
        %2295 = vrot.lane.b32.xlu0 %v1509, 98
        %v2296 = vpop.permute.xlu0 %2295
        %2297 = vrot.lane.b32.xlu0 %v1511, 98
        %v2298 = vpop.permute.xlu0 %2297
        %2299 = vrot.lane.b32.xlu0 %v1513, 98
        %v2300 = vpop.permute.xlu0 %2299
        %2301 = vrot.lane.b32.xlu0 %v1508, 98
        %v2302 = vpop.permute.xlu0 %2301
        %2303 = vrot.lane.b32.xlu0 %v1510, 98
        %v2304 = vpop.permute.xlu0 %2303
        %2305 = vrot.lane.b32.xlu0 %v1512, 98
        %v2306 = vpop.permute.xlu0 %2305
        %2307 = vrot.lane.b32.xlu0 %v1514, 98
        %v2308 = vpop.permute.xlu0 %2307
        %vm2309 = vcmp.lt.s32.totalorder %v340, 98
        %v2310 = vsel %vm2309, %v2294, %v2302
        %v2311 = vsel %vm2309, %v2296, %v2304
        %v2312 = vsel %vm2309, %v2298, %v2306
        %v2313 = vsel %vm2309, %v2300, %v2308
        %v2314 = vsel %vm2309, %v2302, %v2294
        %v2315 = vsel %vm2309, %v2304, %v2296
        %v2316 = vsel %vm2309, %v2306, %v2298
        %v2317 = vsel %vm2309, %v2308, %v2300
        %s2318 = scalar_lea.vmem %s3, 30
        %v2319 = vld [vmem:[%s2318] sm:$0x3]
        %v2321 = vperm.slane %v2319, 0
        %v2322 = vperm.slane %v2319, 1
        %v2325 = vmul.f32 %v2310, %v2321
        %v2326 = vmul.f32 %v2314, %v2322
        %v2327 = vmul.f32 %v2311, %v2321
        %v2328 = vmul.f32 %v2315, %v2322
        %v2329 = vmul.f32 %v2312, %v2321
        %v2330 = vmul.f32 %v2316, %v2322
        %v2331 = vmul.f32 %v2313, %v2321
        %v2332 = vmul.f32 %v2317, %v2322
        %v2333 = vld [vmem:[#allocation3] sm:$0xff]
        %v2334 = vld [vmem:[#allocation3 + $0x8] sm:$0xff]
        %v2335 = vld [vmem:[#allocation3 + $0x10] sm:$0xff]
        %v2336 = vld [vmem:[#allocation3 + $0x18] sm:$0xff]
        %v2337 = vld [vmem:[#allocation3 + $0x20] sm:$0xff]
        %v2338 = vld [vmem:[#allocation3 + $0x28] sm:$0xff]
        %v2339 = vld [vmem:[#allocation3 + $0x30] sm:$0xff]
        %v2340 = vld [vmem:[#allocation3 + $0x38] sm:$0xff]
        %s2341 = scalar_lea.vmem [#allocation4], 480
        %v2342 = vld [vmem:[%s2341] sm:$0xff]
        %v2343 = vld [vmem:[%s2341 + $0x8] sm:$0xff]
        %v2344 = vld [vmem:[%s2341 + $0x10] sm:$0xff]
        %v2345 = vld [vmem:[%s2341 + $0x18] sm:$0xff]
        %v2347 = vsel %vm244, %v2342, 0
        %v2350 = vsel %vm244, %v2343, 0
        %v2353 = vsel %vm244, %v2344, 0
        %v2356 = vsel %vm244, %v2345, 0
        %2358 = vmatpush.msra.mxu0 0.0
        %2359 = vmatpush.msra.mxu0 0.0
        %2360 = vmatpush.msra.mxu0 0.0
        %2361 = vmatpush.msra.mxu0 0.0
        %2362 = vmatpush.msra.mxu0 0.0
        %2363 = vmatpush.msra.mxu0 0.0
        %2364 = vmatpush.msra.mxu0 0.0
        %2365 = vmatpush.msra.mxu0 0.0
        %2366 = vmatpush.msra.mxu0 0.0
        %2367 = vmatpush.msra.mxu0 0.0
        %2368 = vmatpush.msra.mxu0 0.0
        %2369 = vmatpush.msra.mxu0 0.0
        %2370 = vmatpush.msra.mxu0 %v2331
        %2371 = vmatpush.msra.mxu0 %v2329
        %2372 = vmatpush.msra.mxu0 %v2327
        %2373 = vmatpush.msra.mxu0 %v2325
        %2374 = vmatmul.f32.gmra.mxu0 %v2347
        %v2375 = vpop.f32.mrf.mxu0
        %v2376 = vadd.f32 0.0, %v2375
        %2377 = vmatmul.f32.gmra.mxu0 %v2350
        %v2378 = vpop.f32.mrf.mxu0
        %v2379 = vadd.f32 0.0, %v2378
        %2380 = vmatmul.f32.gmra.mxu0 %v2353
        %v2381 = vpop.f32.mrf.mxu0
        %v2382 = vadd.f32 0.0, %v2381
        %2383 = vmatmul.f32.gmra.mxu0 %v2356
        %v2384 = vpop.f32.mrf.mxu0
        %v2385 = vadd.f32 0.0, %v2384
        %2386 = vdwg.mxu0
        %2387 = vmatpush.msra.mxu0 0.0
        %2388 = vmatpush.msra.mxu0 0.0
        %2389 = vmatpush.msra.mxu0 0.0
        %2390 = vmatpush.msra.mxu0 0.0
        %2391 = vmatpush.msra.mxu0 0.0
        %2392 = vmatpush.msra.mxu0 0.0
        %2393 = vmatpush.msra.mxu0 0.0
        %2394 = vmatpush.msra.mxu0 0.0
        %2395 = vmatpush.msra.mxu0 0.0
        %2396 = vmatpush.msra.mxu0 0.0
        %2397 = vmatpush.msra.mxu0 0.0
        %2398 = vmatpush.msra.mxu0 0.0
        %2399 = vmatpush.msra.mxu0 %v2332
        %2400 = vmatpush.msra.mxu0 %v2330
        %2401 = vmatpush.msra.mxu0 %v2328
        %2402 = vmatpush.msra.mxu0 %v2326
        %2403 = vmatmul.f32.gmra.mxu0 %v2347
        %v2404 = vpop.f32.mrf.mxu0
        %v2405 = vadd.f32 0.0, %v2404
        %2406 = vmatmul.f32.gmra.mxu0 %v2350
        %v2407 = vpop.f32.mrf.mxu0
        %v2408 = vadd.f32 0.0, %v2407
        %2409 = vmatmul.f32.gmra.mxu0 %v2353
        %v2410 = vpop.f32.mrf.mxu0
        %v2411 = vadd.f32 0.0, %v2410
        %2412 = vmatmul.f32.gmra.mxu0 %v2356
        %v2413 = vpop.f32.mrf.mxu0
        %v2414 = vadd.f32 0.0, %v2413
        %2415 = vdwg.mxu0
        %v2416 = vadd.f32 %v2333, %v2376
        %v2417 = vadd.f32 %v2334, %v2405
        %v2418 = vadd.f32 %v2335, %v2379
        %v2419 = vadd.f32 %v2336, %v2408
        %v2420 = vadd.f32 %v2337, %v2382
        %v2421 = vadd.f32 %v2338, %v2411
        %v2422 = vadd.f32 %v2339, %v2385
        %v2423 = vadd.f32 %v2340, %v2414
        %2424 = vst [vmem:[#allocation3] sm:$0xff] %v2416
        %2425 = vst [vmem:[#allocation3 + $0x8] sm:$0xff] %v2417
        %2426 = vst [vmem:[#allocation3 + $0x10] sm:$0xff] %v2418
        %2427 = vst [vmem:[#allocation3 + $0x18] sm:$0xff] %v2419
        %2428 = vst [vmem:[#allocation3 + $0x20] sm:$0xff] %v2420
        %2429 = vst [vmem:[#allocation3 + $0x28] sm:$0xff] %v2421
        %2430 = vst [vmem:[#allocation3 + $0x30] sm:$0xff] %v2422
        %2431 = vst [vmem:[#allocation3 + $0x38] sm:$0xff] %v2423
        %2432 = vrot.lane.b32.xlu0 %v1507, 96
        %v2433 = vpop.permute.xlu0 %2432
        %2434 = vrot.lane.b32.xlu0 %v1509, 96
        %v2435 = vpop.permute.xlu0 %2434
        %2436 = vrot.lane.b32.xlu0 %v1511, 96
        %v2437 = vpop.permute.xlu0 %2436
        %2438 = vrot.lane.b32.xlu0 %v1513, 96
        %v2439 = vpop.permute.xlu0 %2438
        %2440 = vrot.lane.b32.xlu0 %v1508, 96
        %v2441 = vpop.permute.xlu0 %2440
        %2442 = vrot.lane.b32.xlu0 %v1510, 96
        %v2443 = vpop.permute.xlu0 %2442
        %2444 = vrot.lane.b32.xlu0 %v1512, 96
        %v2445 = vpop.permute.xlu0 %2444
        %2446 = vrot.lane.b32.xlu0 %v1514, 96
        %v2447 = vpop.permute.xlu0 %2446
        %vm2448 = vcmp.lt.s32.totalorder %v340, 96
        %v2449 = vsel %vm2448, %v2433, %v2441
        %v2450 = vsel %vm2448, %v2435, %v2443
        %v2451 = vsel %vm2448, %v2437, %v2445
        %v2452 = vsel %vm2448, %v2439, %v2447
        %v2453 = vsel %vm2448, %v2441, %v2433
        %v2454 = vsel %vm2448, %v2443, %v2435
        %v2455 = vsel %vm2448, %v2445, %v2437
        %v2456 = vsel %vm2448, %v2447, %v2439
        %s2457 = scalar_lea.vmem %s3, 32
        %v2458 = vld [vmem:[%s2457] sm:$0x3]
        %v2460 = vperm.slane %v2458, 0
        %v2461 = vperm.slane %v2458, 1
        %v2464 = vmul.f32 %v2449, %v2460
        %v2465 = vmul.f32 %v2453, %v2461
        %v2466 = vmul.f32 %v2450, %v2460
        %v2467 = vmul.f32 %v2454, %v2461
        %v2468 = vmul.f32 %v2451, %v2460
        %v2469 = vmul.f32 %v2455, %v2461
        %v2470 = vmul.f32 %v2452, %v2460
        %v2471 = vmul.f32 %v2456, %v2461
        %v2472 = vld [vmem:[#allocation3] sm:$0xff]
        %v2473 = vld [vmem:[#allocation3 + $0x8] sm:$0xff]
        %v2474 = vld [vmem:[#allocation3 + $0x10] sm:$0xff]
        %v2475 = vld [vmem:[#allocation3 + $0x18] sm:$0xff]
        %v2476 = vld [vmem:[#allocation3 + $0x20] sm:$0xff]
        %v2477 = vld [vmem:[#allocation3 + $0x28] sm:$0xff]
        %v2478 = vld [vmem:[#allocation3 + $0x30] sm:$0xff]
        %v2479 = vld [vmem:[#allocation3 + $0x38] sm:$0xff]
        %s2480 = scalar_lea.vmem [#allocation4], 512
        %v2481 = vld [vmem:[%s2480] sm:$0xff]
        %v2482 = vld [vmem:[%s2480 + $0x8] sm:$0xff]
        %v2483 = vld [vmem:[%s2480 + $0x10] sm:$0xff]
        %v2484 = vld [vmem:[%s2480 + $0x18] sm:$0xff]
        %v2486 = vsel %vm244, %v2481, 0
        %v2489 = vsel %vm244, %v2482, 0
        %v2492 = vsel %vm244, %v2483, 0
        %v2495 = vsel %vm244, %v2484, 0
        %2497 = vmatpush.msra.mxu0 0.0
        %2498 = vmatpush.msra.mxu0 0.0
        %2499 = vmatpush.msra.mxu0 0.0
        %2500 = vmatpush.msra.mxu0 0.0
        %2501 = vmatpush.msra.mxu0 0.0
        %2502 = vmatpush.msra.mxu0 0.0
        %2503 = vmatpush.msra.mxu0 0.0
        %2504 = vmatpush.msra.mxu0 0.0
        %2505 = vmatpush.msra.mxu0 0.0
        %2506 = vmatpush.msra.mxu0 0.0
        %2507 = vmatpush.msra.mxu0 0.0
        %2508 = vmatpush.msra.mxu0 0.0
        %2509 = vmatpush.msra.mxu0 %v2470
        %2510 = vmatpush.msra.mxu0 %v2468
        %2511 = vmatpush.msra.mxu0 %v2466
        %2512 = vmatpush.msra.mxu0 %v2464
        %2513 = vmatmul.f32.gmra.mxu0 %v2486
        %v2514 = vpop.f32.mrf.mxu0
        %v2515 = vadd.f32 0.0, %v2514
        %2516 = vmatmul.f32.gmra.mxu0 %v2489
        %v2517 = vpop.f32.mrf.mxu0
        %v2518 = vadd.f32 0.0, %v2517
        %2519 = vmatmul.f32.gmra.mxu0 %v2492
        %v2520 = vpop.f32.mrf.mxu0
        %v2521 = vadd.f32 0.0, %v2520
        %2522 = vmatmul.f32.gmra.mxu0 %v2495
        %v2523 = vpop.f32.mrf.mxu0
        %v2524 = vadd.f32 0.0, %v2523
        %2525 = vdwg.mxu0
        %2526 = vmatpush.msra.mxu0 0.0
        %2527 = vmatpush.msra.mxu0 0.0
        %2528 = vmatpush.msra.mxu0 0.0
        %2529 = vmatpush.msra.mxu0 0.0
        %2530 = vmatpush.msra.mxu0 0.0
        %2531 = vmatpush.msra.mxu0 0.0
        %2532 = vmatpush.msra.mxu0 0.0
        %2533 = vmatpush.msra.mxu0 0.0
        %2534 = vmatpush.msra.mxu0 0.0
        %2535 = vmatpush.msra.mxu0 0.0
        %2536 = vmatpush.msra.mxu0 0.0
        %2537 = vmatpush.msra.mxu0 0.0
        %2538 = vmatpush.msra.mxu0 %v2471
        %2539 = vmatpush.msra.mxu0 %v2469
        %2540 = vmatpush.msra.mxu0 %v2467
        %2541 = vmatpush.msra.mxu0 %v2465
        %2542 = vmatmul.f32.gmra.mxu0 %v2486
        %v2543 = vpop.f32.mrf.mxu0
        %v2544 = vadd.f32 0.0, %v2543
        %2545 = vmatmul.f32.gmra.mxu0 %v2489
        %v2546 = vpop.f32.mrf.mxu0
        %v2547 = vadd.f32 0.0, %v2546
        %2548 = vmatmul.f32.gmra.mxu0 %v2492
        %v2549 = vpop.f32.mrf.mxu0
        %v2550 = vadd.f32 0.0, %v2549
        %2551 = vmatmul.f32.gmra.mxu0 %v2495
        %v2552 = vpop.f32.mrf.mxu0
        %v2553 = vadd.f32 0.0, %v2552
        %2554 = vdwg.mxu0
        %v2555 = vadd.f32 %v2472, %v2515
        %v2556 = vadd.f32 %v2473, %v2544
        %v2557 = vadd.f32 %v2474, %v2518
        %v2558 = vadd.f32 %v2475, %v2547
        %v2559 = vadd.f32 %v2476, %v2521
        %v2560 = vadd.f32 %v2477, %v2550
        %v2561 = vadd.f32 %v2478, %v2524
        %v2562 = vadd.f32 %v2479, %v2553
        %2563 = vst [vmem:[#allocation3] sm:$0xff] %v2555
        %2564 = vst [vmem:[#allocation3 + $0x8] sm:$0xff] %v2556
        %2565 = vst [vmem:[#allocation3 + $0x10] sm:$0xff] %v2557
        %2566 = vst [vmem:[#allocation3 + $0x18] sm:$0xff] %v2558
        %2567 = vst [vmem:[#allocation3 + $0x20] sm:$0xff] %v2559
        %2568 = vst [vmem:[#allocation3 + $0x28] sm:$0xff] %v2560
        %2569 = vst [vmem:[#allocation3 + $0x30] sm:$0xff] %v2561
        %2570 = vst [vmem:[#allocation3 + $0x38] sm:$0xff] %v2562
        %2571 = vrot.lane.b32.xlu0 %v1507, 94
        %v2572 = vpop.permute.xlu0 %2571
        %2573 = vrot.lane.b32.xlu0 %v1509, 94
        %v2574 = vpop.permute.xlu0 %2573
        %2575 = vrot.lane.b32.xlu0 %v1511, 94
        %v2576 = vpop.permute.xlu0 %2575
        %2577 = vrot.lane.b32.xlu0 %v1513, 94
        %v2578 = vpop.permute.xlu0 %2577
        %2579 = vrot.lane.b32.xlu0 %v1508, 94
        %v2580 = vpop.permute.xlu0 %2579
        %2581 = vrot.lane.b32.xlu0 %v1510, 94
        %v2582 = vpop.permute.xlu0 %2581
        %2583 = vrot.lane.b32.xlu0 %v1512, 94
        %v2584 = vpop.permute.xlu0 %2583
        %2585 = vrot.lane.b32.xlu0 %v1514, 94
        %v2586 = vpop.permute.xlu0 %2585
        %vm2587 = vcmp.lt.s32.totalorder %v340, 94
        %v2588 = vsel %vm2587, %v2572, %v2580
        %v2589 = vsel %vm2587, %v2574, %v2582
        %v2590 = vsel %vm2587, %v2576, %v2584
        %v2591 = vsel %vm2587, %v2578, %v2586
        %v2592 = vsel %vm2587, %v2580, %v2572
        %v2593 = vsel %vm2587, %v2582, %v2574
        %v2594 = vsel %vm2587, %v2584, %v2576
        %v2595 = vsel %vm2587, %v2586, %v2578
        %s2596 = scalar_lea.vmem %s3, 34
        %v2597 = vld [vmem:[%s2596] sm:$0x3]
        %v2599 = vperm.slane %v2597, 0
        %v2600 = vperm.slane %v2597, 1
        %v2603 = vmul.f32 %v2588, %v2599
        %v2604 = vmul.f32 %v2592, %v2600
        %v2605 = vmul.f32 %v2589, %v2599
        %v2606 = vmul.f32 %v2593, %v2600
        %v2607 = vmul.f32 %v2590, %v2599
        %v2608 = vmul.f32 %v2594, %v2600
        %v2609 = vmul.f32 %v2591, %v2599
        %v2610 = vmul.f32 %v2595, %v2600
        %v2611 = vld [vmem:[#allocation3] sm:$0xff]
        %v2612 = vld [vmem:[#allocation3 + $0x8] sm:$0xff]
        %v2613 = vld [vmem:[#allocation3 + $0x10] sm:$0xff]
        %v2614 = vld [vmem:[#allocation3 + $0x18] sm:$0xff]
        %v2615 = vld [vmem:[#allocation3 + $0x20] sm:$0xff]
        %v2616 = vld [vmem:[#allocation3 + $0x28] sm:$0xff]
        %v2617 = vld [vmem:[#allocation3 + $0x30] sm:$0xff]
        %v2618 = vld [vmem:[#allocation3 + $0x38] sm:$0xff]
        %s2619 = scalar_lea.vmem [#allocation4], 544
        %v2620 = vld [vmem:[%s2619] sm:$0xff]
        %v2621 = vld [vmem:[%s2619 + $0x8] sm:$0xff]
        %v2622 = vld [vmem:[%s2619 + $0x10] sm:$0xff]
        %v2623 = vld [vmem:[%s2619 + $0x18] sm:$0xff]
        %v2625 = vsel %vm244, %v2620, 0
        %v2628 = vsel %vm244, %v2621, 0
        %v2631 = vsel %vm244, %v2622, 0
        %v2634 = vsel %vm244, %v2623, 0
        %2636 = vmatpush.msra.mxu0 0.0
        %2637 = vmatpush.msra.mxu0 0.0
        %2638 = vmatpush.msra.mxu0 0.0
        %2639 = vmatpush.msra.mxu0 0.0
        %2640 = vmatpush.msra.mxu0 0.0
        %2641 = vmatpush.msra.mxu0 0.0
        %2642 = vmatpush.msra.mxu0 0.0
        %2643 = vmatpush.msra.mxu0 0.0
        %2644 = vmatpush.msra.mxu0 0.0
        %2645 = vmatpush.msra.mxu0 0.0
        %2646 = vmatpush.msra.mxu0 0.0
        %2647 = vmatpush.msra.mxu0 0.0
        %2648 = vmatpush.msra.mxu0 %v2609
        %2649 = vmatpush.msra.mxu0 %v2607
        %2650 = vmatpush.msra.mxu0 %v2605
        %2651 = vmatpush.msra.mxu0 %v2603
        %2652 = vmatmul.f32.gmra.mxu0 %v2625
        %v2653 = vpop.f32.mrf.mxu0
        %v2654 = vadd.f32 0.0, %v2653
        %2655 = vmatmul.f32.gmra.mxu0 %v2628
        %v2656 = vpop.f32.mrf.mxu0
        %v2657 = vadd.f32 0.0, %v2656
        %2658 = vmatmul.f32.gmra.mxu0 %v2631
        %v2659 = vpop.f32.mrf.mxu0
        %v2660 = vadd.f32 0.0, %v2659
        %2661 = vmatmul.f32.gmra.mxu0 %v2634
        %v2662 = vpop.f32.mrf.mxu0
        %v2663 = vadd.f32 0.0, %v2662
        %2664 = vdwg.mxu0
        %2665 = vmatpush.msra.mxu0 0.0
        %2666 = vmatpush.msra.mxu0 0.0
        %2667 = vmatpush.msra.mxu0 0.0
        %2668 = vmatpush.msra.mxu0 0.0
        %2669 = vmatpush.msra.mxu0 0.0
        %2670 = vmatpush.msra.mxu0 0.0
        %2671 = vmatpush.msra.mxu0 0.0
        %2672 = vmatpush.msra.mxu0 0.0
        %2673 = vmatpush.msra.mxu0 0.0
        %2674 = vmatpush.msra.mxu0 0.0
        %2675 = vmatpush.msra.mxu0 0.0
        %2676 = vmatpush.msra.mxu0 0.0
        %2677 = vmatpush.msra.mxu0 %v2610
        %2678 = vmatpush.msra.mxu0 %v2608
        %2679 = vmatpush.msra.mxu0 %v2606
        %2680 = vmatpush.msra.mxu0 %v2604
        %2681 = vmatmul.f32.gmra.mxu0 %v2625
        %v2682 = vpop.f32.mrf.mxu0
        %v2683 = vadd.f32 0.0, %v2682
        %2684 = vmatmul.f32.gmra.mxu0 %v2628
        %v2685 = vpop.f32.mrf.mxu0
        %v2686 = vadd.f32 0.0, %v2685
        %2687 = vmatmul.f32.gmra.mxu0 %v2631
        %v2688 = vpop.f32.mrf.mxu0
        %v2689 = vadd.f32 0.0, %v2688
        %2690 = vmatmul.f32.gmra.mxu0 %v2634
        %v2691 = vpop.f32.mrf.mxu0
        %v2692 = vadd.f32 0.0, %v2691
        %2693 = vdwg.mxu0
        %v2694 = vadd.f32 %v2611, %v2654
        %v2695 = vadd.f32 %v2612, %v2683
        %v2696 = vadd.f32 %v2613, %v2657
        %v2697 = vadd.f32 %v2614, %v2686
        %v2698 = vadd.f32 %v2615, %v2660
        %v2699 = vadd.f32 %v2616, %v2689
        %v2700 = vadd.f32 %v2617, %v2663
        %v2701 = vadd.f32 %v2618, %v2692
        %2702 = vst [vmem:[#allocation3] sm:$0xff] %v2694
        %2703 = vst [vmem:[#allocation3 + $0x8] sm:$0xff] %v2695
        %2704 = vst [vmem:[#allocation3 + $0x10] sm:$0xff] %v2696
        %2705 = vst [vmem:[#allocation3 + $0x18] sm:$0xff] %v2697
        %2706 = vst [vmem:[#allocation3 + $0x20] sm:$0xff] %v2698
        %2707 = vst [vmem:[#allocation3 + $0x28] sm:$0xff] %v2699
        %2708 = vst [vmem:[#allocation3 + $0x30] sm:$0xff] %v2700
        %2709 = vst [vmem:[#allocation3 + $0x38] sm:$0xff] %v2701
        %v2710 = vld [vmem:[#allocation3] sm:$0xff]
        %v2711 = vld [vmem:[#allocation3 + $0x8] sm:$0xff]
        %v2712 = vld [vmem:[#allocation3 + $0x10] sm:$0xff]
        %v2713 = vld [vmem:[#allocation3 + $0x18] sm:$0xff]
        %v2714 = vld [vmem:[#allocation3 + $0x20] sm:$0xff]
        %v2715 = vld [vmem:[#allocation3 + $0x28] sm:$0xff]
        %v2716 = vld [vmem:[#allocation3 + $0x30] sm:$0xff]
        %v2717 = vld [vmem:[#allocation3 + $0x38] sm:$0xff]
        %s2718 = scalar_lea.vmem %s2, 32
        %v2719 = vld [vmem:[%s2718] sm:$0xff]
        %v2720 = vld [vmem:[%s2718 + $0x8] sm:$0xff]
        %v2721 = vld [vmem:[%s2718 + $0x10] sm:$0xff]
        %v2722 = vld [vmem:[%s2718 + $0x18] sm:$0xff]
        %2724 = vset.pattern.permute.xlu0 0
        %2725 = vperm.xlu0 %2724, %v2719
        %v2726 = vpop.permute.xlu0 %2725
        %2729 = vset.pattern.permute.xlu0 0
        %2730 = vperm.xlu0 %2729, %v2720
        %v2731 = vpop.permute.xlu0 %2730
        %2734 = vset.pattern.permute.xlu0 0
        %2735 = vperm.xlu0 %2734, %v2721
        %v2736 = vpop.permute.xlu0 %2735
        %2739 = vset.pattern.permute.xlu0 0
        %2740 = vperm.xlu0 %2739, %v2722
        %v2741 = vpop.permute.xlu0 %2740
        %v2743 = vadd.f32 %v2710, %v2726
        %v2744 = vadd.f32 %v2711, %v2726
        %v2745 = vadd.f32 %v2712, %v2731
        %v2746 = vadd.f32 %v2713, %v2731
        %v2747 = vadd.f32 %v2714, %v2736
        %v2748 = vadd.f32 %v2715, %v2736
        %v2749 = vadd.f32 %v2716, %v2741
        %v2750 = vadd.f32 %v2717, %v2741
        %vm2751 = vcmp.ge.f32.partialorder %v2743, 0.0
        %vm2752 = vcmp.ge.f32.partialorder %v2744, 0.0
        %vm2753 = vcmp.ge.f32.partialorder %v2745, 0.0
        %vm2754 = vcmp.ge.f32.partialorder %v2746, 0.0
        %vm2755 = vcmp.ge.f32.partialorder %v2747, 0.0
        %vm2756 = vcmp.ge.f32.partialorder %v2748, 0.0
        %vm2757 = vcmp.ge.f32.partialorder %v2749, 0.0
        %vm2758 = vcmp.ge.f32.partialorder %v2750, 0.0
        %v2759 = vmul.f32 %v2743, 0.01
        %v2760 = vmul.f32 %v2744, 0.01
        %v2761 = vmul.f32 %v2745, 0.01
        %v2762 = vmul.f32 %v2746, 0.01
        %v2763 = vmul.f32 %v2747, 0.01
        %v2764 = vmul.f32 %v2748, 0.01
        %v2765 = vmul.f32 %v2749, 0.01
        %v2766 = vmul.f32 %v2750, 0.01
        %v2767 = vsel %vm2751, %v2743, %v2759
        %v2768 = vsel %vm2752, %v2744, %v2760
        %v2769 = vsel %vm2753, %v2745, %v2761
        %v2770 = vsel %vm2754, %v2746, %v2762
        %v2771 = vsel %vm2755, %v2747, %v2763
        %v2772 = vsel %vm2756, %v2748, %v2764
        %v2773 = vsel %vm2757, %v2749, %v2765
        %v2774 = vsel %vm2758, %v2750, %v2766
        %2775 = vst [vmem:[#allocation2] sm:$0xff] %v2767
        %2776 = vst [vmem:[#allocation2 + $0x8] sm:$0xff] %v2768
        %2777 = vst [vmem:[#allocation2 + $0x10] sm:$0xff] %v2769
        %2778 = vst [vmem:[#allocation2 + $0x18] sm:$0xff] %v2770
        %2779 = vst [vmem:[#allocation2 + $0x20] sm:$0xff] %v2771
        %2780 = vst [vmem:[#allocation2 + $0x28] sm:$0xff] %v2772
        %2781 = vst [vmem:[#allocation2 + $0x30] sm:$0xff] %v2773
        %2782 = vst [vmem:[#allocation2 + $0x38] sm:$0xff] %v2774
        %v2783 = vld [vmem:[#allocation2] sm:$0xff]
        %v2784 = vld [vmem:[#allocation2 + $0x8] sm:$0xff]
        %v2785 = vld [vmem:[#allocation2 + $0x10] sm:$0xff]
        %v2786 = vld [vmem:[#allocation2 + $0x18] sm:$0xff]
        %v2787 = vld [vmem:[#allocation2 + $0x20] sm:$0xff]
        %v2788 = vld [vmem:[#allocation2 + $0x28] sm:$0xff]
        %v2789 = vld [vmem:[#allocation2 + $0x30] sm:$0xff]
        %v2790 = vld [vmem:[#allocation2 + $0x38] sm:$0xff]
        %s2791 = scalar_lea.vmem [#allocation4], 704
        %v2792 = vld [vmem:[%s2791] sm:$0xff]
        %v2793 = vld [vmem:[%s2791 + $0x8] sm:$0xff]
        %v2794 = vld [vmem:[%s2791 + $0x10] sm:$0xff]
        %v2795 = vld [vmem:[%s2791 + $0x18] sm:$0xff]
        %v2797 = vsel %vm244, %v2792, 0
        %v2800 = vsel %vm244, %v2793, 0
        %v2803 = vsel %vm244, %v2794, 0
        %v2806 = vsel %vm244, %v2795, 0
        %2808 = vmatpush.msra.mxu0 0.0
        %2809 = vmatpush.msra.mxu0 0.0
        %2810 = vmatpush.msra.mxu0 0.0
        %2811 = vmatpush.msra.mxu0 0.0
        %2812 = vmatpush.msra.mxu0 0.0
        %2813 = vmatpush.msra.mxu0 0.0
        %2814 = vmatpush.msra.mxu0 0.0
        %2815 = vmatpush.msra.mxu0 0.0
        %2816 = vmatpush.msra.mxu0 0.0
        %2817 = vmatpush.msra.mxu0 0.0
        %2818 = vmatpush.msra.mxu0 0.0
        %2819 = vmatpush.msra.mxu0 0.0
        %2820 = vmatpush.msra.mxu0 %v2789
        %2821 = vmatpush.msra.mxu0 %v2787
        %2822 = vmatpush.msra.mxu0 %v2785
        %2823 = vmatpush.msra.mxu0 %v2783
        %2824 = vmatmul.f32.gmra.mxu0 %v2797
        %v2825 = vpop.f32.mrf.mxu0
        %v2826 = vadd.f32 0.0, %v2825
        %2827 = vmatmul.f32.gmra.mxu0 %v2800
        %v2828 = vpop.f32.mrf.mxu0
        %v2829 = vadd.f32 0.0, %v2828
        %2830 = vmatmul.f32.gmra.mxu0 %v2803
        %v2831 = vpop.f32.mrf.mxu0
        %v2832 = vadd.f32 0.0, %v2831
        %2833 = vmatmul.f32.gmra.mxu0 %v2806
        %v2834 = vpop.f32.mrf.mxu0
        %v2835 = vadd.f32 0.0, %v2834
        %2836 = vdwg.mxu0
        %2837 = vmatpush.msra.mxu0 0.0
        %2838 = vmatpush.msra.mxu0 0.0
        %2839 = vmatpush.msra.mxu0 0.0
        %2840 = vmatpush.msra.mxu0 0.0
        %2841 = vmatpush.msra.mxu0 0.0
        %2842 = vmatpush.msra.mxu0 0.0
        %2843 = vmatpush.msra.mxu0 0.0
        %2844 = vmatpush.msra.mxu0 0.0
        %2845 = vmatpush.msra.mxu0 0.0
        %2846 = vmatpush.msra.mxu0 0.0
        %2847 = vmatpush.msra.mxu0 0.0
        %2848 = vmatpush.msra.mxu0 0.0
        %2849 = vmatpush.msra.mxu0 %v2790
        %2850 = vmatpush.msra.mxu0 %v2788
        %2851 = vmatpush.msra.mxu0 %v2786
        %2852 = vmatpush.msra.mxu0 %v2784
        %2853 = vmatmul.f32.gmra.mxu0 %v2797
        %v2854 = vpop.f32.mrf.mxu0
        %v2855 = vadd.f32 0.0, %v2854
        %2856 = vmatmul.f32.gmra.mxu0 %v2800
        %v2857 = vpop.f32.mrf.mxu0
        %v2858 = vadd.f32 0.0, %v2857
        %2859 = vmatmul.f32.gmra.mxu0 %v2803
        %v2860 = vpop.f32.mrf.mxu0
        %v2861 = vadd.f32 0.0, %v2860
        %2862 = vmatmul.f32.gmra.mxu0 %v2806
        %v2863 = vpop.f32.mrf.mxu0
        %v2864 = vadd.f32 0.0, %v2863
        %2865 = vdwg.mxu0
        %2866 = vst [vmem:[#allocation3] sm:$0xff] %v2826
        %2867 = vst [vmem:[#allocation3 + $0x8] sm:$0xff] %v2855
        %2868 = vst [vmem:[#allocation3 + $0x10] sm:$0xff] %v2829
        %2869 = vst [vmem:[#allocation3 + $0x18] sm:$0xff] %v2858
        %2870 = vst [vmem:[#allocation3 + $0x20] sm:$0xff] %v2832
        %2871 = vst [vmem:[#allocation3 + $0x28] sm:$0xff] %v2861
        %2872 = vst [vmem:[#allocation3 + $0x30] sm:$0xff] %v2835
        %2873 = vst [vmem:[#allocation3 + $0x38] sm:$0xff] %v2864
        %2874 = vrot.lane.b32.xlu0 %v2783, 51
        %v2875 = vpop.permute.xlu0 %2874
        %2876 = vrot.lane.b32.xlu0 %v2785, 51
        %v2877 = vpop.permute.xlu0 %2876
        %2878 = vrot.lane.b32.xlu0 %v2787, 51
        %v2879 = vpop.permute.xlu0 %2878
        %2880 = vrot.lane.b32.xlu0 %v2789, 51
        %v2881 = vpop.permute.xlu0 %2880
        %2882 = vrot.lane.b32.xlu0 %v2784, 51
        %v2883 = vpop.permute.xlu0 %2882
        %2884 = vrot.lane.b32.xlu0 %v2786, 51
        %v2885 = vpop.permute.xlu0 %2884
        %2886 = vrot.lane.b32.xlu0 %v2788, 51
        %v2887 = vpop.permute.xlu0 %2886
        %2888 = vrot.lane.b32.xlu0 %v2790, 51
        %v2889 = vpop.permute.xlu0 %2888
        %vm2890 = vcmp.lt.s32.totalorder %v340, 51
        %v2891 = vsel %vm2890, %v2875, %v2883
        %v2892 = vsel %vm2890, %v2877, %v2885
        %v2893 = vsel %vm2890, %v2879, %v2887
        %v2894 = vsel %vm2890, %v2881, %v2889
        %v2895 = vsel %vm2890, %v2883, %v2875
        %v2896 = vsel %vm2890, %v2885, %v2877
        %v2897 = vsel %vm2890, %v2887, %v2879
        %v2898 = vsel %vm2890, %v2889, %v2881
        %s2899 = scalar_lea.vmem %s3, 36
        %v2900 = vld [vmem:[%s2899] sm:$0x3]
        %v2902 = vperm.slane %v2900, 0
        %v2903 = vperm.slane %v2900, 1
        %v2906 = vmul.f32 %v2895, %v2902
        %v2907 = vmul.f32 %v2891, %v2903
        %v2908 = vmul.f32 %v2896, %v2902
        %v2909 = vmul.f32 %v2892, %v2903
        %v2910 = vmul.f32 %v2897, %v2902
        %v2911 = vmul.f32 %v2893, %v2903
        %v2912 = vmul.f32 %v2898, %v2902
        %v2913 = vmul.f32 %v2894, %v2903
        %v2914 = vld [vmem:[#allocation3] sm:$0xff]
        %v2915 = vld [vmem:[#allocation3 + $0x8] sm:$0xff]
        %v2916 = vld [vmem:[#allocation3 + $0x10] sm:$0xff]
        %v2917 = vld [vmem:[#allocation3 + $0x18] sm:$0xff]
        %v2918 = vld [vmem:[#allocation3 + $0x20] sm:$0xff]
        %v2919 = vld [vmem:[#allocation3 + $0x28] sm:$0xff]
        %v2920 = vld [vmem:[#allocation3 + $0x30] sm:$0xff]
        %v2921 = vld [vmem:[#allocation3 + $0x38] sm:$0xff]
        %s2922 = scalar_lea.vmem [#allocation4], 576
        %v2923 = vld [vmem:[%s2922] sm:$0xff]
        %v2924 = vld [vmem:[%s2922 + $0x8] sm:$0xff]
        %v2925 = vld [vmem:[%s2922 + $0x10] sm:$0xff]
        %v2926 = vld [vmem:[%s2922 + $0x18] sm:$0xff]
        %v2928 = vsel %vm244, %v2923, 0
        %v2931 = vsel %vm244, %v2924, 0
        %v2934 = vsel %vm244, %v2925, 0
        %v2937 = vsel %vm244, %v2926, 0
        %2939 = vmatpush.msra.mxu0 0.0
        %2940 = vmatpush.msra.mxu0 0.0
        %2941 = vmatpush.msra.mxu0 0.0
        %2942 = vmatpush.msra.mxu0 0.0
        %2943 = vmatpush.msra.mxu0 0.0
        %2944 = vmatpush.msra.mxu0 0.0
        %2945 = vmatpush.msra.mxu0 0.0
        %2946 = vmatpush.msra.mxu0 0.0
        %2947 = vmatpush.msra.mxu0 0.0
        %2948 = vmatpush.msra.mxu0 0.0
        %2949 = vmatpush.msra.mxu0 0.0
        %2950 = vmatpush.msra.mxu0 0.0
        %2951 = vmatpush.msra.mxu0 %v2912
        %2952 = vmatpush.msra.mxu0 %v2910
        %2953 = vmatpush.msra.mxu0 %v2908
        %2954 = vmatpush.msra.mxu0 %v2906
        %2955 = vmatmul.f32.gmra.mxu0 %v2928
        %v2956 = vpop.f32.mrf.mxu0
        %v2957 = vadd.f32 0.0, %v2956
        %2958 = vmatmul.f32.gmra.mxu0 %v2931
        %v2959 = vpop.f32.mrf.mxu0
        %v2960 = vadd.f32 0.0, %v2959
        %2961 = vmatmul.f32.gmra.mxu0 %v2934
        %v2962 = vpop.f32.mrf.mxu0
        %v2963 = vadd.f32 0.0, %v2962
        %2964 = vmatmul.f32.gmra.mxu0 %v2937
        %v2965 = vpop.f32.mrf.mxu0
        %v2966 = vadd.f32 0.0, %v2965
        %2967 = vdwg.mxu0
        %2968 = vmatpush.msra.mxu0 0.0
        %2969 = vmatpush.msra.mxu0 0.0
        %2970 = vmatpush.msra.mxu0 0.0
        %2971 = vmatpush.msra.mxu0 0.0
        %2972 = vmatpush.msra.mxu0 0.0
        %2973 = vmatpush.msra.mxu0 0.0
        %2974 = vmatpush.msra.mxu0 0.0
        %2975 = vmatpush.msra.mxu0 0.0
        %2976 = vmatpush.msra.mxu0 0.0
        %2977 = vmatpush.msra.mxu0 0.0
        %2978 = vmatpush.msra.mxu0 0.0
        %2979 = vmatpush.msra.mxu0 0.0
        %2980 = vmatpush.msra.mxu0 %v2913
        %2981 = vmatpush.msra.mxu0 %v2911
        %2982 = vmatpush.msra.mxu0 %v2909
        %2983 = vmatpush.msra.mxu0 %v2907
        %2984 = vmatmul.f32.gmra.mxu0 %v2928
        %v2985 = vpop.f32.mrf.mxu0
        %v2986 = vadd.f32 0.0, %v2985
        %2987 = vmatmul.f32.gmra.mxu0 %v2931
        %v2988 = vpop.f32.mrf.mxu0
        %v2989 = vadd.f32 0.0, %v2988
        %2990 = vmatmul.f32.gmra.mxu0 %v2934
        %v2991 = vpop.f32.mrf.mxu0
        %v2992 = vadd.f32 0.0, %v2991
        %2993 = vmatmul.f32.gmra.mxu0 %v2937
        %v2994 = vpop.f32.mrf.mxu0
        %v2995 = vadd.f32 0.0, %v2994
        %2996 = vdwg.mxu0
        %v2997 = vadd.f32 %v2914, %v2957
        %v2998 = vadd.f32 %v2915, %v2986
        %v2999 = vadd.f32 %v2916, %v2960
        %v3000 = vadd.f32 %v2917, %v2989
        %v3001 = vadd.f32 %v2918, %v2963
        %v3002 = vadd.f32 %v2919, %v2992
        %v3003 = vadd.f32 %v2920, %v2966
        %v3004 = vadd.f32 %v2921, %v2995
        %3005 = vst [vmem:[#allocation3] sm:$0xff] %v2997
        %3006 = vst [vmem:[#allocation3 + $0x8] sm:$0xff] %v2998
        %3007 = vst [vmem:[#allocation3 + $0x10] sm:$0xff] %v2999
        %3008 = vst [vmem:[#allocation3 + $0x18] sm:$0xff] %v3000
        %3009 = vst [vmem:[#allocation3 + $0x20] sm:$0xff] %v3001
        %3010 = vst [vmem:[#allocation3 + $0x28] sm:$0xff] %v3002
        %3011 = vst [vmem:[#allocation3 + $0x30] sm:$0xff] %v3003
        %3012 = vst [vmem:[#allocation3 + $0x38] sm:$0xff] %v3004
        %3013 = vrot.lane.b32.xlu0 %v2783, 48
        %v3014 = vpop.permute.xlu0 %3013
        %3015 = vrot.lane.b32.xlu0 %v2785, 48
        %v3016 = vpop.permute.xlu0 %3015
        %3017 = vrot.lane.b32.xlu0 %v2787, 48
        %v3018 = vpop.permute.xlu0 %3017
        %3019 = vrot.lane.b32.xlu0 %v2789, 48
        %v3020 = vpop.permute.xlu0 %3019
        %3021 = vrot.lane.b32.xlu0 %v2784, 48
        %v3022 = vpop.permute.xlu0 %3021
        %3023 = vrot.lane.b32.xlu0 %v2786, 48
        %v3024 = vpop.permute.xlu0 %3023
        %3025 = vrot.lane.b32.xlu0 %v2788, 48
        %v3026 = vpop.permute.xlu0 %3025
        %3027 = vrot.lane.b32.xlu0 %v2790, 48
        %v3028 = vpop.permute.xlu0 %3027
        %vm3029 = vcmp.lt.s32.totalorder %v340, 48
        %v3030 = vsel %vm3029, %v3014, %v3022
        %v3031 = vsel %vm3029, %v3016, %v3024
        %v3032 = vsel %vm3029, %v3018, %v3026
        %v3033 = vsel %vm3029, %v3020, %v3028
        %v3034 = vsel %vm3029, %v3022, %v3014
        %v3035 = vsel %vm3029, %v3024, %v3016
        %v3036 = vsel %vm3029, %v3026, %v3018
        %v3037 = vsel %vm3029, %v3028, %v3020
        %s3038 = scalar_lea.vmem %s3, 38
        %v3039 = vld [vmem:[%s3038] sm:$0x3]
        %v3041 = vperm.slane %v3039, 0
        %v3042 = vperm.slane %v3039, 1
        %v3045 = vmul.f32 %v3034, %v3041
        %v3046 = vmul.f32 %v3030, %v3042
        %v3047 = vmul.f32 %v3035, %v3041
        %v3048 = vmul.f32 %v3031, %v3042
        %v3049 = vmul.f32 %v3036, %v3041
        %v3050 = vmul.f32 %v3032, %v3042
        %v3051 = vmul.f32 %v3037, %v3041
        %v3052 = vmul.f32 %v3033, %v3042
        %v3053 = vld [vmem:[#allocation3] sm:$0xff]
        %v3054 = vld [vmem:[#allocation3 + $0x8] sm:$0xff]
        %v3055 = vld [vmem:[#allocation3 + $0x10] sm:$0xff]
        %v3056 = vld [vmem:[#allocation3 + $0x18] sm:$0xff]
        %v3057 = vld [vmem:[#allocation3 + $0x20] sm:$0xff]
        %v3058 = vld [vmem:[#allocation3 + $0x28] sm:$0xff]
        %v3059 = vld [vmem:[#allocation3 + $0x30] sm:$0xff]
        %v3060 = vld [vmem:[#allocation3 + $0x38] sm:$0xff]
        %s3061 = scalar_lea.vmem [#allocation4], 608
        %v3062 = vld [vmem:[%s3061] sm:$0xff]
        %v3063 = vld [vmem:[%s3061 + $0x8] sm:$0xff]
        %v3064 = vld [vmem:[%s3061 + $0x10] sm:$0xff]
        %v3065 = vld [vmem:[%s3061 + $0x18] sm:$0xff]
        %v3067 = vsel %vm244, %v3062, 0
        %v3070 = vsel %vm244, %v3063, 0
        %v3073 = vsel %vm244, %v3064, 0
        %v3076 = vsel %vm244, %v3065, 0
        %3078 = vmatpush.msra.mxu0 0.0
        %3079 = vmatpush.msra.mxu0 0.0
        %3080 = vmatpush.msra.mxu0 0.0
        %3081 = vmatpush.msra.mxu0 0.0
        %3082 = vmatpush.msra.mxu0 0.0
        %3083 = vmatpush.msra.mxu0 0.0
        %3084 = vmatpush.msra.mxu0 0.0
        %3085 = vmatpush.msra.mxu0 0.0
        %3086 = vmatpush.msra.mxu0 0.0
        %3087 = vmatpush.msra.mxu0 0.0
        %3088 = vmatpush.msra.mxu0 0.0
        %3089 = vmatpush.msra.mxu0 0.0
        %3090 = vmatpush.msra.mxu0 %v3051
        %3091 = vmatpush.msra.mxu0 %v3049
        %3092 = vmatpush.msra.mxu0 %v3047
        %3093 = vmatpush.msra.mxu0 %v3045
        %3094 = vmatmul.f32.gmra.mxu0 %v3067
        %v3095 = vpop.f32.mrf.mxu0
        %v3096 = vadd.f32 0.0, %v3095
        %3097 = vmatmul.f32.gmra.mxu0 %v3070
        %v3098 = vpop.f32.mrf.mxu0
        %v3099 = vadd.f32 0.0, %v3098
        %3100 = vmatmul.f32.gmra.mxu0 %v3073
        %v3101 = vpop.f32.mrf.mxu0
        %v3102 = vadd.f32 0.0, %v3101
        %3103 = vmatmul.f32.gmra.mxu0 %v3076
        %v3104 = vpop.f32.mrf.mxu0
        %v3105 = vadd.f32 0.0, %v3104
        %3106 = vdwg.mxu0
        %3107 = vmatpush.msra.mxu0 0.0
        %3108 = vmatpush.msra.mxu0 0.0
        %3109 = vmatpush.msra.mxu0 0.0
        %3110 = vmatpush.msra.mxu0 0.0
        %3111 = vmatpush.msra.mxu0 0.0
        %3112 = vmatpush.msra.mxu0 0.0
        %3113 = vmatpush.msra.mxu0 0.0
        %3114 = vmatpush.msra.mxu0 0.0
        %3115 = vmatpush.msra.mxu0 0.0
        %3116 = vmatpush.msra.mxu0 0.0
        %3117 = vmatpush.msra.mxu0 0.0
        %3118 = vmatpush.msra.mxu0 0.0
        %3119 = vmatpush.msra.mxu0 %v3052
        %3120 = vmatpush.msra.mxu0 %v3050
        %3121 = vmatpush.msra.mxu0 %v3048
        %3122 = vmatpush.msra.mxu0 %v3046
        %3123 = vmatmul.f32.gmra.mxu0 %v3067
        %v3124 = vpop.f32.mrf.mxu0
        %v3125 = vadd.f32 0.0, %v3124
        %3126 = vmatmul.f32.gmra.mxu0 %v3070
        %v3127 = vpop.f32.mrf.mxu0
        %v3128 = vadd.f32 0.0, %v3127
        %3129 = vmatmul.f32.gmra.mxu0 %v3073
        %v3130 = vpop.f32.mrf.mxu0
        %v3131 = vadd.f32 0.0, %v3130
        %3132 = vmatmul.f32.gmra.mxu0 %v3076
        %v3133 = vpop.f32.mrf.mxu0
        %v3134 = vadd.f32 0.0, %v3133
        %3135 = vdwg.mxu0
        %v3136 = vadd.f32 %v3053, %v3096
        %v3137 = vadd.f32 %v3054, %v3125
        %v3138 = vadd.f32 %v3055, %v3099
        %v3139 = vadd.f32 %v3056, %v3128
        %v3140 = vadd.f32 %v3057, %v3102
        %v3141 = vadd.f32 %v3058, %v3131
        %v3142 = vadd.f32 %v3059, %v3105
        %v3143 = vadd.f32 %v3060, %v3134
        %3144 = vst [vmem:[#allocation3] sm:$0xff] %v3136
        %3145 = vst [vmem:[#allocation3 + $0x8] sm:$0xff] %v3137
        %3146 = vst [vmem:[#allocation3 + $0x10] sm:$0xff] %v3138
        %3147 = vst [vmem:[#allocation3 + $0x18] sm:$0xff] %v3139
        %3148 = vst [vmem:[#allocation3 + $0x20] sm:$0xff] %v3140
        %3149 = vst [vmem:[#allocation3 + $0x28] sm:$0xff] %v3141
        %3150 = vst [vmem:[#allocation3 + $0x30] sm:$0xff] %v3142
        %3151 = vst [vmem:[#allocation3 + $0x38] sm:$0xff] %v3143
        %3152 = vrot.lane.b32.xlu0 %v2783, 45
        %v3153 = vpop.permute.xlu0 %3152
        %3154 = vrot.lane.b32.xlu0 %v2785, 45
        %v3155 = vpop.permute.xlu0 %3154
        %3156 = vrot.lane.b32.xlu0 %v2787, 45
        %v3157 = vpop.permute.xlu0 %3156
        %3158 = vrot.lane.b32.xlu0 %v2789, 45
        %v3159 = vpop.permute.xlu0 %3158
        %3160 = vrot.lane.b32.xlu0 %v2784, 45
        %v3161 = vpop.permute.xlu0 %3160
        %3162 = vrot.lane.b32.xlu0 %v2786, 45
        %v3163 = vpop.permute.xlu0 %3162
        %3164 = vrot.lane.b32.xlu0 %v2788, 45
        %v3165 = vpop.permute.xlu0 %3164
        %3166 = vrot.lane.b32.xlu0 %v2790, 45
        %v3167 = vpop.permute.xlu0 %3166
        %vm3168 = vcmp.lt.s32.totalorder %v340, 45
        %v3169 = vsel %vm3168, %v3153, %v3161
        %v3170 = vsel %vm3168, %v3155, %v3163
        %v3171 = vsel %vm3168, %v3157, %v3165
        %v3172 = vsel %vm3168, %v3159, %v3167
        %v3173 = vsel %vm3168, %v3161, %v3153
        %v3174 = vsel %vm3168, %v3163, %v3155
        %v3175 = vsel %vm3168, %v3165, %v3157
        %v3176 = vsel %vm3168, %v3167, %v3159
        %s3177 = scalar_lea.vmem %s3, 40
        %v3178 = vld [vmem:[%s3177] sm:$0x3]
        %v3180 = vperm.slane %v3178, 0
        %v3181 = vperm.slane %v3178, 1
        %v3184 = vmul.f32 %v3173, %v3180
        %v3185 = vmul.f32 %v3169, %v3181
        %v3186 = vmul.f32 %v3174, %v3180
        %v3187 = vmul.f32 %v3170, %v3181
        %v3188 = vmul.f32 %v3175, %v3180
        %v3189 = vmul.f32 %v3171, %v3181
        %v3190 = vmul.f32 %v3176, %v3180
        %v3191 = vmul.f32 %v3172, %v3181
        %v3192 = vld [vmem:[#allocation3] sm:$0xff]
        %v3193 = vld [vmem:[#allocation3 + $0x8] sm:$0xff]
        %v3194 = vld [vmem:[#allocation3 + $0x10] sm:$0xff]
        %v3195 = vld [vmem:[#allocation3 + $0x18] sm:$0xff]
        %v3196 = vld [vmem:[#allocation3 + $0x20] sm:$0xff]
        %v3197 = vld [vmem:[#allocation3 + $0x28] sm:$0xff]
        %v3198 = vld [vmem:[#allocation3 + $0x30] sm:$0xff]
        %v3199 = vld [vmem:[#allocation3 + $0x38] sm:$0xff]
        %s3200 = scalar_lea.vmem [#allocation4], 640
        %v3201 = vld [vmem:[%s3200] sm:$0xff]
        %v3202 = vld [vmem:[%s3200 + $0x8] sm:$0xff]
        %v3203 = vld [vmem:[%s3200 + $0x10] sm:$0xff]
        %v3204 = vld [vmem:[%s3200 + $0x18] sm:$0xff]
        %v3206 = vsel %vm244, %v3201, 0
        %v3209 = vsel %vm244, %v3202, 0
        %v3212 = vsel %vm244, %v3203, 0
        %v3215 = vsel %vm244, %v3204, 0
        %3217 = vmatpush.msra.mxu0 0.0
        %3218 = vmatpush.msra.mxu0 0.0
        %3219 = vmatpush.msra.mxu0 0.0
        %3220 = vmatpush.msra.mxu0 0.0
        %3221 = vmatpush.msra.mxu0 0.0
        %3222 = vmatpush.msra.mxu0 0.0
        %3223 = vmatpush.msra.mxu0 0.0
        %3224 = vmatpush.msra.mxu0 0.0
        %3225 = vmatpush.msra.mxu0 0.0
        %3226 = vmatpush.msra.mxu0 0.0
        %3227 = vmatpush.msra.mxu0 0.0
        %3228 = vmatpush.msra.mxu0 0.0
        %3229 = vmatpush.msra.mxu0 %v3190
        %3230 = vmatpush.msra.mxu0 %v3188
        %3231 = vmatpush.msra.mxu0 %v3186
        %3232 = vmatpush.msra.mxu0 %v3184
        %3233 = vmatmul.f32.gmra.mxu0 %v3206
        %v3234 = vpop.f32.mrf.mxu0
        %v3235 = vadd.f32 0.0, %v3234
        %3236 = vmatmul.f32.gmra.mxu0 %v3209
        %v3237 = vpop.f32.mrf.mxu0
        %v3238 = vadd.f32 0.0, %v3237
        %3239 = vmatmul.f32.gmra.mxu0 %v3212
        %v3240 = vpop.f32.mrf.mxu0
        %v3241 = vadd.f32 0.0, %v3240
        %3242 = vmatmul.f32.gmra.mxu0 %v3215
        %v3243 = vpop.f32.mrf.mxu0
        %v3244 = vadd.f32 0.0, %v3243
        %3245 = vdwg.mxu0
        %3246 = vmatpush.msra.mxu0 0.0
        %3247 = vmatpush.msra.mxu0 0.0
        %3248 = vmatpush.msra.mxu0 0.0
        %3249 = vmatpush.msra.mxu0 0.0
        %3250 = vmatpush.msra.mxu0 0.0
        %3251 = vmatpush.msra.mxu0 0.0
        %3252 = vmatpush.msra.mxu0 0.0
        %3253 = vmatpush.msra.mxu0 0.0
        %3254 = vmatpush.msra.mxu0 0.0
        %3255 = vmatpush.msra.mxu0 0.0
        %3256 = vmatpush.msra.mxu0 0.0
        %3257 = vmatpush.msra.mxu0 0.0
        %3258 = vmatpush.msra.mxu0 %v3191
        %3259 = vmatpush.msra.mxu0 %v3189
        %3260 = vmatpush.msra.mxu0 %v3187
        %3261 = vmatpush.msra.mxu0 %v3185
        %3262 = vmatmul.f32.gmra.mxu0 %v3206
        %v3263 = vpop.f32.mrf.mxu0
        %v3264 = vadd.f32 0.0, %v3263
        %3265 = vmatmul.f32.gmra.mxu0 %v3209
        %v3266 = vpop.f32.mrf.mxu0
        %v3267 = vadd.f32 0.0, %v3266
        %3268 = vmatmul.f32.gmra.mxu0 %v3212
        %v3269 = vpop.f32.mrf.mxu0
        %v3270 = vadd.f32 0.0, %v3269
        %3271 = vmatmul.f32.gmra.mxu0 %v3215
        %v3272 = vpop.f32.mrf.mxu0
        %v3273 = vadd.f32 0.0, %v3272
        %3274 = vdwg.mxu0
        %v3275 = vadd.f32 %v3192, %v3235
        %v3276 = vadd.f32 %v3193, %v3264
        %v3277 = vadd.f32 %v3194, %v3238
        %v3278 = vadd.f32 %v3195, %v3267
        %v3279 = vadd.f32 %v3196, %v3241
        %v3280 = vadd.f32 %v3197, %v3270
        %v3281 = vadd.f32 %v3198, %v3244
        %v3282 = vadd.f32 %v3199, %v3273
        %3283 = vst [vmem:[#allocation3] sm:$0xff] %v3275
        %3284 = vst [vmem:[#allocation3 + $0x8] sm:$0xff] %v3276
        %3285 = vst [vmem:[#allocation3 + $0x10] sm:$0xff] %v3277
        %3286 = vst [vmem:[#allocation3 + $0x18] sm:$0xff] %v3278
        %3287 = vst [vmem:[#allocation3 + $0x20] sm:$0xff] %v3279
        %3288 = vst [vmem:[#allocation3 + $0x28] sm:$0xff] %v3280
        %3289 = vst [vmem:[#allocation3 + $0x30] sm:$0xff] %v3281
        %3290 = vst [vmem:[#allocation3 + $0x38] sm:$0xff] %v3282
        %3291 = vrot.lane.b32.xlu0 %v2783, 3
        %v3292 = vpop.permute.xlu0 %3291
        %3293 = vrot.lane.b32.xlu0 %v2785, 3
        %v3294 = vpop.permute.xlu0 %3293
        %3295 = vrot.lane.b32.xlu0 %v2787, 3
        %v3296 = vpop.permute.xlu0 %3295
        %3297 = vrot.lane.b32.xlu0 %v2789, 3
        %v3298 = vpop.permute.xlu0 %3297
        %3299 = vrot.lane.b32.xlu0 %v2784, 3
        %v3300 = vpop.permute.xlu0 %3299
        %3301 = vrot.lane.b32.xlu0 %v2786, 3
        %v3302 = vpop.permute.xlu0 %3301
        %3303 = vrot.lane.b32.xlu0 %v2788, 3
        %v3304 = vpop.permute.xlu0 %3303
        %3305 = vrot.lane.b32.xlu0 %v2790, 3
        %v3306 = vpop.permute.xlu0 %3305
        %vm3307 = vcmp.lt.s32.totalorder %v340, 3
        %v3308 = vsel %vm3307, %v3292, %v3300
        %v3309 = vsel %vm3307, %v3294, %v3302
        %v3310 = vsel %vm3307, %v3296, %v3304
        %v3311 = vsel %vm3307, %v3298, %v3306
        %v3312 = vsel %vm3307, %v3300, %v3292
        %v3313 = vsel %vm3307, %v3302, %v3294
        %v3314 = vsel %vm3307, %v3304, %v3296
        %v3315 = vsel %vm3307, %v3306, %v3298
        %s3316 = scalar_lea.vmem %s3, 42
        %v3317 = vld [vmem:[%s3316] sm:$0x3]
        %v3319 = vperm.slane %v3317, 0
        %v3320 = vperm.slane %v3317, 1
        %v3323 = vmul.f32 %v3312, %v3319
        %v3324 = vmul.f32 %v3308, %v3320
        %v3325 = vmul.f32 %v3313, %v3319
        %v3326 = vmul.f32 %v3309, %v3320
        %v3327 = vmul.f32 %v3314, %v3319
        %v3328 = vmul.f32 %v3310, %v3320
        %v3329 = vmul.f32 %v3315, %v3319
        %v3330 = vmul.f32 %v3311, %v3320
        %v3331 = vld [vmem:[#allocation3] sm:$0xff]
        %v3332 = vld [vmem:[#allocation3 + $0x8] sm:$0xff]
        %v3333 = vld [vmem:[#allocation3 + $0x10] sm:$0xff]
        %v3334 = vld [vmem:[#allocation3 + $0x18] sm:$0xff]
        %v3335 = vld [vmem:[#allocation3 + $0x20] sm:$0xff]
        %v3336 = vld [vmem:[#allocation3 + $0x28] sm:$0xff]
        %v3337 = vld [vmem:[#allocation3 + $0x30] sm:$0xff]
        %v3338 = vld [vmem:[#allocation3 + $0x38] sm:$0xff]
        %s3339 = scalar_lea.vmem [#allocation4], 672
        %v3340 = vld [vmem:[%s3339] sm:$0xff]
        %v3341 = vld [vmem:[%s3339 + $0x8] sm:$0xff]
        %v3342 = vld [vmem:[%s3339 + $0x10] sm:$0xff]
        %v3343 = vld [vmem:[%s3339 + $0x18] sm:$0xff]
        %v3345 = vsel %vm244, %v3340, 0
        %v3348 = vsel %vm244, %v3341, 0
        %v3351 = vsel %vm244, %v3342, 0
        %v3354 = vsel %vm244, %v3343, 0
        %3356 = vmatpush.msra.mxu0 0.0
        %3357 = vmatpush.msra.mxu0 0.0
        %3358 = vmatpush.msra.mxu0 0.0
        %3359 = vmatpush.msra.mxu0 0.0
        %3360 = vmatpush.msra.mxu0 0.0
        %3361 = vmatpush.msra.mxu0 0.0
        %3362 = vmatpush.msra.mxu0 0.0
        %3363 = vmatpush.msra.mxu0 0.0
        %3364 = vmatpush.msra.mxu0 0.0
        %3365 = vmatpush.msra.mxu0 0.0
        %3366 = vmatpush.msra.mxu0 0.0
        %3367 = vmatpush.msra.mxu0 0.0
        %3368 = vmatpush.msra.mxu0 %v3329
        %3369 = vmatpush.msra.mxu0 %v3327
        %3370 = vmatpush.msra.mxu0 %v3325
        %3371 = vmatpush.msra.mxu0 %v3323
        %3372 = vmatmul.f32.gmra.mxu0 %v3345
        %v3373 = vpop.f32.mrf.mxu0
        %v3374 = vadd.f32 0.0, %v3373
        %3375 = vmatmul.f32.gmra.mxu0 %v3348
        %v3376 = vpop.f32.mrf.mxu0
        %v3377 = vadd.f32 0.0, %v3376
        %3378 = vmatmul.f32.gmra.mxu0 %v3351
        %v3379 = vpop.f32.mrf.mxu0
        %v3380 = vadd.f32 0.0, %v3379
        %3381 = vmatmul.f32.gmra.mxu0 %v3354
        %v3382 = vpop.f32.mrf.mxu0
        %v3383 = vadd.f32 0.0, %v3382
        %3384 = vdwg.mxu0
        %3385 = vmatpush.msra.mxu0 0.0
        %3386 = vmatpush.msra.mxu0 0.0
        %3387 = vmatpush.msra.mxu0 0.0
        %3388 = vmatpush.msra.mxu0 0.0
        %3389 = vmatpush.msra.mxu0 0.0
        %3390 = vmatpush.msra.mxu0 0.0
        %3391 = vmatpush.msra.mxu0 0.0
        %3392 = vmatpush.msra.mxu0 0.0
        %3393 = vmatpush.msra.mxu0 0.0
        %3394 = vmatpush.msra.mxu0 0.0
        %3395 = vmatpush.msra.mxu0 0.0
        %3396 = vmatpush.msra.mxu0 0.0
        %3397 = vmatpush.msra.mxu0 %v3330
        %3398 = vmatpush.msra.mxu0 %v3328
        %3399 = vmatpush.msra.mxu0 %v3326
        %3400 = vmatpush.msra.mxu0 %v3324
        %3401 = vmatmul.f32.gmra.mxu0 %v3345
        %v3402 = vpop.f32.mrf.mxu0
        %v3403 = vadd.f32 0.0, %v3402
        %3404 = vmatmul.f32.gmra.mxu0 %v3348
        %v3405 = vpop.f32.mrf.mxu0
        %v3406 = vadd.f32 0.0, %v3405
        %3407 = vmatmul.f32.gmra.mxu0 %v3351
        %v3408 = vpop.f32.mrf.mxu0
        %v3409 = vadd.f32 0.0, %v3408
        %3410 = vmatmul.f32.gmra.mxu0 %v3354
        %v3411 = vpop.f32.mrf.mxu0
        %v3412 = vadd.f32 0.0, %v3411
        %3413 = vdwg.mxu0
        %v3414 = vadd.f32 %v3331, %v3374
        %v3415 = vadd.f32 %v3332, %v3403
        %v3416 = vadd.f32 %v3333, %v3377
        %v3417 = vadd.f32 %v3334, %v3406
        %v3418 = vadd.f32 %v3335, %v3380
        %v3419 = vadd.f32 %v3336, %v3409
        %v3420 = vadd.f32 %v3337, %v3383
        %v3421 = vadd.f32 %v3338, %v3412
        %3422 = vst [vmem:[#allocation3] sm:$0xff] %v3414
        %3423 = vst [vmem:[#allocation3 + $0x8] sm:$0xff] %v3415
        %3424 = vst [vmem:[#allocation3 + $0x10] sm:$0xff] %v3416
        %3425 = vst [vmem:[#allocation3 + $0x18] sm:$0xff] %v3417
        %3426 = vst [vmem:[#allocation3 + $0x20] sm:$0xff] %v3418
        %3427 = vst [vmem:[#allocation3 + $0x28] sm:$0xff] %v3419
        %3428 = vst [vmem:[#allocation3 + $0x30] sm:$0xff] %v3420
        %3429 = vst [vmem:[#allocation3 + $0x38] sm:$0xff] %v3421
        %3430 = vrot.lane.b32.xlu0 %v2783, 125
        %v3431 = vpop.permute.xlu0 %3430
        %3432 = vrot.lane.b32.xlu0 %v2785, 125
        %v3433 = vpop.permute.xlu0 %3432
        %3434 = vrot.lane.b32.xlu0 %v2787, 125
        %v3435 = vpop.permute.xlu0 %3434
        %3436 = vrot.lane.b32.xlu0 %v2789, 125
        %v3437 = vpop.permute.xlu0 %3436
        %3438 = vrot.lane.b32.xlu0 %v2784, 125
        %v3439 = vpop.permute.xlu0 %3438
        %3440 = vrot.lane.b32.xlu0 %v2786, 125
        %v3441 = vpop.permute.xlu0 %3440
        %3442 = vrot.lane.b32.xlu0 %v2788, 125
        %v3443 = vpop.permute.xlu0 %3442
        %3444 = vrot.lane.b32.xlu0 %v2790, 125
        %v3445 = vpop.permute.xlu0 %3444
        %vm3446 = vcmp.lt.s32.totalorder %v340, 125
        %v3447 = vsel %vm3446, %v3431, %v3439
        %v3448 = vsel %vm3446, %v3433, %v3441
        %v3449 = vsel %vm3446, %v3435, %v3443
        %v3450 = vsel %vm3446, %v3437, %v3445
        %v3451 = vsel %vm3446, %v3439, %v3431
        %v3452 = vsel %vm3446, %v3441, %v3433
        %v3453 = vsel %vm3446, %v3443, %v3435
        %v3454 = vsel %vm3446, %v3445, %v3437
        %s3455 = scalar_lea.vmem %s3, 46
        %v3456 = vld [vmem:[%s3455] sm:$0x3]
        %v3458 = vperm.slane %v3456, 0
        %v3459 = vperm.slane %v3456, 1
        %v3462 = vmul.f32 %v3447, %v3458
        %v3463 = vmul.f32 %v3451, %v3459
        %v3464 = vmul.f32 %v3448, %v3458
        %v3465 = vmul.f32 %v3452, %v3459
        %v3466 = vmul.f32 %v3449, %v3458
        %v3467 = vmul.f32 %v3453, %v3459
        %v3468 = vmul.f32 %v3450, %v3458
        %v3469 = vmul.f32 %v3454, %v3459
        %v3470 = vld [vmem:[#allocation3] sm:$0xff]
        %v3471 = vld [vmem:[#allocation3 + $0x8] sm:$0xff]
        %v3472 = vld [vmem:[#allocation3 + $0x10] sm:$0xff]
        %v3473 = vld [vmem:[#allocation3 + $0x18] sm:$0xff]
        %v3474 = vld [vmem:[#allocation3 + $0x20] sm:$0xff]
        %v3475 = vld [vmem:[#allocation3 + $0x28] sm:$0xff]
        %v3476 = vld [vmem:[#allocation3 + $0x30] sm:$0xff]
        %v3477 = vld [vmem:[#allocation3 + $0x38] sm:$0xff]
        %s3478 = scalar_lea.vmem [#allocation4], 736
        %v3479 = vld [vmem:[%s3478] sm:$0xff]
        %v3480 = vld [vmem:[%s3478 + $0x8] sm:$0xff]
        %v3481 = vld [vmem:[%s3478 + $0x10] sm:$0xff]
        %v3482 = vld [vmem:[%s3478 + $0x18] sm:$0xff]
        %v3484 = vsel %vm244, %v3479, 0
        %v3487 = vsel %vm244, %v3480, 0
        %v3490 = vsel %vm244, %v3481, 0
        %v3493 = vsel %vm244, %v3482, 0
        %3495 = vmatpush.msra.mxu0 0.0
        %3496 = vmatpush.msra.mxu0 0.0
        %3497 = vmatpush.msra.mxu0 0.0
        %3498 = vmatpush.msra.mxu0 0.0
        %3499 = vmatpush.msra.mxu0 0.0
        %3500 = vmatpush.msra.mxu0 0.0
        %3501 = vmatpush.msra.mxu0 0.0
        %3502 = vmatpush.msra.mxu0 0.0
        %3503 = vmatpush.msra.mxu0 0.0
        %3504 = vmatpush.msra.mxu0 0.0
        %3505 = vmatpush.msra.mxu0 0.0
        %3506 = vmatpush.msra.mxu0 0.0
        %3507 = vmatpush.msra.mxu0 %v3468
        %3508 = vmatpush.msra.mxu0 %v3466
        %3509 = vmatpush.msra.mxu0 %v3464
        %3510 = vmatpush.msra.mxu0 %v3462
        %3511 = vmatmul.f32.gmra.mxu0 %v3484
        %v3512 = vpop.f32.mrf.mxu0
        %v3513 = vadd.f32 0.0, %v3512
        %3514 = vmatmul.f32.gmra.mxu0 %v3487
        %v3515 = vpop.f32.mrf.mxu0
        %v3516 = vadd.f32 0.0, %v3515
        %3517 = vmatmul.f32.gmra.mxu0 %v3490
        %v3518 = vpop.f32.mrf.mxu0
        %v3519 = vadd.f32 0.0, %v3518
        %3520 = vmatmul.f32.gmra.mxu0 %v3493
        %v3521 = vpop.f32.mrf.mxu0
        %v3522 = vadd.f32 0.0, %v3521
        %3523 = vdwg.mxu0
        %3524 = vmatpush.msra.mxu0 0.0
        %3525 = vmatpush.msra.mxu0 0.0
        %3526 = vmatpush.msra.mxu0 0.0
        %3527 = vmatpush.msra.mxu0 0.0
        %3528 = vmatpush.msra.mxu0 0.0
        %3529 = vmatpush.msra.mxu0 0.0
        %3530 = vmatpush.msra.mxu0 0.0
        %3531 = vmatpush.msra.mxu0 0.0
        %3532 = vmatpush.msra.mxu0 0.0
        %3533 = vmatpush.msra.mxu0 0.0
        %3534 = vmatpush.msra.mxu0 0.0
        %3535 = vmatpush.msra.mxu0 0.0
        %3536 = vmatpush.msra.mxu0 %v3469
        %3537 = vmatpush.msra.mxu0 %v3467
        %3538 = vmatpush.msra.mxu0 %v3465
        %3539 = vmatpush.msra.mxu0 %v3463
        %3540 = vmatmul.f32.gmra.mxu0 %v3484
        %v3541 = vpop.f32.mrf.mxu0
        %v3542 = vadd.f32 0.0, %v3541
        %3543 = vmatmul.f32.gmra.mxu0 %v3487
        %v3544 = vpop.f32.mrf.mxu0
        %v3545 = vadd.f32 0.0, %v3544
        %3546 = vmatmul.f32.gmra.mxu0 %v3490
        %v3547 = vpop.f32.mrf.mxu0
        %v3548 = vadd.f32 0.0, %v3547
        %3549 = vmatmul.f32.gmra.mxu0 %v3493
        %v3550 = vpop.f32.mrf.mxu0
        %v3551 = vadd.f32 0.0, %v3550
        %3552 = vdwg.mxu0
        %v3553 = vadd.f32 %v3470, %v3513
        %v3554 = vadd.f32 %v3471, %v3542
        %v3555 = vadd.f32 %v3472, %v3516
        %v3556 = vadd.f32 %v3473, %v3545
        %v3557 = vadd.f32 %v3474, %v3519
        %v3558 = vadd.f32 %v3475, %v3548
        %v3559 = vadd.f32 %v3476, %v3522
        %v3560 = vadd.f32 %v3477, %v3551
        %3561 = vst [vmem:[#allocation3] sm:$0xff] %v3553
        %3562 = vst [vmem:[#allocation3 + $0x8] sm:$0xff] %v3554
        %3563 = vst [vmem:[#allocation3 + $0x10] sm:$0xff] %v3555
        %3564 = vst [vmem:[#allocation3 + $0x18] sm:$0xff] %v3556
        %3565 = vst [vmem:[#allocation3 + $0x20] sm:$0xff] %v3557
        %3566 = vst [vmem:[#allocation3 + $0x28] sm:$0xff] %v3558
        %3567 = vst [vmem:[#allocation3 + $0x30] sm:$0xff] %v3559
        %3568 = vst [vmem:[#allocation3 + $0x38] sm:$0xff] %v3560
        %3569 = vrot.lane.b32.xlu0 %v2783, 83
        %v3570 = vpop.permute.xlu0 %3569
        %3571 = vrot.lane.b32.xlu0 %v2785, 83
        %v3572 = vpop.permute.xlu0 %3571
        %3573 = vrot.lane.b32.xlu0 %v2787, 83
        %v3574 = vpop.permute.xlu0 %3573
        %3575 = vrot.lane.b32.xlu0 %v2789, 83
        %v3576 = vpop.permute.xlu0 %3575
        %3577 = vrot.lane.b32.xlu0 %v2784, 83
        %v3578 = vpop.permute.xlu0 %3577
        %3579 = vrot.lane.b32.xlu0 %v2786, 83
        %v3580 = vpop.permute.xlu0 %3579
        %3581 = vrot.lane.b32.xlu0 %v2788, 83
        %v3582 = vpop.permute.xlu0 %3581
        %3583 = vrot.lane.b32.xlu0 %v2790, 83
        %v3584 = vpop.permute.xlu0 %3583
        %vm3585 = vcmp.lt.s32.totalorder %v340, 83
        %v3586 = vsel %vm3585, %v3570, %v3578
        %v3587 = vsel %vm3585, %v3572, %v3580
        %v3588 = vsel %vm3585, %v3574, %v3582
        %v3589 = vsel %vm3585, %v3576, %v3584
        %v3590 = vsel %vm3585, %v3578, %v3570
        %v3591 = vsel %vm3585, %v3580, %v3572
        %v3592 = vsel %vm3585, %v3582, %v3574
        %v3593 = vsel %vm3585, %v3584, %v3576
        %s3594 = scalar_lea.vmem %s3, 48
        %v3595 = vld [vmem:[%s3594] sm:$0x3]
        %v3597 = vperm.slane %v3595, 0
        %v3598 = vperm.slane %v3595, 1
        %v3601 = vmul.f32 %v3586, %v3597
        %v3602 = vmul.f32 %v3590, %v3598
        %v3603 = vmul.f32 %v3587, %v3597
        %v3604 = vmul.f32 %v3591, %v3598
        %v3605 = vmul.f32 %v3588, %v3597
        %v3606 = vmul.f32 %v3592, %v3598
        %v3607 = vmul.f32 %v3589, %v3597
        %v3608 = vmul.f32 %v3593, %v3598
        %v3609 = vld [vmem:[#allocation3] sm:$0xff]
        %v3610 = vld [vmem:[#allocation3 + $0x8] sm:$0xff]
        %v3611 = vld [vmem:[#allocation3 + $0x10] sm:$0xff]
        %v3612 = vld [vmem:[#allocation3 + $0x18] sm:$0xff]
        %v3613 = vld [vmem:[#allocation3 + $0x20] sm:$0xff]
        %v3614 = vld [vmem:[#allocation3 + $0x28] sm:$0xff]
        %v3615 = vld [vmem:[#allocation3 + $0x30] sm:$0xff]
        %v3616 = vld [vmem:[#allocation3 + $0x38] sm:$0xff]
        %s3617 = scalar_lea.vmem [#allocation4], 768
        %v3618 = vld [vmem:[%s3617] sm:$0xff]
        %v3619 = vld [vmem:[%s3617 + $0x8] sm:$0xff]
        %v3620 = vld [vmem:[%s3617 + $0x10] sm:$0xff]
        %v3621 = vld [vmem:[%s3617 + $0x18] sm:$0xff]
        %v3623 = vsel %vm244, %v3618, 0
        %v3626 = vsel %vm244, %v3619, 0
        %v3629 = vsel %vm244, %v3620, 0
        %v3632 = vsel %vm244, %v3621, 0
        %3634 = vmatpush.msra.mxu0 0.0
        %3635 = vmatpush.msra.mxu0 0.0
        %3636 = vmatpush.msra.mxu0 0.0
        %3637 = vmatpush.msra.mxu0 0.0
        %3638 = vmatpush.msra.mxu0 0.0
        %3639 = vmatpush.msra.mxu0 0.0
        %3640 = vmatpush.msra.mxu0 0.0
        %3641 = vmatpush.msra.mxu0 0.0
        %3642 = vmatpush.msra.mxu0 0.0
        %3643 = vmatpush.msra.mxu0 0.0
        %3644 = vmatpush.msra.mxu0 0.0
        %3645 = vmatpush.msra.mxu0 0.0
        %3646 = vmatpush.msra.mxu0 %v3607
        %3647 = vmatpush.msra.mxu0 %v3605
        %3648 = vmatpush.msra.mxu0 %v3603
        %3649 = vmatpush.msra.mxu0 %v3601
        %3650 = vmatmul.f32.gmra.mxu0 %v3623
        %v3651 = vpop.f32.mrf.mxu0
        %v3652 = vadd.f32 0.0, %v3651
        %3653 = vmatmul.f32.gmra.mxu0 %v3626
        %v3654 = vpop.f32.mrf.mxu0
        %v3655 = vadd.f32 0.0, %v3654
        %3656 = vmatmul.f32.gmra.mxu0 %v3629
        %v3657 = vpop.f32.mrf.mxu0
        %v3658 = vadd.f32 0.0, %v3657
        %3659 = vmatmul.f32.gmra.mxu0 %v3632
        %v3660 = vpop.f32.mrf.mxu0
        %v3661 = vadd.f32 0.0, %v3660
        %3662 = vdwg.mxu0
        %3663 = vmatpush.msra.mxu0 0.0
        %3664 = vmatpush.msra.mxu0 0.0
        %3665 = vmatpush.msra.mxu0 0.0
        %3666 = vmatpush.msra.mxu0 0.0
        %3667 = vmatpush.msra.mxu0 0.0
        %3668 = vmatpush.msra.mxu0 0.0
        %3669 = vmatpush.msra.mxu0 0.0
        %3670 = vmatpush.msra.mxu0 0.0
        %3671 = vmatpush.msra.mxu0 0.0
        %3672 = vmatpush.msra.mxu0 0.0
        %3673 = vmatpush.msra.mxu0 0.0
        %3674 = vmatpush.msra.mxu0 0.0
        %3675 = vmatpush.msra.mxu0 %v3608
        %3676 = vmatpush.msra.mxu0 %v3606
        %3677 = vmatpush.msra.mxu0 %v3604
        %3678 = vmatpush.msra.mxu0 %v3602
        %3679 = vmatmul.f32.gmra.mxu0 %v3623
        %v3680 = vpop.f32.mrf.mxu0
        %v3681 = vadd.f32 0.0, %v3680
        %3682 = vmatmul.f32.gmra.mxu0 %v3626
        %v3683 = vpop.f32.mrf.mxu0
        %v3684 = vadd.f32 0.0, %v3683
        %3685 = vmatmul.f32.gmra.mxu0 %v3629
        %v3686 = vpop.f32.mrf.mxu0
        %v3687 = vadd.f32 0.0, %v3686
        %3688 = vmatmul.f32.gmra.mxu0 %v3632
        %v3689 = vpop.f32.mrf.mxu0
        %v3690 = vadd.f32 0.0, %v3689
        %3691 = vdwg.mxu0
        %v3692 = vadd.f32 %v3609, %v3652
        %v3693 = vadd.f32 %v3610, %v3681
        %v3694 = vadd.f32 %v3611, %v3655
        %v3695 = vadd.f32 %v3612, %v3684
        %v3696 = vadd.f32 %v3613, %v3658
        %v3697 = vadd.f32 %v3614, %v3687
        %v3698 = vadd.f32 %v3615, %v3661
        %v3699 = vadd.f32 %v3616, %v3690
        %3700 = vst [vmem:[#allocation3] sm:$0xff] %v3692
        %3701 = vst [vmem:[#allocation3 + $0x8] sm:$0xff] %v3693
        %3702 = vst [vmem:[#allocation3 + $0x10] sm:$0xff] %v3694
        %3703 = vst [vmem:[#allocation3 + $0x18] sm:$0xff] %v3695
        %3704 = vst [vmem:[#allocation3 + $0x20] sm:$0xff] %v3696
        %3705 = vst [vmem:[#allocation3 + $0x28] sm:$0xff] %v3697
        %3706 = vst [vmem:[#allocation3 + $0x30] sm:$0xff] %v3698
        %3707 = vst [vmem:[#allocation3 + $0x38] sm:$0xff] %v3699
        %3708 = vrot.lane.b32.xlu0 %v2783, 80
        %v3709 = vpop.permute.xlu0 %3708
        %3710 = vrot.lane.b32.xlu0 %v2785, 80
        %v3711 = vpop.permute.xlu0 %3710
        %3712 = vrot.lane.b32.xlu0 %v2787, 80
        %v3713 = vpop.permute.xlu0 %3712
        %3714 = vrot.lane.b32.xlu0 %v2789, 80
        %v3715 = vpop.permute.xlu0 %3714
        %3716 = vrot.lane.b32.xlu0 %v2784, 80
        %v3717 = vpop.permute.xlu0 %3716
        %3718 = vrot.lane.b32.xlu0 %v2786, 80
        %v3719 = vpop.permute.xlu0 %3718
        %3720 = vrot.lane.b32.xlu0 %v2788, 80
        %v3721 = vpop.permute.xlu0 %3720
        %3722 = vrot.lane.b32.xlu0 %v2790, 80
        %v3723 = vpop.permute.xlu0 %3722
        %vm3724 = vcmp.lt.s32.totalorder %v340, 80
        %v3725 = vsel %vm3724, %v3709, %v3717
        %v3726 = vsel %vm3724, %v3711, %v3719
        %v3727 = vsel %vm3724, %v3713, %v3721
        %v3728 = vsel %vm3724, %v3715, %v3723
        %v3729 = vsel %vm3724, %v3717, %v3709
        %v3730 = vsel %vm3724, %v3719, %v3711
        %v3731 = vsel %vm3724, %v3721, %v3713
        %v3732 = vsel %vm3724, %v3723, %v3715
        %s3733 = scalar_lea.vmem %s3, 50
        %v3734 = vld [vmem:[%s3733] sm:$0x3]
        %v3736 = vperm.slane %v3734, 0
        %v3737 = vperm.slane %v3734, 1
        %v3740 = vmul.f32 %v3725, %v3736
        %v3741 = vmul.f32 %v3729, %v3737
        %v3742 = vmul.f32 %v3726, %v3736
        %v3743 = vmul.f32 %v3730, %v3737
        %v3744 = vmul.f32 %v3727, %v3736
        %v3745 = vmul.f32 %v3731, %v3737
        %v3746 = vmul.f32 %v3728, %v3736
        %v3747 = vmul.f32 %v3732, %v3737
        %v3748 = vld [vmem:[#allocation3] sm:$0xff]
        %v3749 = vld [vmem:[#allocation3 + $0x8] sm:$0xff]
        %v3750 = vld [vmem:[#allocation3 + $0x10] sm:$0xff]
        %v3751 = vld [vmem:[#allocation3 + $0x18] sm:$0xff]
        %v3752 = vld [vmem:[#allocation3 + $0x20] sm:$0xff]
        %v3753 = vld [vmem:[#allocation3 + $0x28] sm:$0xff]
        %v3754 = vld [vmem:[#allocation3 + $0x30] sm:$0xff]
        %v3755 = vld [vmem:[#allocation3 + $0x38] sm:$0xff]
        %s3756 = scalar_lea.vmem [#allocation4], 800
        %v3757 = vld [vmem:[%s3756] sm:$0xff]
        %v3758 = vld [vmem:[%s3756 + $0x8] sm:$0xff]
        %v3759 = vld [vmem:[%s3756 + $0x10] sm:$0xff]
        %v3760 = vld [vmem:[%s3756 + $0x18] sm:$0xff]
        %v3762 = vsel %vm244, %v3757, 0
        %v3765 = vsel %vm244, %v3758, 0
        %v3768 = vsel %vm244, %v3759, 0
        %v3771 = vsel %vm244, %v3760, 0
        %3773 = vmatpush.msra.mxu0 0.0
        %3774 = vmatpush.msra.mxu0 0.0
        %3775 = vmatpush.msra.mxu0 0.0
        %3776 = vmatpush.msra.mxu0 0.0
        %3777 = vmatpush.msra.mxu0 0.0
        %3778 = vmatpush.msra.mxu0 0.0
        %3779 = vmatpush.msra.mxu0 0.0
        %3780 = vmatpush.msra.mxu0 0.0
        %3781 = vmatpush.msra.mxu0 0.0
        %3782 = vmatpush.msra.mxu0 0.0
        %3783 = vmatpush.msra.mxu0 0.0
        %3784 = vmatpush.msra.mxu0 0.0
        %3785 = vmatpush.msra.mxu0 %v3746
        %3786 = vmatpush.msra.mxu0 %v3744
        %3787 = vmatpush.msra.mxu0 %v3742
        %3788 = vmatpush.msra.mxu0 %v3740
        %3789 = vmatmul.f32.gmra.mxu0 %v3762
        %v3790 = vpop.f32.mrf.mxu0
        %v3791 = vadd.f32 0.0, %v3790
        %3792 = vmatmul.f32.gmra.mxu0 %v3765
        %v3793 = vpop.f32.mrf.mxu0
        %v3794 = vadd.f32 0.0, %v3793
        %3795 = vmatmul.f32.gmra.mxu0 %v3768
        %v3796 = vpop.f32.mrf.mxu0
        %v3797 = vadd.f32 0.0, %v3796
        %3798 = vmatmul.f32.gmra.mxu0 %v3771
        %v3799 = vpop.f32.mrf.mxu0
        %v3800 = vadd.f32 0.0, %v3799
        %3801 = vdwg.mxu0
        %3802 = vmatpush.msra.mxu0 0.0
        %3803 = vmatpush.msra.mxu0 0.0
        %3804 = vmatpush.msra.mxu0 0.0
        %3805 = vmatpush.msra.mxu0 0.0
        %3806 = vmatpush.msra.mxu0 0.0
        %3807 = vmatpush.msra.mxu0 0.0
        %3808 = vmatpush.msra.mxu0 0.0
        %3809 = vmatpush.msra.mxu0 0.0
        %3810 = vmatpush.msra.mxu0 0.0
        %3811 = vmatpush.msra.mxu0 0.0
        %3812 = vmatpush.msra.mxu0 0.0
        %3813 = vmatpush.msra.mxu0 0.0
        %3814 = vmatpush.msra.mxu0 %v3747
        %3815 = vmatpush.msra.mxu0 %v3745
        %3816 = vmatpush.msra.mxu0 %v3743
        %3817 = vmatpush.msra.mxu0 %v3741
        %3818 = vmatmul.f32.gmra.mxu0 %v3762
        %v3819 = vpop.f32.mrf.mxu0
        %v3820 = vadd.f32 0.0, %v3819
        %3821 = vmatmul.f32.gmra.mxu0 %v3765
        %v3822 = vpop.f32.mrf.mxu0
        %v3823 = vadd.f32 0.0, %v3822
        %3824 = vmatmul.f32.gmra.mxu0 %v3768
        %v3825 = vpop.f32.mrf.mxu0
        %v3826 = vadd.f32 0.0, %v3825
        %3827 = vmatmul.f32.gmra.mxu0 %v3771
        %v3828 = vpop.f32.mrf.mxu0
        %v3829 = vadd.f32 0.0, %v3828
        %3830 = vdwg.mxu0
        %v3831 = vadd.f32 %v3748, %v3791
        %v3832 = vadd.f32 %v3749, %v3820
        %v3833 = vadd.f32 %v3750, %v3794
        %v3834 = vadd.f32 %v3751, %v3823
        %v3835 = vadd.f32 %v3752, %v3797
        %v3836 = vadd.f32 %v3753, %v3826
        %v3837 = vadd.f32 %v3754, %v3800
        %v3838 = vadd.f32 %v3755, %v3829
        %3839 = vst [vmem:[#allocation3] sm:$0xff] %v3831
        %3840 = vst [vmem:[#allocation3 + $0x8] sm:$0xff] %v3832
        %3841 = vst [vmem:[#allocation3 + $0x10] sm:$0xff] %v3833
        %3842 = vst [vmem:[#allocation3 + $0x18] sm:$0xff] %v3834
        %3843 = vst [vmem:[#allocation3 + $0x20] sm:$0xff] %v3835
        %3844 = vst [vmem:[#allocation3 + $0x28] sm:$0xff] %v3836
        %3845 = vst [vmem:[#allocation3 + $0x30] sm:$0xff] %v3837
        %3846 = vst [vmem:[#allocation3 + $0x38] sm:$0xff] %v3838
        %3847 = vrot.lane.b32.xlu0 %v2783, 77
        %v3848 = vpop.permute.xlu0 %3847
        %3849 = vrot.lane.b32.xlu0 %v2785, 77
        %v3850 = vpop.permute.xlu0 %3849
        %3851 = vrot.lane.b32.xlu0 %v2787, 77
        %v3852 = vpop.permute.xlu0 %3851
        %3853 = vrot.lane.b32.xlu0 %v2789, 77
        %v3854 = vpop.permute.xlu0 %3853
        %3855 = vrot.lane.b32.xlu0 %v2784, 77
        %v3856 = vpop.permute.xlu0 %3855
        %3857 = vrot.lane.b32.xlu0 %v2786, 77
        %v3858 = vpop.permute.xlu0 %3857
        %3859 = vrot.lane.b32.xlu0 %v2788, 77
        %v3860 = vpop.permute.xlu0 %3859
        %3861 = vrot.lane.b32.xlu0 %v2790, 77
        %v3862 = vpop.permute.xlu0 %3861
        %vm3863 = vcmp.lt.s32.totalorder %v340, 77
        %v3864 = vsel %vm3863, %v3848, %v3856
        %v3865 = vsel %vm3863, %v3850, %v3858
        %v3866 = vsel %vm3863, %v3852, %v3860
        %v3867 = vsel %vm3863, %v3854, %v3862
        %v3868 = vsel %vm3863, %v3856, %v3848
        %v3869 = vsel %vm3863, %v3858, %v3850
        %v3870 = vsel %vm3863, %v3860, %v3852
        %v3871 = vsel %vm3863, %v3862, %v3854
        %s3872 = scalar_lea.vmem %s3, 52
        %v3873 = vld [vmem:[%s3872] sm:$0x3]
        %v3875 = vperm.slane %v3873, 0
        %v3876 = vperm.slane %v3873, 1
        %v3879 = vmul.f32 %v3864, %v3875
        %v3880 = vmul.f32 %v3868, %v3876
        %v3881 = vmul.f32 %v3865, %v3875
        %v3882 = vmul.f32 %v3869, %v3876
        %v3883 = vmul.f32 %v3866, %v3875
        %v3884 = vmul.f32 %v3870, %v3876
        %v3885 = vmul.f32 %v3867, %v3875
        %v3886 = vmul.f32 %v3871, %v3876
        %v3887 = vld [vmem:[#allocation3] sm:$0xff]
        %v3888 = vld [vmem:[#allocation3 + $0x8] sm:$0xff]
        %v3889 = vld [vmem:[#allocation3 + $0x10] sm:$0xff]
        %v3890 = vld [vmem:[#allocation3 + $0x18] sm:$0xff]
        %v3891 = vld [vmem:[#allocation3 + $0x20] sm:$0xff]
        %v3892 = vld [vmem:[#allocation3 + $0x28] sm:$0xff]
        %v3893 = vld [vmem:[#allocation3 + $0x30] sm:$0xff]
        %v3894 = vld [vmem:[#allocation3 + $0x38] sm:$0xff]
        %s3895 = scalar_lea.vmem [#allocation4], 832
        %v3896 = vld [vmem:[%s3895] sm:$0xff]
        %v3897 = vld [vmem:[%s3895 + $0x8] sm:$0xff]
        %v3898 = vld [vmem:[%s3895 + $0x10] sm:$0xff]
        %v3899 = vld [vmem:[%s3895 + $0x18] sm:$0xff]
        %v3901 = vsel %vm244, %v3896, 0
        %v3904 = vsel %vm244, %v3897, 0
        %v3907 = vsel %vm244, %v3898, 0
        %v3910 = vsel %vm244, %v3899, 0
        %3912 = vmatpush.msra.mxu0 0.0
        %3913 = vmatpush.msra.mxu0 0.0
        %3914 = vmatpush.msra.mxu0 0.0
        %3915 = vmatpush.msra.mxu0 0.0
        %3916 = vmatpush.msra.mxu0 0.0
        %3917 = vmatpush.msra.mxu0 0.0
        %3918 = vmatpush.msra.mxu0 0.0
        %3919 = vmatpush.msra.mxu0 0.0
        %3920 = vmatpush.msra.mxu0 0.0
        %3921 = vmatpush.msra.mxu0 0.0
        %3922 = vmatpush.msra.mxu0 0.0
        %3923 = vmatpush.msra.mxu0 0.0
        %3924 = vmatpush.msra.mxu0 %v3885
        %3925 = vmatpush.msra.mxu0 %v3883
        %3926 = vmatpush.msra.mxu0 %v3881
        %3927 = vmatpush.msra.mxu0 %v3879
        %3928 = vmatmul.f32.gmra.mxu0 %v3901
        %v3929 = vpop.f32.mrf.mxu0
        %v3930 = vadd.f32 0.0, %v3929
        %3931 = vmatmul.f32.gmra.mxu0 %v3904
        %v3932 = vpop.f32.mrf.mxu0
        %v3933 = vadd.f32 0.0, %v3932
        %3934 = vmatmul.f32.gmra.mxu0 %v3907
        %v3935 = vpop.f32.mrf.mxu0
        %v3936 = vadd.f32 0.0, %v3935
        %3937 = vmatmul.f32.gmra.mxu0 %v3910
        %v3938 = vpop.f32.mrf.mxu0
        %v3939 = vadd.f32 0.0, %v3938
        %3940 = vdwg.mxu0
        %3941 = vmatpush.msra.mxu0 0.0
        %3942 = vmatpush.msra.mxu0 0.0
        %3943 = vmatpush.msra.mxu0 0.0
        %3944 = vmatpush.msra.mxu0 0.0
        %3945 = vmatpush.msra.mxu0 0.0
        %3946 = vmatpush.msra.mxu0 0.0
        %3947 = vmatpush.msra.mxu0 0.0
        %3948 = vmatpush.msra.mxu0 0.0
        %3949 = vmatpush.msra.mxu0 0.0
        %3950 = vmatpush.msra.mxu0 0.0
        %3951 = vmatpush.msra.mxu0 0.0
        %3952 = vmatpush.msra.mxu0 0.0
        %3953 = vmatpush.msra.mxu0 %v3886
        %3954 = vmatpush.msra.mxu0 %v3884
        %3955 = vmatpush.msra.mxu0 %v3882
        %3956 = vmatpush.msra.mxu0 %v3880
        %3957 = vmatmul.f32.gmra.mxu0 %v3901
        %v3958 = vpop.f32.mrf.mxu0
        %v3959 = vadd.f32 0.0, %v3958
        %3960 = vmatmul.f32.gmra.mxu0 %v3904
        %v3961 = vpop.f32.mrf.mxu0
        %v3962 = vadd.f32 0.0, %v3961
        %3963 = vmatmul.f32.gmra.mxu0 %v3907
        %v3964 = vpop.f32.mrf.mxu0
        %v3965 = vadd.f32 0.0, %v3964
        %3966 = vmatmul.f32.gmra.mxu0 %v3910
        %v3967 = vpop.f32.mrf.mxu0
        %v3968 = vadd.f32 0.0, %v3967
        %3969 = vdwg.mxu0
        %v3970 = vadd.f32 %v3887, %v3930
        %v3971 = vadd.f32 %v3888, %v3959
        %v3972 = vadd.f32 %v3889, %v3933
        %v3973 = vadd.f32 %v3890, %v3962
        %v3974 = vadd.f32 %v3891, %v3936
        %v3975 = vadd.f32 %v3892, %v3965
        %v3976 = vadd.f32 %v3893, %v3939
        %v3977 = vadd.f32 %v3894, %v3968
        %3978 = vst [vmem:[#allocation3] sm:$0xff] %v3970
        %3979 = vst [vmem:[#allocation3 + $0x8] sm:$0xff] %v3971
        %3980 = vst [vmem:[#allocation3 + $0x10] sm:$0xff] %v3972
        %3981 = vst [vmem:[#allocation3 + $0x18] sm:$0xff] %v3973
        %3982 = vst [vmem:[#allocation3 + $0x20] sm:$0xff] %v3974
        %3983 = vst [vmem:[#allocation3 + $0x28] sm:$0xff] %v3975
        %3984 = vst [vmem:[#allocation3 + $0x30] sm:$0xff] %v3976
        %3985 = vst [vmem:[#allocation3 + $0x38] sm:$0xff] %v3977
        %v3986 = vld [vmem:[#allocation3] sm:$0xff]
        %v3987 = vld [vmem:[#allocation3 + $0x8] sm:$0xff]
        %v3988 = vld [vmem:[#allocation3 + $0x10] sm:$0xff]
        %v3989 = vld [vmem:[#allocation3 + $0x18] sm:$0xff]
        %v3990 = vld [vmem:[#allocation3 + $0x20] sm:$0xff]
        %v3991 = vld [vmem:[#allocation3 + $0x28] sm:$0xff]
        %v3992 = vld [vmem:[#allocation3 + $0x30] sm:$0xff]
        %v3993 = vld [vmem:[#allocation3 + $0x38] sm:$0xff]
        %s3994 = scalar_lea.vmem %s2, 64
        %v3995 = vld [vmem:[%s3994] sm:$0xff]
        %v3996 = vld [vmem:[%s3994 + $0x8] sm:$0xff]
        %v3997 = vld [vmem:[%s3994 + $0x10] sm:$0xff]
        %v3998 = vld [vmem:[%s3994 + $0x18] sm:$0xff]
        %4000 = vset.pattern.permute.xlu0 0
        %4001 = vperm.xlu0 %4000, %v3995
        %v4002 = vpop.permute.xlu0 %4001
        %4005 = vset.pattern.permute.xlu0 0
        %4006 = vperm.xlu0 %4005, %v3996
        %v4007 = vpop.permute.xlu0 %4006
        %4010 = vset.pattern.permute.xlu0 0
        %4011 = vperm.xlu0 %4010, %v3997
        %v4012 = vpop.permute.xlu0 %4011
        %4015 = vset.pattern.permute.xlu0 0
        %4016 = vperm.xlu0 %4015, %v3998
        %v4017 = vpop.permute.xlu0 %4016
        %v4019 = vadd.f32 %v3986, %v4002
        %v4020 = vadd.f32 %v3987, %v4002
        %v4021 = vadd.f32 %v3988, %v4007
        %v4022 = vadd.f32 %v3989, %v4007
        %v4023 = vadd.f32 %v3990, %v4012
        %v4024 = vadd.f32 %v3991, %v4012
        %v4025 = vadd.f32 %v3992, %v4017
        %v4026 = vadd.f32 %v3993, %v4017
        %vm4027 = vcmp.ge.f32.partialorder %v4019, 0.0
        %vm4028 = vcmp.ge.f32.partialorder %v4020, 0.0
        %vm4029 = vcmp.ge.f32.partialorder %v4021, 0.0
        %vm4030 = vcmp.ge.f32.partialorder %v4022, 0.0
        %vm4031 = vcmp.ge.f32.partialorder %v4023, 0.0
        %vm4032 = vcmp.ge.f32.partialorder %v4024, 0.0
        %vm4033 = vcmp.ge.f32.partialorder %v4025, 0.0
        %vm4034 = vcmp.ge.f32.partialorder %v4026, 0.0
        %v4035 = vmul.f32 %v4019, 0.01
        %v4036 = vmul.f32 %v4020, 0.01
        %v4037 = vmul.f32 %v4021, 0.01
        %v4038 = vmul.f32 %v4022, 0.01
        %v4039 = vmul.f32 %v4023, 0.01
        %v4040 = vmul.f32 %v4024, 0.01
        %v4041 = vmul.f32 %v4025, 0.01
        %v4042 = vmul.f32 %v4026, 0.01
        %v4043 = vsel %vm4027, %v4019, %v4035
        %v4044 = vsel %vm4028, %v4020, %v4036
        %v4045 = vsel %vm4029, %v4021, %v4037
        %v4046 = vsel %vm4030, %v4022, %v4038
        %v4047 = vsel %vm4031, %v4023, %v4039
        %v4048 = vsel %vm4032, %v4024, %v4040
        %v4049 = vsel %vm4033, %v4025, %v4041
        %v4050 = vsel %vm4034, %v4026, %v4042
        %4051 = vst [vmem:[%s214] sm:$0xff] %v4043
        %4052 = vst [vmem:[%s214 + $0x8] sm:$0xff] %v4044
        %4053 = vst [vmem:[%s214 + $0x10] sm:$0xff] %v4045
        %4054 = vst [vmem:[%s214 + $0x18] sm:$0xff] %v4046
        %4055 = vst [vmem:[%s214 + $0x20] sm:$0xff] %v4047
        %4056 = vst [vmem:[%s214 + $0x28] sm:$0xff] %v4048
        %4057 = vst [vmem:[%s214 + $0x30] sm:$0xff] %v4049
        %4058 = vst [vmem:[%s214 + $0x38] sm:$0xff] %v4050
        %p4059 = scmp.lt.s32.totalorder %s16, 1
        %s4060 = scalar_select %p4059, %s16, 1
        %s4061 = smul.addr %s4060, 8
        %s4062 = smul.addr %s4061, 8
        %s4063 = scalar_lea.vmem %s4, %s4062
        // Predicated region
        $region41: #{dilated_conv_block.1} parent=35 // pred_check
          %p4064 = pneg %p123
        $region42: #{dilated_conv_block.1} parent=35 // pred_check_branch
          %4066 = sbr.rel (%p4064) target = $region44
        $region43: #{dilated_conv_block.1} parent=35 // pred_region
          _
        $region44: #{dilated_conv_block.1} parent=35 // pred_fallthru
          _
      $region36: #{dilated_conv_block.1} parent=5 // pred_fallthru
        _
      %p4067 = scmp.le.s32.totalorder 2, %s11
      // Predicated region
      $region45: #{dilated_conv_block.1} parent=5 // pred_check
        %p4068 = pneg %p4067
      $region46: #{dilated_conv_block.1} parent=5 // pred_check_branch
        %4070 = sbr.rel (%p4068) target = $region48
      $region47: #{dilated_conv_block.1} parent=5 // pred_region
        %s4071 = ssub.s32 %s11, 2
        // Predicated region
        $region49: #{dilated_conv_block.1} parent=47 // pred_check
          %p4072 = pneg %p129
        $region50: #{dilated_conv_block.1} parent=47 // pred_check_branch
          %4074 = sbr.rel (%p4072) target = $region52
        $region51: #{dilated_conv_block.1} parent=47 // pred_region
          %p4075 = scmp.lt.s32.totalorder %s17, 1
          %s4076 = scalar_select %p4075, %s17, 1
          %s4077 = smul.addr %s4076, 8
          %s4078 = smul.addr %s4077, 8
          %s4079 = scalar_lea.vmem %s4, %s4078
        $region52: #{dilated_conv_block.1} parent=47 // pred_fallthru
          _
      $region48: #{dilated_conv_block.1} parent=5 // pred_fallthru
        _
    $region6: #{dilated_conv_block.1} parent=1 // loop_footer
      %s15 = sadd.s32 1, %s11
    $region7: #{dilated_conv_block.1} parent=1 // loop_footer_branch
      %10 = sbr.rel target = $region3
    $region8: #{dilated_conv_block.1} parent=1 // loop_exit
      _
    %4080 = vsyncpa [#allocation5], 1
    %s4081 = scalar_lea.sflag [#allocation5], 1
    %4082 = vsyncpa %s4081, 1

</llo_original>
